<compile_context>
chip_gen: v7x
topology: tpu7x:2x2x1
jax: 0.10.0
libtpu: 0.0.40
codegen_flags: <defaults>
</compile_context>

<pallas_src>
import math
import functools

import jax
import jax.numpy as jnp
from jax.experimental import pallas as pl
from jax.experimental.pallas import tpu as pltpu

LEAKY_SLOPE = 0.01   # nn.LeakyReLU default
LN_EPS = 1e-5        # nn.LayerNorm default
BN_EPS = 1e-5        # nn.BatchNorm1d default
GN_EPS = 1e-5        # GraphNorm default


def _leaky(v):
    # 2 VPU ops (mul + max) instead of cmp+mul+select.
    return jnp.maximum(v, LEAKY_SLOPE * v)


def _relu(v):
    return jnp.maximum(v, 0.0)


# ---------------------------------------------------------------------------
# Fused MoGINConv kernel: one dst-node row tile per grid step.
# ---------------------------------------------------------------------------
def moginconv_kernel(num_experts, n_router_hidden, n_edge_hidden, x_cut, cdt,
                     x_ref, bdst_ref, bsrc_ref, h_ref,
                     r_aff_ref, e_aff_ref, r_out_ref,
                     w1xc_ref, ew1_ref, nb_ref, w2_ref, b2_ref,
                     out_ref):
    x = x_ref[...]                                    # (T, N), compute dtype
    tile, n_src = x.shape

    # ---- rebuild the radius-graph adjacency in-kernel (no N^2 mask DMA) ----
    rows = (pl.program_id(0) * tile
            + jax.lax.broadcasted_iota(jnp.int32, (tile, n_src), 0))
    cols = jax.lax.broadcasted_iota(jnp.int32, (tile, n_src), 1)
    edge = ((bdst_ref[...] == bsrc_ref[...]) & (rows != cols) & (x <= x_cut))

    def scal(ref, i, j):                 # SMEM scalar cast to compute dtype
        return ref[i, j].astype(cdt)

    # ---- router MLP (BatchNorm folded into per-channel affine of x) --------
    logits = [None] * num_experts
    for k in range(n_router_hidden):
        zk = _leaky(x * scal(r_aff_ref, 0, k) + scal(r_aff_ref, 1, k))
        for e in range(num_experts):
            contrib = zk * scal(r_out_ref, k, e)
            logits[e] = contrib if logits[e] is None else logits[e] + contrib
    logits = [logits[e] + scal(r_out_ref, n_router_hidden, e)
              for e in range(num_experts)]

    # ---- softmax over experts (E == 2 -> single sigmoid) -------------------
    if num_experts == 2:
        d = (logits[0] - logits[1]).astype(jnp.float32)
        r1 = pl.reciprocal(1.0 + jnp.exp(d), approx=True).astype(cdt)
        routes = [1.0 - r1, r1]
    else:
        mx = logits[0]
        for e in range(1, num_experts):
            mx = jnp.maximum(mx, logits[e])
        exps = [jnp.exp(l - mx) for l in logits]
        den = exps[0]
        for e in range(1, num_experts):
            den = den + exps[e]
        inv = pl.reciprocal(den.astype(jnp.float32), approx=True).astype(cdt)
        routes = [p * inv for p in exps]

    # ---- per-expert aggregation weights; the shared path is their sum ------
    w_e = [jnp.where(edge, routes[e], 0.0) for e in range(num_experts)]

    # ---- neighbour aggregation: one MXU dot per expert (f32 accumulation).
    #      h carries an appended ones column, so the per-row neighbour count
    #      (sum of route weights) falls out of the same dot in f32. -----------
    hb = h_ref[...]                                   # (N, Dn+1) bf16
    dn = hb.shape[1] - 1
    hx = [jnp.dot(w.astype(jnp.bfloat16), hb,
                  preferred_element_type=jnp.float32)
          for w in w_e]                               # E x (T, Dn+1) f32

    # ---- edge-MLP hidden (BN folded), streamed one channel at a time -------
    t_rows = [[] for _ in range(num_experts)]
    for k in range(n_edge_hidden):
        yk = _leaky(x * scal(e_aff_ref, 0, k) + scal(e_aff_ref, 1, k))
        for e in range(num_experts):
            t_rows[e].append(jnp.sum(w_e[e] * yk, axis=-1, keepdims=True))
    t_e = [jnp.concatenate(t_rows[e], axis=-1) for e in range(num_experts)]

    hx_sh, t_sh = hx[0], t_e[0]
    for e in range(1, num_experts):
        hx_sh = hx_sh + hx[e]
        t_sh = t_sh + t_e[e]

    # ---- node MLPs (idx 0 = shared / LeakyReLU, idx 1.. = experts / ReLU) --
    def dot_f32(a, b):
        return jnp.dot(a.astype(jnp.bfloat16), b.astype(jnp.bfloat16),
                       preferred_element_type=jnp.float32)

    def node_mlp(idx, hxv, t, act):
        # First layer: [hx, c] @ [W1x; eb1_fold] + t @ (We2 @ W1e) + b1,
        # where the edge-MLP output layer is folded into the split W1.
        nb = nb_ref[idx]                              # (3, Hn): [b1, gamma, beta]
        y = dot_f32(hxv, w1xc_ref[idx]) + dot_f32(t, ew1_ref[idx]) + nb[0:1]
        mu = jnp.mean(y, axis=-1, keepdims=True)
        var = jnp.mean((y - mu) ** 2, axis=-1, keepdims=True)
        y = (y - mu) * jax.lax.rsqrt(var + LN_EPS) * nb[1:2] + nb[2:3]
        y = act(y)
        return dot_f32(y, w2_ref[idx]) + b2_ref[idx]

    out = node_mlp(0, hx_sh, t_sh, _leaky)            # shared MLP: LeakyReLU
    for e in range(num_experts):
        out = out + node_mlp(e + 1, hx[e], t_e[e], _relu)   # experts: ReLU

    # ---- load-balancing partial sums; lane-dense combined output -----------
    # mask in {0,1}  =>  mask * route_e^2 == w_e^2  (reuses existing slabs).
    sq = jnp.sum(w_e[0] * w_e[0], axis=-1, keepdims=True)
    for e in range(1, num_experts):
        sq = sq + jnp.sum(w_e[e] * w_e[e], axis=-1, keepdims=True)
    c_cols = [hxv[:, dn:dn + 1] for hxv in hx]        # f32 counts from the MXU

    parts = [out] + c_cols + [sq.astype(jnp.float32)]
    pad = out_ref.shape[-1] - out.shape[-1] - num_experts - 1
    if pad:
        parts.append(jnp.zeros((tile, pad), jnp.float32))
    out_ref[...] = jnp.concatenate(parts, axis=-1)


# ---------------------------------------------------------------------------
# Device-dependent configuration (compute dtype / VMEM budget / tile size).
# ---------------------------------------------------------------------------
def _device_config():
    try:
        kind = jax.devices()[0].device_kind.lower()
    except Exception:
        kind = ''
    if ('v5 lite' in kind) or ('v5e' in kind) or ('v5lite' in kind):
        # v5e: no bf16 VALU -> keep f32 slabs; 128 MiB physical VMEM.
        return jnp.float32, 100 * 1024 * 1024, 256
    if any(s in kind for s in ('v4', 'v5', 'v6')):
        # v5p / v6e class: bf16 VALU, 128 MiB physical VMEM.
        return jnp.bfloat16, 96 * 1024 * 1024, 256
    # v7x (64 MiB VMEM per TensorCore) and unknown chips: leave headroom.
    return jnp.bfloat16, 48 * 1024 * 1024, 128


def _pick_tile(n, dn, num_experts, cdt, vmem_limit, base_tile):
    itemsize = jnp.dtype(cdt).itemsize
    budget = int(vmem_limit * 0.7)
    # live (tile, N) slabs: x + logits(E) + routes(E) + weights(E) + ~2
    # transients, plus the double-buffered x input block.
    slabs = 3 * num_experts + 5
    for t in (256, 128, 64, 32, 16, 8):
        if t > base_tile:
            continue
        n_pad = pl.cdiv(n, t) * t
        steps = n_pad // t
        need = (slabs * t * n * itemsize + 2 * n * (dn + 1) * 2
                + 2 * t * 128 * 4 + (2 << 20))
        waste_ok = (n_pad - n) * 8 <= n_pad
        if need <= budget and (steps >= 2 or t == 8) and (waste_ok or t == 8):
            return t
    # TODO(synk): for very large N the source dimension should be tiled too.
    return 8


# ---------------------------------------------------------------------------
# Wrapper: folds BatchNorm / edge-MLP output layer into kernel parameters and
# launches the gridded pallas_call for one MoGINConv layer.
# ---------------------------------------------------------------------------
def run_moginconv(h, x_pad, bdst, bsrc, cp, mu_x, var_x, *, n, tile_n,
                  compute_dtype, vmem_limit, x_cut):
    n_pad, n_src = x_pad.shape
    dn = h.shape[1]
    num_experts = cp['wr2'].shape[1]
    hr = cp['wr1'].shape[1]
    he = cp['we1'].shape[1]
    hn = cp['ws1'].shape[1]
    dout = cp['ws2'].shape[1]

    # BatchNorm (masked batch stats) folded into per-hidden-channel affines:
    #   BN(x*w + b) = x*A + C with A = w*g*rsqrt(var_x*w^2+eps), C = bt - mu_x*A
    ar = cp['wr1'] * cp['gr1'] * jax.lax.rsqrt(var_x * cp['wr1'] ** 2 + BN_EPS)
    cr = cp['btr1'] - mu_x * ar
    ae = cp['we1'] * cp['ge1'] * jax.lax.rsqrt(var_x * cp['we1'] ** 2 + BN_EPS)
    ce = cp['bte1'] - mu_x * ae
    r_aff = jnp.concatenate([ar, cr], axis=0)                   # (2, Hr)
    e_aff = jnp.concatenate([ae, ce], axis=0)                   # (2, He)
    r_out = jnp.concatenate([cp['wr2'], cp['br2']], axis=0)     # (Hr+1, E)

    # Split node-MLP first layers, fold the edge-MLP output layer into them,
    # append the folded edge-output bias as the "count" row, and stack the
    # shared MLP (idx 0) with the expert MLPs (idx 1..E).
    ws1x, ws1e = cp['ws1'][:dn], cp['ws1'][dn:]
    xw1x, xw1e = cp['xw1'][:, :dn, :], cp['xw1'][:, dn:, :]
    seb1 = jnp.dot(cp['be2'], ws1e)                             # (1, Hn)
    xeb1 = jnp.einsum('od,edk->eok', cp['be2'], xw1e)           # (E, 1, Hn)
    w1xc_all = jnp.concatenate(
        [jnp.concatenate([ws1x, seb1], axis=0)[None],
         jnp.concatenate([xw1x, xeb1], axis=1)], axis=0)        # (E+1, Dn+1, Hn)
    ew1_all = jnp.concatenate(
        [jnp.dot(cp['we2'], ws1e)[None],
         jnp.einsum('hd,edk->ehk', cp['we2'], xw1e)], axis=0)   # (E+1, He, Hn)
    nb_all = jnp.concatenate(
        [jnp.concatenate([cp['bs1'], cp['gs'], cp['bts']], axis=0)[None],
         jnp.concatenate([cp['xb1'], cp['xg'], cp['xbt']], axis=1)],
        axis=0)                                                 # (E+1, 3, Hn)
    w2_all = jnp.concatenate([cp['ws2'][None], cp['xw2']], axis=0)
    b2_all = jnp.concatenate([cp['bs2'][None], cp['xb2']], axis=0)

    # node features with an appended ones column -> counts come out of the MXU
    h_aug = jnp.concatenate(
        [h.astype(jnp.bfloat16), jnp.ones((n_src, 1), jnp.bfloat16)], axis=1)

    out_w = pl.cdiv(dout + num_experts + 1, 128) * 128          # lane-dense out
    grid = (n_pad // tile_n,)

    def full_spec(shape):
        nd = len(shape)
        return pl.BlockSpec(shape, lambda i: (0,) * nd)

    smem = pl.BlockSpec(memory_space=pltpu.MemorySpace.SMEM)

    in_specs = [
        pl.BlockSpec((tile_n, n_src), lambda i: (i, 0)),        # x (dst tiled)
        pl.BlockSpec((tile_n, 1), lambda i: (i, 0)),            # batch[dst]
        pl.BlockSpec((1, n_src), lambda i: (0, 0)),             # batch[src]
        full_spec((n_src, dn + 1)),                             # h (+ones, bf16)
        smem, smem, smem,                                       # r_aff, e_aff, r_out
        full_spec((num_experts + 1, dn + 1, hn)),               # [W1x; eb1 fold]
        full_spec((num_experts + 1, he, hn)),                   # We2 @ W1e
        full_spec((num_experts + 1, 3, hn)),                    # [b1, gamma, beta]
        full_spec((num_experts + 1, hn, dout)),                 # W2
        full_spec((num_experts + 1, 1, dout)),                  # b2
    ]
    out_spec = pl.BlockSpec((tile_n, out_w), lambda i: (i, 0))

    res = pl.pallas_call(
        functools.partial(moginconv_kernel, num_experts, hr, he, x_cut,
                          compute_dtype),
        grid=grid,
        in_specs=in_specs,
        out_specs=out_spec,
        out_shape=jax.ShapeDtypeStruct((n_pad, out_w), jnp.float32),
        compiler_params=pltpu.CompilerParams(
            dimension_semantics=("parallel",),      # dst tiles split across TCs
            vmem_limit_bytes=vmem_limit),
    )(x_pad, bdst, bsrc, h_aug,
      r_aff, e_aff, r_out,
      w1xc_all, ew1_all, nb_all, w2_all, b2_all)

    res = res[:n]
    return res[:, :dout], res[:, dout:dout + num_experts + 1]


# ---------------------------------------------------------------------------
# Plain-JAX glue (scalar loss math, GraphNorm, pooling)
# ---------------------------------------------------------------------------
def load_balancing_loss(lb_sums, cnt, num_experts, alpha, beta, threshold):
    if alpha + beta == 0:
        return jnp.float32(0.0)
    frac = 1.0 / num_experts
    mean_e = jnp.sum(lb_sums[:, :num_experts], axis=0) / cnt
    expert_bias = (jnp.sum(mean_e ** 2) - frac) * (1.0 / (1.0 - frac))
    uncertainty = 1.0 - jnp.sum(lb_sums[:, num_experts]) / cnt
    t = (alpha + beta) * threshold
    unfiltered = alpha * expert_bias + beta * uncertainty
    return (jnp.maximum(unfiltered, t) - t) * ((alpha + beta) / (alpha + beta - t))


def graph_norm(x, batch, num_graphs):
    # GraphNorm with default init (weight=1, bias=0, mean_scale=1)
    ones = jnp.ones((x.shape[0], 1), jnp.float32)
    cnt = jax.ops.segment_sum(ones, batch, num_segments=num_graphs)
    mean = jax.ops.segment_sum(x, batch, num_segments=num_graphs) / cnt
    out = x - mean[batch]
    var = jax.ops.segment_sum(out * out, batch, num_segments=num_graphs) / cnt
    return out / jnp.sqrt(var[batch] + GN_EPS)


def mogin12_forward(params, pos, atom_type, batch, *, num_graphs,
                    cutoff=10.0, lb_alpha=0.1, lb_beta=0.1, lb_threshold=0.1):
    n = pos.shape[0]
    # ----- RadiusInteractionGraph (dense) + masked edge-length statistics ----
    diff = pos[:, None, :] - pos[None, :, :]
    dist = jnp.sqrt(jnp.sum(diff * diff, axis=-1))                    # (N, N)
    same_graph = batch[:, None] == batch[None, :]
    not_self = ~jnp.eye(n, dtype=bool)
    maskf = (same_graph & not_self & (dist <= cutoff)).astype(jnp.float32)
    x_norm = (dist - 2.7554) / 1.1664                                 # (N, N)

    cnt = jnp.maximum(jnp.sum(maskf), 1.0)     # guard against zero valid edges
    mu_x = jnp.sum(maskf * x_norm) / cnt
    var_x = jnp.sum(maskf * (x_norm - mu_x) ** 2) / cnt

    # ----- device-dependent dtype / VMEM / tiling, padding hoisted here -----
    cdt, vmem_limit, base_tile = _device_config()
    num_experts_max = max(cp['wr2'].shape[1] for cp in params['convs'])
    tile_n = _pick_tile(n, params['emb'].shape[1], num_experts_max, cdt,
                        vmem_limit, base_tile)
    n_pad = pl.cdiv(n, tile_n) * tile_n
    x_pad = jnp.pad(x_norm, ((0, n_pad - n), (0, 0))).astype(cdt)
    bdst = jnp.pad(batch.astype(jnp.int32), (0, n_pad - n),
                   constant_values=-1)[:, None]                       # (n_pad, 1)
    bsrc = batch.astype(jnp.int32)[None, :]                           # (1, n)
    x_cut = float((cutoff - 2.7554) / 1.1664)

    # ----- atom embedding -----
    h = params['emb'][atom_type]                                      # (N, Dn)

    total_lbl = jnp.float32(0.0)
    n_convs = len(params['convs'])
    for i, cp in enumerate(params['convs']):
        num_experts = cp['wr2'].shape[1]
        h_, lb_sums = run_moginconv(
            h, x_pad, bdst, bsrc, cp, mu_x, var_x, n=n, tile_n=tile_n,
            compute_dtype=cdt, vmem_limit=vmem_limit, x_cut=x_cut)
        total_lbl = total_lbl + load_balancing_loss(
            lb_sums, cnt, num_experts, lb_alpha, lb_beta, lb_threshold) / n_convs
        if i + 1 < n_convs:
            h_ = graph_norm(h_, batch, num_graphs)
            h_ = _relu(h_)                        # MoGIN12 activation = ReLU
        h = h + params['alpha'][i] * h_

    # ----- readout (data.batch is not None path) -----
    ones = jnp.ones((n, 1), jnp.float32)
    gcnt = jax.ops.segment_sum(ones, batch, num_segments=num_graphs)
    pooled = jax.ops.segment_sum(h, batch, num_segments=num_graphs) / gcnt
    return pooled.mean(-1), total_lbl


# ---------------------------------------------------------------------------
# Deterministic parameter init (xavier_uniform weights, zero biases, default
# norm params), mirroring the module's reset_parameters().
# ---------------------------------------------------------------------------
def xavier(key, fan_in, fan_out):
    a = math.sqrt(6.0 / (fan_in + fan_out))
    return jax.random.uniform(key, (fan_in, fan_out), jnp.float32, -a, a)


def init_params(key, node_dimses, edge_dimses, router_dimses):
    n_convs = len(node_dimses)
    keys = jax.random.split(key, 1 + n_convs)
    emb = jax.random.normal(keys[0], (200, node_dimses[0][0]), jnp.float32)
    convs = []
    for ci in range(n_convs):
        nd, ed, rd = node_dimses[ci], edge_dimses[ci], router_dimses[ci]
        assert len(nd) == 3 and len(ed) == 3 and len(rd) == 3, \
            "demo supports single-hidden-layer MLPs"
        num_experts = rd[-1]
        dn_in, dh, dn_out = nd[0] + ed[-1], nd[1], nd[-1]
        k = jax.random.split(keys[1 + ci], 6 + 2 * num_experts)
        cp = {
            # router MLP  rd[0] -> rd[1] -> rd[2]   (BatchNorm on hidden)
            'wr1': xavier(k[0], rd[0], rd[1]), 'br1': jnp.zeros((1, rd[1])),
            'gr1': jnp.ones((1, rd[1])), 'btr1': jnp.zeros((1, rd[1])),
            'wr2': xavier(k[1], rd[1], rd[2]), 'br2': jnp.zeros((1, rd[2])),
            # edge MLP    ed[0] -> ed[1] -> ed[2]   (BatchNorm on hidden)
            'we1': xavier(k[2], ed[0], ed[1]), 'be1': jnp.zeros((1, ed[1])),
            'ge1': jnp.ones((1, ed[1])), 'bte1': jnp.zeros((1, ed[1])),
            'we2': xavier(k[3], ed[1], ed[2]), 'be2': jnp.zeros((1, ed[2])),
            # shared node MLP  (Dn+De) -> dh -> Dn_out  (LayerNorm on hidden)
            'ws1': xavier(k[4], dn_in, dh), 'bs1': jnp.zeros((1, dh)),
            'gs': jnp.ones((1, dh)), 'bts': jnp.zeros((1, dh)),
            'ws2': xavier(k[5], dh, dn_out), 'bs2': jnp.zeros((1, dn_out)),
            # expert node MLPs, stacked along axis 0
            'xw1': jnp.stack([xavier(k[6 + e], dn_in, dh)
                              for e in range(num_experts)]),
            'xb1': jnp.zeros((num_experts, 1, dh)),
            'xg': jnp.ones((num_experts, 1, dh)),
            'xbt': jnp.zeros((num_experts, 1, dh)),
            'xw2': jnp.stack([xavier(k[6 + num_experts + e], dh, dn_out)
                              for e in range(num_experts)]),
            'xb2': jnp.zeros((num_experts, 1, dn_out)),
        }
        convs.append(cp)
    return {'emb': emb, 'convs': convs,
            'alpha': jnp.ones((n_convs,), jnp.float32)}   # constant(alpha, 1.0)


# NOTE on the router/edge BatchNorm folding used above:
#   z = x*w1 + b1 is affine in the scalar edge length x, so with masked batch
#   statistics  mu_z = mu_x*w1 + b1, var_z = var_x*w1^2  the BN output equals
#   x*A + C exactly; the folding is mathematically identical to applying
#   BatchNorm with masked batch stats over all valid edges.


if __name__ == "__main__":
    key = jax.random.PRNGKey(0)
    kpos, katom, kparam = jax.random.split(key, 3)

    nodes_per_graph, num_graphs = 8, 2
    n_nodes = nodes_per_graph * num_graphs

    pos = jax.random.normal(kpos, (n_nodes, 3), jnp.float32) * 1.5
    atom_type = jax.random.randint(katom, (n_nodes,), 0, 200)
    batch = jnp.repeat(jnp.arange(num_graphs, dtype=jnp.int32), nodes_per_graph)

    node_dimses = [[16, 32, 16], [16, 32, 16]]
    edge_dimses = [[1, 16, 8], [1, 16, 8]]
    router_dimses = [[1, 8, 2], [1, 8, 2]]

    params = init_params(kparam, node_dimses, edge_dimses, router_dimses)

    fwd = jax.jit(functools.partial(mogin12_forward, num_graphs=num_graphs))
    out, lbl = fwd(params, pos, atom_type, batch)
    jax.block_until_ready((out, lbl))

    assert out.shape == (num_graphs,)
    assert jnp.isfinite(out).all() and jnp.isfinite(lbl)
    print("KERNEL_OK")
</pallas_src>

<mosaic_0001>
module attributes {stable_mosaic.version = 11 : i64} {
  func.func private @main(%arg0: i32) attributes {dimension_semantics = [#tpu.dimension_semantics<core_parallel>], iteration_bounds = array<i64: 2>, tpu.core_type = #tpu.core_type<sc_scalar_subcore>, window_params = []} {
    return
  }
}

module attributes {stable_mosaic.version = 11 : i64} {
  func.func private @main(%arg0: i32) attributes {dimension_semantics = [#tpu.dimension_semantics<core_parallel>], iteration_bounds = array<i64: 2>, tpu.core_type = #tpu.core_type<sc_scalar_subcore>, window_params = []} {
    return
  }
}

module attributes {stable_mosaic.version = 11 : i64} {
  func.func @moginconv_kernel(%arg0: i32, %arg1: memref<8x16xbf16, #tpu.memory_space<vmem>>, %arg2: memref<8x1xi32, #tpu.memory_space<vmem>>, %arg3: memref<1x16xi32, #tpu.memory_space<vmem>>, %arg4: memref<16x17xbf16, #tpu.memory_space<vmem>>, %arg5: memref<2x8xf32, #tpu.memory_space<smem>>, %arg6: memref<2x16xf32, #tpu.memory_space<smem>>, %arg7: memref<9x2xf32, #tpu.memory_space<smem>>, %arg8: memref<3x17x32xf32, #tpu.memory_space<vmem>>, %arg9: memref<3x16x32xf32, #tpu.memory_space<vmem>>, %arg10: memref<3x3x32xf32, #tpu.memory_space<vmem>>, %arg11: memref<3x32x16xf32, #tpu.memory_space<vmem>>, %arg12: memref<3x1x16xf32, #tpu.memory_space<vmem>>, %arg13: memref<8x128xf32, #tpu.memory_space<vmem>>) attributes {dimension_semantics = [#tpu.dimension_semantics<parallel>], iteration_bounds = array<i64: 2>, scalar_prefetch = 0 : i64, scratch_operands = 0 : i64, tpu.core_type = #tpu.core_type<tc>, window_params = [{transform_indices = @transform_0, window_bounds = array<i64: 8, 16>}, {transform_indices = @transform_1, window_bounds = array<i64: 8, 1>}, {pipeline_mode = #tpu.pipeline_mode<synchronous>, transform_indices = @transform_2, window_bounds = array<i64: 1, 16>}, {pipeline_mode = #tpu.pipeline_mode<synchronous>, transform_indices = @transform_3, window_bounds = array<i64: 16, 17>}, {transform_indices = @transform_4, window_bounds = array<i64: 2, 8>}, {transform_indices = @transform_5, window_bounds = array<i64: 2, 16>}, {transform_indices = @transform_6, window_bounds = array<i64: 9, 2>}, {pipeline_mode = #tpu.pipeline_mode<synchronous>, transform_indices = @transform_7, window_bounds = array<i64: 3, 17, 32>}, {pipeline_mode = #tpu.pipeline_mode<synchronous>, transform_indices = @transform_8, window_bounds = array<i64: 3, 16, 32>}, {pipeline_mode = #tpu.pipeline_mode<synchronous>, transform_indices = @transform_9, window_bounds = array<i64: 3, 3, 32>}, {pipeline_mode = #tpu.pipeline_mode<synchronous>, transform_indices = @transform_10, window_bounds = array<i64: 3, 32, 16>}, {pipeline_mode = #tpu.pipeline_mode<synchronous>, transform_indices = @transform_11, window_bounds = array<i64: 3, 1, 16>}, {transform_indices = @transform_12, window_bounds = array<i64: 8, 128>}]} {
    %c0 = arith.constant 0 : index
    %c0_0 = arith.constant 0 : index
    %0 = vector.load %arg1[%c0, %c0_0] : memref<8x16xbf16, #tpu.memory_space<vmem>>, vector<8x16xbf16>
    %c8_i32 = arith.constant 8 : i32
    %1 = arith.muli %arg0, %c8_i32 : i32
    %2 = tpu.iota {dimensions = array<i32: 0>} : vector<8x16xi32>
    %3 = vector.broadcast %1 : i32 to vector<8x16xi32>
    %4 = arith.addi %3, %2 : vector<8x16xi32>
    %5 = tpu.iota {dimensions = array<i32: 1>} : vector<8x16xi32>
    %c0_1 = arith.constant 0 : index
    %c0_2 = arith.constant 0 : index
    %6 = vector.load %arg2[%c0_1, %c0_2] : memref<8x1xi32, #tpu.memory_space<vmem>>, vector<8x1xi32>
    %c0_3 = arith.constant 0 : index
    %c0_4 = arith.constant 0 : index
    %7 = vector.load %arg3[%c0_3, %c0_4] : memref<1x16xi32, #tpu.memory_space<vmem>>, vector<1x16xi32>
    %8 = vector.broadcast %6 : vector<8x1xi32> to vector<8x16xi32>
    %9 = vector.broadcast %7 : vector<1x16xi32> to vector<8x16xi32>
    %10 = arith.cmpi eq, %8, %9 : vector<8x16xi32>
    %11 = arith.cmpi ne, %4, %5 : vector<8x16xi32>
    %12 = arith.andi %10, %11 : vector<8x16xi1>
    %cst = arith.constant 6.218750e+00 : bf16
    %13 = vector.broadcast %cst : bf16 to vector<8x16xbf16>
    %14 = arith.cmpf ole, %0, %13 : vector<8x16xbf16>
    %15 = arith.andi %12, %14 : vector<8x16xi1>
    %c0_5 = arith.constant 0 : index
    %c0_6 = arith.constant 0 : index
    %16 = memref.load %arg5[%c0_5, %c0_6] : memref<2x8xf32, #tpu.memory_space<smem>>
    %17 = arith.truncf %16 : f32 to bf16
    %18 = vector.broadcast %17 : bf16 to vector<8x16xbf16>
    %19 = arith.mulf %0, %18 : vector<8x16xbf16>
    %c1 = arith.constant 1 : index
    %c0_7 = arith.constant 0 : index
    %20 = memref.load %arg5[%c1, %c0_7] : memref<2x8xf32, #tpu.memory_space<smem>>
    %21 = arith.truncf %20 : f32 to bf16
    %22 = vector.broadcast %21 : bf16 to vector<8x16xbf16>
    %23 = arith.addf %19, %22 : vector<8x16xbf16>
    %cst_8 = arith.constant 1.000980e-02 : bf16
    %24 = vector.broadcast %cst_8 : bf16 to vector<8x16xbf16>
    %25 = arith.mulf %24, %23 : vector<8x16xbf16>
    %26 = arith.maximumf %23, %25 : vector<8x16xbf16>
    %c0_9 = arith.constant 0 : index
    %c0_10 = arith.constant 0 : index
    %27 = memref.load %arg7[%c0_9, %c0_10] : memref<9x2xf32, #tpu.memory_space<smem>>
    %28 = arith.truncf %27 : f32 to bf16
    %29 = vector.broadcast %28 : bf16 to vector<8x16xbf16>
    %30 = arith.mulf %26, %29 : vector<8x16xbf16>
    %c0_11 = arith.constant 0 : index
    %c1_12 = arith.constant 1 : index
    %31 = memref.load %arg7[%c0_11, %c1_12] : memref<9x2xf32, #tpu.memory_space<smem>>
    %32 = arith.truncf %31 : f32 to bf16
    %33 = vector.broadcast %32 : bf16 to vector<8x16xbf16>
    %34 = arith.mulf %26, %33 : vector<8x16xbf16>
    %c0_13 = arith.constant 0 : index
    %c1_14 = arith.constant 1 : index
    %35 = memref.load %arg5[%c0_13, %c1_14] : memref<2x8xf32, #tpu.memory_space<smem>>
    %36 = arith.truncf %35 : f32 to bf16
    %37 = vector.broadcast %36 : bf16 to vector<8x16xbf16>
    %38 = arith.mulf %0, %37 : vector<8x16xbf16>
    %c1_15 = arith.constant 1 : index
    %c1_16 = arith.constant 1 : index
    %39 = memref.load %arg5[%c1_15, %c1_16] : memref<2x8xf32, #tpu.memory_space<smem>>
    %40 = arith.truncf %39 : f32 to bf16
    %41 = vector.broadcast %40 : bf16 to vector<8x16xbf16>
    %42 = arith.addf %38, %41 : vector<8x16xbf16>
    %cst_17 = arith.constant 1.000980e-02 : bf16
    %43 = vector.broadcast %cst_17 : bf16 to vector<8x16xbf16>
    %44 = arith.mulf %43, %42 : vector<8x16xbf16>
    %45 = arith.maximumf %42, %44 : vector<8x16xbf16>
    %c1_18 = arith.constant 1 : index
    %c0_19 = arith.constant 0 : index
    %46 = memref.load %arg7[%c1_18, %c0_19] : memref<9x2xf32, #tpu.memory_space<smem>>
    %47 = arith.truncf %46 : f32 to bf16
    %48 = vector.broadcast %47 : bf16 to vector<8x16xbf16>
    %49 = arith.mulf %45, %48 : vector<8x16xbf16>
    %50 = arith.addf %30, %49 : vector<8x16xbf16>
    %c1_20 = arith.constant 1 : index
    %c1_21 = arith.constant 1 : index
    %51 = memref.load %arg7[%c1_20, %c1_21] : memref<9x2xf32, #tpu.memory_space<smem>>
    %52 = arith.truncf %51 : f32 to bf16
    %53 = vector.broadcast %52 : bf16 to vector<8x16xbf16>
    %54 = arith.mulf %45, %53 : vector<8x16xbf16>
    %55 = arith.addf %34, %54 : vector<8x16xbf16>
    %c0_22 = arith.constant 0 : index
    %c2 = arith.constant 2 : index
    %56 = memref.load %arg5[%c0_22, %c2] : memref<2x8xf32, #tpu.memory_space<smem>>
    %57 = arith.truncf %56 : f32 to bf16
    %58 = vector.broadcast %57 : bf16 to vector<8x16xbf16>
    %59 = arith.mulf %0, %58 : vector<8x16xbf16>
    %c1_23 = arith.constant 1 : index
    %c2_24 = arith.constant 2 : index
    %60 = memref.load %arg5[%c1_23, %c2_24] : memref<2x8xf32, #tpu.memory_space<smem>>
    %61 = arith.truncf %60 : f32 to bf16
    %62 = vector.broadcast %61 : bf16 to vector<8x16xbf16>
    %63 = arith.addf %59, %62 : vector<8x16xbf16>
    %cst_25 = arith.constant 1.000980e-02 : bf16
    %64 = vector.broadcast %cst_25 : bf16 to vector<8x16xbf16>
    %65 = arith.mulf %64, %63 : vector<8x16xbf16>
    %66 = arith.maximumf %63, %65 : vector<8x16xbf16>
    %c2_26 = arith.constant 2 : index
    %c0_27 = arith.constant 0 : index
    %67 = memref.load %arg7[%c2_26, %c0_27] : memref<9x2xf32, #tpu.memory_space<smem>>
    %68 = arith.truncf %67 : f32 to bf16
    %69 = vector.broadcast %68 : bf16 to vector<8x16xbf16>
    %70 = arith.mulf %66, %69 : vector<8x16xbf16>
    %71 = arith.addf %50, %70 : vector<8x16xbf16>
    %c2_28 = arith.constant 2 : index
    %c1_29 = arith.constant 1 : index
    %72 = memref.load %arg7[%c2_28, %c1_29] : memref<9x2xf32, #tpu.memory_space<smem>>
    %73 = arith.truncf %72 : f32 to bf16
    %74 = vector.broadcast %73 : bf16 to vector<8x16xbf16>
    %75 = arith.mulf %66, %74 : vector<8x16xbf16>
    %76 = arith.addf %55, %75 : vector<8x16xbf16>
    %c0_30 = arith.constant 0 : index
    %c3 = arith.constant 3 : index
    %77 = memref.load %arg5[%c0_30, %c3] : memref<2x8xf32, #tpu.memory_space<smem>>
    %78 = arith.truncf %77 : f32 to bf16
    %79 = vector.broadcast %78 : bf16 to vector<8x16xbf16>
    %80 = arith.mulf %0, %79 : vector<8x16xbf16>
    %c1_31 = arith.constant 1 : index
    %c3_32 = arith.constant 3 : index
    %81 = memref.load %arg5[%c1_31, %c3_32] : memref<2x8xf32, #tpu.memory_space<smem>>
    %82 = arith.truncf %81 : f32 to bf16
    %83 = vector.broadcast %82 : bf16 to vector<8x16xbf16>
    %84 = arith.addf %80, %83 : vector<8x16xbf16>
    %cst_33 = arith.constant 1.000980e-02 : bf16
    %85 = vector.broadcast %cst_33 : bf16 to vector<8x16xbf16>
    %86 = arith.mulf %85, %84 : vector<8x16xbf16>
    %87 = arith.maximumf %84, %86 : vector<8x16xbf16>
    %c3_34 = arith.constant 3 : index
    %c0_35 = arith.constant 0 : index
    %88 = memref.load %arg7[%c3_34, %c0_35] : memref<9x2xf32, #tpu.memory_space<smem>>
    %89 = arith.truncf %88 : f32 to bf16
    %90 = vector.broadcast %89 : bf16 to vector<8x16xbf16>
    %91 = arith.mulf %87, %90 : vector<8x16xbf16>
    %92 = arith.addf %71, %91 : vector<8x16xbf16>
    %c3_36 = arith.constant 3 : index
    %c1_37 = arith.constant 1 : index
    %93 = memref.load %arg7[%c3_36, %c1_37] : memref<9x2xf32, #tpu.memory_space<smem>>
    %94 = arith.truncf %93 : f32 to bf16
    %95 = vector.broadcast %94 : bf16 to vector<8x16xbf16>
    %96 = arith.mulf %87, %95 : vector<8x16xbf16>
    %97 = arith.addf %76, %96 : vector<8x16xbf16>
    %c0_38 = arith.constant 0 : index
    %c4 = arith.constant 4 : index
    %98 = memref.load %arg5[%c0_38, %c4] : memref<2x8xf32, #tpu.memory_space<smem>>
    %99 = arith.truncf %98 : f32 to bf16
    %100 = vector.broadcast %99 : bf16 to vector<8x16xbf16>
    %101 = arith.mulf %0, %100 : vector<8x16xbf16>
    %c1_39 = arith.constant 1 : index
    %c4_40 = arith.constant 4 : index
    %102 = memref.load %arg5[%c1_39, %c4_40] : memref<2x8xf32, #tpu.memory_space<smem>>
    %103 = arith.truncf %102 : f32 to bf16
    %104 = vector.broadcast %103 : bf16 to vector<8x16xbf16>
    %105 = arith.addf %101, %104 : vector<8x16xbf16>
    %cst_41 = arith.constant 1.000980e-02 : bf16
    %106 = vector.broadcast %cst_41 : bf16 to vector<8x16xbf16>
    %107 = arith.mulf %106, %105 : vector<8x16xbf16>
    %108 = arith.maximumf %105, %107 : vector<8x16xbf16>
    %c4_42 = arith.constant 4 : index
    %c0_43 = arith.constant 0 : index
    %109 = memref.load %arg7[%c4_42, %c0_43] : memref<9x2xf32, #tpu.memory_space<smem>>
    %110 = arith.truncf %109 : f32 to bf16
    %111 = vector.broadcast %110 : bf16 to vector<8x16xbf16>
    %112 = arith.mulf %108, %111 : vector<8x16xbf16>
    %113 = arith.addf %92, %112 : vector<8x16xbf16>
    %c4_44 = arith.constant 4 : index
    %c1_45 = arith.constant 1 : index
    %114 = memref.load %arg7[%c4_44, %c1_45] : memref<9x2xf32, #tpu.memory_space<smem>>
    %115 = arith.truncf %114 : f32 to bf16
    %116 = vector.broadcast %115 : bf16 to vector<8x16xbf16>
    %117 = arith.mulf %108, %116 : vector<8x16xbf16>
    %118 = arith.addf %97, %117 : vector<8x16xbf16>
    %c0_46 = arith.constant 0 : index
    %c5 = arith.constant 5 : index
    %119 = memref.load %arg5[%c0_46, %c5] : memref<2x8xf32, #tpu.memory_space<smem>>
    %120 = arith.truncf %119 : f32 to bf16
    %121 = vector.broadcast %120 : bf16 to vector<8x16xbf16>
    %122 = arith.mulf %0, %121 : vector<8x16xbf16>
    %c1_47 = arith.constant 1 : index
    %c5_48 = arith.constant 5 : index
    %123 = memref.load %arg5[%c1_47, %c5_48] : memref<2x8xf32, #tpu.memory_space<smem>>
    %124 = arith.truncf %123 : f32 to bf16
    %125 = vector.broadcast %124 : bf16 to vector<8x16xbf16>
    %126 = arith.addf %122, %125 : vector<8x16xbf16>
    %cst_49 = arith.constant 1.000980e-02 : bf16
    %127 = vector.broadcast %cst_49 : bf16 to vector<8x16xbf16>
    %128 = arith.mulf %127, %126 : vector<8x16xbf16>
    %129 = arith.maximumf %126, %128 : vector<8x16xbf16>
    %c5_50 = arith.constant 5 : index
    %c0_51 = arith.constant 0 : index
    %130 = memref.load %arg7[%c5_50, %c0_51] : memref<9x2xf32, #tpu.memory_space<smem>>
    %131 = arith.truncf %130 : f32 to bf16
    %132 = vector.broadcast %131 : bf16 to vector<8x16xbf16>
    %133 = arith.mulf %129, %132 : vector<8x16xbf16>
    %134 = arith.addf %113, %133 : vector<8x16xbf16>
    %c5_52 = arith.constant 5 : index
    %c1_53 = arith.constant 1 : index
    %135 = memref.load %arg7[%c5_52, %c1_53] : memref<9x2xf32, #tpu.memory_space<smem>>
    %136 = arith.truncf %135 : f32 to bf16
    %137 = vector.broadcast %136 : bf16 to vector<8x16xbf16>
    %138 = arith.mulf %129, %137 : vector<8x16xbf16>
    %139 = arith.addf %118, %138 : vector<8x16xbf16>
    %c0_54 = arith.constant 0 : index
    %c6 = arith.constant 6 : index
    %140 = memref.load %arg5[%c0_54, %c6] : memref<2x8xf32, #tpu.memory_space<smem>>
    %141 = arith.truncf %140 : f32 to bf16
    %142 = vector.broadcast %141 : bf16 to vector<8x16xbf16>
    %143 = arith.mulf %0, %142 : vector<8x16xbf16>
    %c1_55 = arith.constant 1 : index
    %c6_56 = arith.constant 6 : index
    %144 = memref.load %arg5[%c1_55, %c6_56] : memref<2x8xf32, #tpu.memory_space<smem>>
    %145 = arith.truncf %144 : f32 to bf16
    %146 = vector.broadcast %145 : bf16 to vector<8x16xbf16>
    %147 = arith.addf %143, %146 : vector<8x16xbf16>
    %cst_57 = arith.constant 1.000980e-02 : bf16
    %148 = vector.broadcast %cst_57 : bf16 to vector<8x16xbf16>
    %149 = arith.mulf %148, %147 : vector<8x16xbf16>
    %150 = arith.maximumf %147, %149 : vector<8x16xbf16>
    %c6_58 = arith.constant 6 : index
    %c0_59 = arith.constant 0 : index
    %151 = memref.load %arg7[%c6_58, %c0_59] : memref<9x2xf32, #tpu.memory_space<smem>>
    %152 = arith.truncf %151 : f32 to bf16
    %153 = vector.broadcast %152 : bf16 to vector<8x16xbf16>
    %154 = arith.mulf %150, %153 : vector<8x16xbf16>
    %155 = arith.addf %134, %154 : vector<8x16xbf16>
    %c6_60 = arith.constant 6 : index
    %c1_61 = arith.constant 1 : index
    %156 = memref.load %arg7[%c6_60, %c1_61] : memref<9x2xf32, #tpu.memory_space<smem>>
    %157 = arith.truncf %156 : f32 to bf16
    %158 = vector.broadcast %157 : bf16 to vector<8x16xbf16>
    %159 = arith.mulf %150, %158 : vector<8x16xbf16>
    %160 = arith.addf %139, %159 : vector<8x16xbf16>
    %c0_62 = arith.constant 0 : index
    %c7 = arith.constant 7 : index
    %161 = memref.load %arg5[%c0_62, %c7] : memref<2x8xf32, #tpu.memory_space<smem>>
    %162 = arith.truncf %161 : f32 to bf16
    %163 = vector.broadcast %162 : bf16 to vector<8x16xbf16>
    %164 = arith.mulf %0, %163 : vector<8x16xbf16>
    %c1_63 = arith.constant 1 : index
    %c7_64 = arith.constant 7 : index
    %165 = memref.load %arg5[%c1_63, %c7_64] : memref<2x8xf32, #tpu.memory_space<smem>>
    %166 = arith.truncf %165 : f32 to bf16
    %167 = vector.broadcast %166 : bf16 to vector<8x16xbf16>
    %168 = arith.addf %164, %167 : vector<8x16xbf16>
    %cst_65 = arith.constant 1.000980e-02 : bf16
    %169 = vector.broadcast %cst_65 : bf16 to vector<8x16xbf16>
    %170 = arith.mulf %169, %168 : vector<8x16xbf16>
    %171 = arith.maximumf %168, %170 : vector<8x16xbf16>
    %c7_66 = arith.constant 7 : index
    %c0_67 = arith.constant 0 : index
    %172 = memref.load %arg7[%c7_66, %c0_67] : memref<9x2xf32, #tpu.memory_space<smem>>
    %173 = arith.truncf %172 : f32 to bf16
    %174 = vector.broadcast %173 : bf16 to vector<8x16xbf16>
    %175 = arith.mulf %171, %174 : vector<8x16xbf16>
    %176 = arith.addf %155, %175 : vector<8x16xbf16>
    %c7_68 = arith.constant 7 : index
    %c1_69 = arith.constant 1 : index
    %177 = memref.load %arg7[%c7_68, %c1_69] : memref<9x2xf32, #tpu.memory_space<smem>>
    %178 = arith.truncf %177 : f32 to bf16
    %179 = vector.broadcast %178 : bf16 to vector<8x16xbf16>
    %180 = arith.mulf %171, %179 : vector<8x16xbf16>
    %181 = arith.addf %160, %180 : vector<8x16xbf16>
    %c8 = arith.constant 8 : index
    %c0_70 = arith.constant 0 : index
    %182 = memref.load %arg7[%c8, %c0_70] : memref<9x2xf32, #tpu.memory_space<smem>>
    %183 = arith.truncf %182 : f32 to bf16
    %184 = vector.broadcast %183 : bf16 to vector<8x16xbf16>
    %185 = arith.addf %176, %184 : vector<8x16xbf16>
    %c8_71 = arith.constant 8 : index
    %c1_72 = arith.constant 1 : index
    %186 = memref.load %arg7[%c8_71, %c1_72] : memref<9x2xf32, #tpu.memory_space<smem>>
    %187 = arith.truncf %186 : f32 to bf16
    %188 = vector.broadcast %187 : bf16 to vector<8x16xbf16>
    %189 = arith.addf %181, %188 : vector<8x16xbf16>
    %190 = arith.subf %185, %189 : vector<8x16xbf16>
    %191 = arith.extf %190 : vector<8x16xbf16> to vector<8x16xf32>
    %192 = math.exp %191 : vector<8x16xf32>
    %cst_73 = arith.constant 1.000000e+00 : f32
    %193 = vector.broadcast %cst_73 : f32 to vector<8x16xf32>
    %194 = arith.addf %193, %192 : vector<8x16xf32>
    %195 = tpu.reciprocal %194 {approx = true} : vector<8x16xf32> -> vector<8x16xf32>
    %196 = arith.truncf %195 : vector<8x16xf32> to vector<8x16xbf16>
    %cst_74 = arith.constant 1.000000e+00 : bf16
    %197 = vector.broadcast %cst_74 : bf16 to vector<8x16xbf16>
    %198 = arith.subf %197, %196 : vector<8x16xbf16>
    %cst_75 = arith.constant 0.000000e+00 : f32
    %199 = arith.truncf %cst_75 : f32 to bf16
    %200 = vector.broadcast %199 : bf16 to vector<8x16xbf16>
    %201 = arith.select %15, %198, %200 : vector<8x16xi1>, vector<8x16xbf16>
    %cst_76 = arith.constant 0.000000e+00 : f32
    %202 = arith.truncf %cst_76 : f32 to bf16
    %203 = vector.broadcast %202 : bf16 to vector<8x16xbf16>
    %204 = arith.select %15, %196, %203 : vector<8x16xi1>, vector<8x16xbf16>
    %c0_77 = arith.constant 0 : index
    %c0_78 = arith.constant 0 : index
    %205 = vector.load %arg4[%c0_77, %c0_78] : memref<16x17xbf16, #tpu.memory_space<vmem>>, vector<16x17xbf16>
    %cst_79 = arith.constant dense<0.000000e+00> : vector<8x17xf32>
    %206 = tpu.matmul %201, %205, %cst_79 {dimension_numbers = #tpu.dot_dimension_numbers<[1], [0], [0], [1], [0, 0, 1, 1], [], []>} : vector<8x16xbf16>, vector<16x17xbf16>, vector<8x17xf32> -> vector<8x17xf32>
    %cst_80 = arith.constant dense<0.000000e+00> : vector<8x17xf32>
    %207 = tpu.matmul %204, %205, %cst_80 {dimension_numbers = #tpu.dot_dimension_numbers<[1], [0], [0], [1], [0, 0, 1, 1], [], []>} : vector<8x16xbf16>, vector<16x17xbf16>, vector<8x17xf32> -> vector<8x17xf32>
    %c0_81 = arith.constant 0 : index
    %c0_82 = arith.constant 0 : index
    %208 = memref.load %arg6[%c0_81, %c0_82] : memref<2x16xf32, #tpu.memory_space<smem>>
    %209 = arith.truncf %208 : f32 to bf16
    %210 = vector.broadcast %209 : bf16 to vector<8x16xbf16>
    %211 = arith.mulf %0, %210 : vector<8x16xbf16>
    %c1_83 = arith.constant 1 : index
    %c0_84 = arith.constant 0 : index
    %212 = memref.load %arg6[%c1_83, %c0_84] : memref<2x16xf32, #tpu.memory_space<smem>>
    %213 = arith.truncf %212 : f32 to bf16
    %214 = vector.broadcast %213 : bf16 to vector<8x16xbf16>
    %215 = arith.addf %211, %214 : vector<8x16xbf16>
    %cst_85 = arith.constant 1.000980e-02 : bf16
    %216 = vector.broadcast %cst_85 : bf16 to vector<8x16xbf16>
    %217 = arith.mulf %216, %215 : vector<8x16xbf16>
    %218 = arith.maximumf %215, %217 : vector<8x16xbf16>
    %219 = arith.mulf %201, %218 : vector<8x16xbf16>
    %220 = arith.extf %219 : vector<8x16xbf16> to vector<8x16xf32>
    %cst_86 = arith.constant dense<0.000000e+00> : vector<8xf32>
    %221 = vector.multi_reduction <add>, %220, %cst_86 [1] : vector<8x16xf32> to vector<8xf32>
    %222 = vector.shape_cast %221 : vector<8xf32> to vector<8x1xf32>
    %223 = arith.truncf %222 : vector<8x1xf32> to vector<8x1xbf16>
    %224 = arith.mulf %204, %218 : vector<8x16xbf16>
    %225 = arith.extf %224 : vector<8x16xbf16> to vector<8x16xf32>
    %cst_87 = arith.constant dense<0.000000e+00> : vector<8xf32>
    %226 = vector.multi_reduction <add>, %225, %cst_87 [1] : vector<8x16xf32> to vector<8xf32>
    %227 = vector.shape_cast %226 : vector<8xf32> to vector<8x1xf32>
    %228 = arith.truncf %227 : vector<8x1xf32> to vector<8x1xbf16>
    %c0_88 = arith.constant 0 : index
    %c1_89 = arith.constant 1 : index
    %229 = memref.load %arg6[%c0_88, %c1_89] : memref<2x16xf32, #tpu.memory_space<smem>>
    %230 = arith.truncf %229 : f32 to bf16
    %231 = vector.broadcast %230 : bf16 to vector<8x16xbf16>
    %232 = arith.mulf %0, %231 : vector<8x16xbf16>
    %c1_90 = arith.constant 1 : index
    %c1_91 = arith.constant 1 : index
    %233 = memref.load %arg6[%c1_90, %c1_91] : memref<2x16xf32, #tpu.memory_space<smem>>
    %234 = arith.truncf %233 : f32 to bf16
    %235 = vector.broadcast %234 : bf16 to vector<8x16xbf16>
    %236 = arith.addf %232, %235 : vector<8x16xbf16>
    %cst_92 = arith.constant 1.000980e-02 : bf16
    %237 = vector.broadcast %cst_92 : bf16 to vector<8x16xbf16>
    %238 = arith.mulf %237, %236 : vector<8x16xbf16>
    %239 = arith.maximumf %236, %238 : vector<8x16xbf16>
    %240 = arith.mulf %201, %239 : vector<8x16xbf16>
    %241 = arith.extf %240 : vector<8x16xbf16> to vector<8x16xf32>
    %cst_93 = arith.constant dense<0.000000e+00> : vector<8xf32>
    %242 = vector.multi_reduction <add>, %241, %cst_93 [1] : vector<8x16xf32> to vector<8xf32>
    %243 = vector.shape_cast %242 : vector<8xf32> to vector<8x1xf32>
    %244 = arith.truncf %243 : vector<8x1xf32> to vector<8x1xbf16>
    %245 = arith.mulf %204, %239 : vector<8x16xbf16>
    %246 = arith.extf %245 : vector<8x16xbf16> to vector<8x16xf32>
    %cst_94 = arith.constant dense<0.000000e+00> : vector<8xf32>
    %247 = vector.multi_reduction <add>, %246, %cst_94 [1] : vector<8x16xf32> to vector<8xf32>
    %248 = vector.shape_cast %247 : vector<8xf32> to vector<8x1xf32>
    %249 = arith.truncf %248 : vector<8x1xf32> to vector<8x1xbf16>
    %c0_95 = arith.constant 0 : index
    %c2_96 = arith.constant 2 : index
    %250 = memref.load %arg6[%c0_95, %c2_96] : memref<2x16xf32, #tpu.memory_space<smem>>
    %251 = arith.truncf %250 : f32 to bf16
    %252 = vector.broadcast %251 : bf16 to vector<8x16xbf16>
    %253 = arith.mulf %0, %252 : vector<8x16xbf16>
    %c1_97 = arith.constant 1 : index
    %c2_98 = arith.constant 2 : index
    %254 = memref.load %arg6[%c1_97, %c2_98] : memref<2x16xf32, #tpu.memory_space<smem>>
    %255 = arith.truncf %254 : f32 to bf16
    %256 = vector.broadcast %255 : bf16 to vector<8x16xbf16>
    %257 = arith.addf %253, %256 : vector<8x16xbf16>
    %cst_99 = arith.constant 1.000980e-02 : bf16
    %258 = vector.broadcast %cst_99 : bf16 to vector<8x16xbf16>
    %259 = arith.mulf %258, %257 : vector<8x16xbf16>
    %260 = arith.maximumf %257, %259 : vector<8x16xbf16>
    %261 = arith.mulf %201, %260 : vector<8x16xbf16>
    %262 = arith.extf %261 : vector<8x16xbf16> to vector<8x16xf32>
    %cst_100 = arith.constant dense<0.000000e+00> : vector<8xf32>
    %263 = vector.multi_reduction <add>, %262, %cst_100 [1] : vector<8x16xf32> to vector<8xf32>
    %264 = vector.shape_cast %263 : vector<8xf32> to vector<8x1xf32>
    %265 = arith.truncf %264 : vector<8x1xf32> to vector<8x1xbf16>
    %266 = arith.mulf %204, %260 : vector<8x16xbf16>
    %267 = arith.extf %266 : vector<8x16xbf16> to vector<8x16xf32>
    %cst_101 = arith.constant dense<0.000000e+00> : vector<8xf32>
    %268 = vector.multi_reduction <add>, %267, %cst_101 [1] : vector<8x16xf32> to vector<8xf32>
    %269 = vector.shape_cast %268 : vector<8xf32> to vector<8x1xf32>
    %270 = arith.truncf %269 : vector<8x1xf32> to vector<8x1xbf16>
    %c0_102 = arith.constant 0 : index
    %c3_103 = arith.constant 3 : index
    %271 = memref.load %arg6[%c0_102, %c3_103] : memref<2x16xf32, #tpu.memory_space<smem>>
    %272 = arith.truncf %271 : f32 to bf16
    %273 = vector.broadcast %272 : bf16 to vector<8x16xbf16>
    %274 = arith.mulf %0, %273 : vector<8x16xbf16>
    %c1_104 = arith.constant 1 : index
    %c3_105 = arith.constant 3 : index
    %275 = memref.load %arg6[%c1_104, %c3_105] : memref<2x16xf32, #tpu.memory_space<smem>>
    %276 = arith.truncf %275 : f32 to bf16
    %277 = vector.broadcast %276 : bf16 to vector<8x16xbf16>
    %278 = arith.addf %274, %277 : vector<8x16xbf16>
    %cst_106 = arith.constant 1.000980e-02 : bf16
    %279 = vector.broadcast %cst_106 : bf16 to vector<8x16xbf16>
    %280 = arith.mulf %279, %278 : vector<8x16xbf16>
    %281 = arith.maximumf %278, %280 : vector<8x16xbf16>
    %282 = arith.mulf %201, %281 : vector<8x16xbf16>
    %283 = arith.extf %282 : vector<8x16xbf16> to vector<8x16xf32>
    %cst_107 = arith.constant dense<0.000000e+00> : vector<8xf32>
    %284 = vector.multi_reduction <add>, %283, %cst_107 [1] : vector<8x16xf32> to vector<8xf32>
    %285 = vector.shape_cast %284 : vector<8xf32> to vector<8x1xf32>
    %286 = arith.truncf %285 : vector<8x1xf32> to vector<8x1xbf16>
    %287 = arith.mulf %204, %281 : vector<8x16xbf16>
    %288 = arith.extf %287 : vector<8x16xbf16> to vector<8x16xf32>
    %cst_108 = arith.constant dense<0.000000e+00> : vector<8xf32>
    %289 = vector.multi_reduction <add>, %288, %cst_108 [1] : vector<8x16xf32> to vector<8xf32>
    %290 = vector.shape_cast %289 : vector<8xf32> to vector<8x1xf32>
    %291 = arith.truncf %290 : vector<8x1xf32> to vector<8x1xbf16>
    %c0_109 = arith.constant 0 : index
    %c4_110 = arith.constant 4 : index
    %292 = memref.load %arg6[%c0_109, %c4_110] : memref<2x16xf32, #tpu.memory_space<smem>>
    %293 = arith.truncf %292 : f32 to bf16
    %294 = vector.broadcast %293 : bf16 to vector<8x16xbf16>
    %295 = arith.mulf %0, %294 : vector<8x16xbf16>
    %c1_111 = arith.constant 1 : index
    %c4_112 = arith.constant 4 : index
    %296 = memref.load %arg6[%c1_111, %c4_112] : memref<2x16xf32, #tpu.memory_space<smem>>
    %297 = arith.truncf %296 : f32 to bf16
    %298 = vector.broadcast %297 : bf16 to vector<8x16xbf16>
    %299 = arith.addf %295, %298 : vector<8x16xbf16>
    %cst_113 = arith.constant 1.000980e-02 : bf16
    %300 = vector.broadcast %cst_113 : bf16 to vector<8x16xbf16>
    %301 = arith.mulf %300, %299 : vector<8x16xbf16>
    %302 = arith.maximumf %299, %301 : vector<8x16xbf16>
    %303 = arith.mulf %201, %302 : vector<8x16xbf16>
    %304 = arith.extf %303 : vector<8x16xbf16> to vector<8x16xf32>
    %cst_114 = arith.constant dense<0.000000e+00> : vector<8xf32>
    %305 = vector.multi_reduction <add>, %304, %cst_114 [1] : vector<8x16xf32> to vector<8xf32>
    %306 = vector.shape_cast %305 : vector<8xf32> to vector<8x1xf32>
    %307 = arith.truncf %306 : vector<8x1xf32> to vector<8x1xbf16>
    %308 = arith.mulf %204, %302 : vector<8x16xbf16>
    %309 = arith.extf %308 : vector<8x16xbf16> to vector<8x16xf32>
    %cst_115 = arith.constant dense<0.000000e+00> : vector<8xf32>
    %310 = vector.multi_reduction <add>, %309, %cst_115 [1] : vector<8x16xf32> to vector<8xf32>
    %311 = vector.shape_cast %310 : vector<8xf32> to vector<8x1xf32>
    %312 = arith.truncf %311 : vector<8x1xf32> to vector<8x1xbf16>
    %c0_116 = arith.constant 0 : index
    %c5_117 = arith.constant 5 : index
    %313 = memref.load %arg6[%c0_116, %c5_117] : memref<2x16xf32, #tpu.memory_space<smem>>
    %314 = arith.truncf %313 : f32 to bf16
    %315 = vector.broadcast %314 : bf16 to vector<8x16xbf16>
    %316 = arith.mulf %0, %315 : vector<8x16xbf16>
    %c1_118 = arith.constant 1 : index
    %c5_119 = arith.constant 5 : index
    %317 = memref.load %arg6[%c1_118, %c5_119] : memref<2x16xf32, #tpu.memory_space<smem>>
    %318 = arith.truncf %317 : f32 to bf16
    %319 = vector.broadcast %318 : bf16 to vector<8x16xbf16>
    %320 = arith.addf %316, %319 : vector<8x16xbf16>
    %cst_120 = arith.constant 1.000980e-02 : bf16
    %321 = vector.broadcast %cst_120 : bf16 to vector<8x16xbf16>
    %322 = arith.mulf %321, %320 : vector<8x16xbf16>
    %323 = arith.maximumf %320, %322 : vector<8x16xbf16>
    %324 = arith.mulf %201, %323 : vector<8x16xbf16>
    %325 = arith.extf %324 : vector<8x16xbf16> to vector<8x16xf32>
    %cst_121 = arith.constant dense<0.000000e+00> : vector<8xf32>
    %326 = vector.multi_reduction <add>, %325, %cst_121 [1] : vector<8x16xf32> to vector<8xf32>
    %327 = vector.shape_cast %326 : vector<8xf32> to vector<8x1xf32>
    %328 = arith.truncf %327 : vector<8x1xf32> to vector<8x1xbf16>
    %329 = arith.mulf %204, %323 : vector<8x16xbf16>
    %330 = arith.extf %329 : vector<8x16xbf16> to vector<8x16xf32>
    %cst_122 = arith.constant dense<0.000000e+00> : vector<8xf32>
    %331 = vector.multi_reduction <add>, %330, %cst_122 [1] : vector<8x16xf32> to vector<8xf32>
    %332 = vector.shape_cast %331 : vector<8xf32> to vector<8x1xf32>
    %333 = arith.truncf %332 : vector<8x1xf32> to vector<8x1xbf16>
    %c0_123 = arith.constant 0 : index
    %c6_124 = arith.constant 6 : index
    %334 = memref.load %arg6[%c0_123, %c6_124] : memref<2x16xf32, #tpu.memory_space<smem>>
    %335 = arith.truncf %334 : f32 to bf16
    %336 = vector.broadcast %335 : bf16 to vector<8x16xbf16>
    %337 = arith.mulf %0, %336 : vector<8x16xbf16>
    %c1_125 = arith.constant 1 : index
    %c6_126 = arith.constant 6 : index
    %338 = memref.load %arg6[%c1_125, %c6_126] : memref<2x16xf32, #tpu.memory_space<smem>>
    %339 = arith.truncf %338 : f32 to bf16
    %340 = vector.broadcast %339 : bf16 to vector<8x16xbf16>
    %341 = arith.addf %337, %340 : vector<8x16xbf16>
    %cst_127 = arith.constant 1.000980e-02 : bf16
    %342 = vector.broadcast %cst_127 : bf16 to vector<8x16xbf16>
    %343 = arith.mulf %342, %341 : vector<8x16xbf16>
    %344 = arith.maximumf %341, %343 : vector<8x16xbf16>
    %345 = arith.mulf %201, %344 : vector<8x16xbf16>
    %346 = arith.extf %345 : vector<8x16xbf16> to vector<8x16xf32>
    %cst_128 = arith.constant dense<0.000000e+00> : vector<8xf32>
    %347 = vector.multi_reduction <add>, %346, %cst_128 [1] : vector<8x16xf32> to vector<8xf32>
    %348 = vector.shape_cast %347 : vector<8xf32> to vector<8x1xf32>
    %349 = arith.truncf %348 : vector<8x1xf32> to vector<8x1xbf16>
    %350 = arith.mulf %204, %344 : vector<8x16xbf16>
    %351 = arith.extf %350 : vector<8x16xbf16> to vector<8x16xf32>
    %cst_129 = arith.constant dense<0.000000e+00> : vector<8xf32>
    %352 = vector.multi_reduction <add>, %351, %cst_129 [1] : vector<8x16xf32> to vector<8xf32>
    %353 = vector.shape_cast %352 : vector<8xf32> to vector<8x1xf32>
    %354 = arith.truncf %353 : vector<8x1xf32> to vector<8x1xbf16>
    %c0_130 = arith.constant 0 : index
    %c7_131 = arith.constant 7 : index
    %355 = memref.load %arg6[%c0_130, %c7_131] : memref<2x16xf32, #tpu.memory_space<smem>>
    %356 = arith.truncf %355 : f32 to bf16
    %357 = vector.broadcast %356 : bf16 to vector<8x16xbf16>
    %358 = arith.mulf %0, %357 : vector<8x16xbf16>
    %c1_132 = arith.constant 1 : index
    %c7_133 = arith.constant 7 : index
    %359 = memref.load %arg6[%c1_132, %c7_133] : memref<2x16xf32, #tpu.memory_space<smem>>
    %360 = arith.truncf %359 : f32 to bf16
    %361 = vector.broadcast %360 : bf16 to vector<8x16xbf16>
    %362 = arith.addf %358, %361 : vector<8x16xbf16>
    %cst_134 = arith.constant 1.000980e-02 : bf16
    %363 = vector.broadcast %cst_134 : bf16 to vector<8x16xbf16>
    %364 = arith.mulf %363, %362 : vector<8x16xbf16>
    %365 = arith.maximumf %362, %364 : vector<8x16xbf16>
    %366 = arith.mulf %201, %365 : vector<8x16xbf16>
    %367 = arith.extf %366 : vector<8x16xbf16> to vector<8x16xf32>
    %cst_135 = arith.constant dense<0.000000e+00> : vector<8xf32>
    %368 = vector.multi_reduction <add>, %367, %cst_135 [1] : vector<8x16xf32> to vector<8xf32>
    %369 = vector.shape_cast %368 : vector<8xf32> to vector<8x1xf32>
    %370 = arith.truncf %369 : vector<8x1xf32> to vector<8x1xbf16>
    %371 = arith.mulf %204, %365 : vector<8x16xbf16>
    %372 = arith.extf %371 : vector<8x16xbf16> to vector<8x16xf32>
    %cst_136 = arith.constant dense<0.000000e+00> : vector<8xf32>
    %373 = vector.multi_reduction <add>, %372, %cst_136 [1] : vector<8x16xf32> to vector<8xf32>
    %374 = vector.shape_cast %373 : vector<8xf32> to vector<8x1xf32>
    %375 = arith.truncf %374 : vector<8x1xf32> to vector<8x1xbf16>
    %c0_137 = arith.constant 0 : index
    %c8_138 = arith.constant 8 : index
    %376 = memref.load %arg6[%c0_137, %c8_138] : memref<2x16xf32, #tpu.memory_space<smem>>
    %377 = arith.truncf %376 : f32 to bf16
    %378 = vector.broadcast %377 : bf16 to vector<8x16xbf16>
    %379 = arith.mulf %0, %378 : vector<8x16xbf16>
    %c1_139 = arith.constant 1 : index
    %c8_140 = arith.constant 8 : index
    %380 = memref.load %arg6[%c1_139, %c8_140] : memref<2x16xf32, #tpu.memory_space<smem>>
    %381 = arith.truncf %380 : f32 to bf16
    %382 = vector.broadcast %381 : bf16 to vector<8x16xbf16>
    %383 = arith.addf %379, %382 : vector<8x16xbf16>
    %cst_141 = arith.constant 1.000980e-02 : bf16
    %384 = vector.broadcast %cst_141 : bf16 to vector<8x16xbf16>
    %385 = arith.mulf %384, %383 : vector<8x16xbf16>
    %386 = arith.maximumf %383, %385 : vector<8x16xbf16>
    %387 = arith.mulf %201, %386 : vector<8x16xbf16>
    %388 = arith.extf %387 : vector<8x16xbf16> to vector<8x16xf32>
    %cst_142 = arith.constant dense<0.000000e+00> : vector<8xf32>
    %389 = vector.multi_reduction <add>, %388, %cst_142 [1] : vector<8x16xf32> to vector<8xf32>
    %390 = vector.shape_cast %389 : vector<8xf32> to vector<8x1xf32>
    %391 = arith.truncf %390 : vector<8x1xf32> to vector<8x1xbf16>
    %392 = arith.mulf %204, %386 : vector<8x16xbf16>
    %393 = arith.extf %392 : vector<8x16xbf16> to vector<8x16xf32>
    %cst_143 = arith.constant dense<0.000000e+00> : vector<8xf32>
    %394 = vector.multi_reduction <add>, %393, %cst_143 [1] : vector<8x16xf32> to vector<8xf32>
    %395 = vector.shape_cast %394 : vector<8xf32> to vector<8x1xf32>
    %396 = arith.truncf %395 : vector<8x1xf32> to vector<8x1xbf16>
    %c0_144 = arith.constant 0 : index
    %c9 = arith.constant 9 : index
    %397 = memref.load %arg6[%c0_144, %c9] : memref<2x16xf32, #tpu.memory_space<smem>>
    %398 = arith.truncf %397 : f32 to bf16
    %399 = vector.broadcast %398 : bf16 to vector<8x16xbf16>
    %400 = arith.mulf %0, %399 : vector<8x16xbf16>
    %c1_145 = arith.constant 1 : index
    %c9_146 = arith.constant 9 : index
    %401 = memref.load %arg6[%c1_145, %c9_146] : memref<2x16xf32, #tpu.memory_space<smem>>
    %402 = arith.truncf %401 : f32 to bf16
    %403 = vector.broadcast %402 : bf16 to vector<8x16xbf16>
    %404 = arith.addf %400, %403 : vector<8x16xbf16>
    %cst_147 = arith.constant 1.000980e-02 : bf16
    %405 = vector.broadcast %cst_147 : bf16 to vector<8x16xbf16>
    %406 = arith.mulf %405, %404 : vector<8x16xbf16>
    %407 = arith.maximumf %404, %406 : vector<8x16xbf16>
    %408 = arith.mulf %201, %407 : vector<8x16xbf16>
    %409 = arith.extf %408 : vector<8x16xbf16> to vector<8x16xf32>
    %cst_148 = arith.constant dense<0.000000e+00> : vector<8xf32>
    %410 = vector.multi_reduction <add>, %409, %cst_148 [1] : vector<8x16xf32> to vector<8xf32>
    %411 = vector.shape_cast %410 : vector<8xf32> to vector<8x1xf32>
    %412 = arith.truncf %411 : vector<8x1xf32> to vector<8x1xbf16>
    %413 = arith.mulf %204, %407 : vector<8x16xbf16>
    %414 = arith.extf %413 : vector<8x16xbf16> to vector<8x16xf32>
    %cst_149 = arith.constant dense<0.000000e+00> : vector<8xf32>
    %415 = vector.multi_reduction <add>, %414, %cst_149 [1] : vector<8x16xf32> to vector<8xf32>
    %416 = vector.shape_cast %415 : vector<8xf32> to vector<8x1xf32>
    %417 = arith.truncf %416 : vector<8x1xf32> to vector<8x1xbf16>
    %c0_150 = arith.constant 0 : index
    %c10 = arith.constant 10 : index
    %418 = memref.load %arg6[%c0_150, %c10] : memref<2x16xf32, #tpu.memory_space<smem>>
    %419 = arith.truncf %418 : f32 to bf16
    %420 = vector.broadcast %419 : bf16 to vector<8x16xbf16>
    %421 = arith.mulf %0, %420 : vector<8x16xbf16>
    %c1_151 = arith.constant 1 : index
    %c10_152 = arith.constant 10 : index
    %422 = memref.load %arg6[%c1_151, %c10_152] : memref<2x16xf32, #tpu.memory_space<smem>>
    %423 = arith.truncf %422 : f32 to bf16
    %424 = vector.broadcast %423 : bf16 to vector<8x16xbf16>
    %425 = arith.addf %421, %424 : vector<8x16xbf16>
    %cst_153 = arith.constant 1.000980e-02 : bf16
    %426 = vector.broadcast %cst_153 : bf16 to vector<8x16xbf16>
    %427 = arith.mulf %426, %425 : vector<8x16xbf16>
    %428 = arith.maximumf %425, %427 : vector<8x16xbf16>
    %429 = arith.mulf %201, %428 : vector<8x16xbf16>
    %430 = arith.extf %429 : vector<8x16xbf16> to vector<8x16xf32>
    %cst_154 = arith.constant dense<0.000000e+00> : vector<8xf32>
    %431 = vector.multi_reduction <add>, %430, %cst_154 [1] : vector<8x16xf32> to vector<8xf32>
    %432 = vector.shape_cast %431 : vector<8xf32> to vector<8x1xf32>
    %433 = arith.truncf %432 : vector<8x1xf32> to vector<8x1xbf16>
    %434 = arith.mulf %204, %428 : vector<8x16xbf16>
    %435 = arith.extf %434 : vector<8x16xbf16> to vector<8x16xf32>
    %cst_155 = arith.constant dense<0.000000e+00> : vector<8xf32>
    %436 = vector.multi_reduction <add>, %435, %cst_155 [1] : vector<8x16xf32> to vector<8xf32>
    %437 = vector.shape_cast %436 : vector<8xf32> to vector<8x1xf32>
    %438 = arith.truncf %437 : vector<8x1xf32> to vector<8x1xbf16>
    %c0_156 = arith.constant 0 : index
    %c11 = arith.constant 11 : index
    %439 = memref.load %arg6[%c0_156, %c11] : memref<2x16xf32, #tpu.memory_space<smem>>
    %440 = arith.truncf %439 : f32 to bf16
    %441 = vector.broadcast %440 : bf16 to vector<8x16xbf16>
    %442 = arith.mulf %0, %441 : vector<8x16xbf16>
    %c1_157 = arith.constant 1 : index
    %c11_158 = arith.constant 11 : index
    %443 = memref.load %arg6[%c1_157, %c11_158] : memref<2x16xf32, #tpu.memory_space<smem>>
    %444 = arith.truncf %443 : f32 to bf16
    %445 = vector.broadcast %444 : bf16 to vector<8x16xbf16>
    %446 = arith.addf %442, %445 : vector<8x16xbf16>
    %cst_159 = arith.constant 1.000980e-02 : bf16
    %447 = vector.broadcast %cst_159 : bf16 to vector<8x16xbf16>
    %448 = arith.mulf %447, %446 : vector<8x16xbf16>
    %449 = arith.maximumf %446, %448 : vector<8x16xbf16>
    %450 = arith.mulf %201, %449 : vector<8x16xbf16>
    %451 = arith.extf %450 : vector<8x16xbf16> to vector<8x16xf32>
    %cst_160 = arith.constant dense<0.000000e+00> : vector<8xf32>
    %452 = vector.multi_reduction <add>, %451, %cst_160 [1] : vector<8x16xf32> to vector<8xf32>
    %453 = vector.shape_cast %452 : vector<8xf32> to vector<8x1xf32>
    %454 = arith.truncf %453 : vector<8x1xf32> to vector<8x1xbf16>
    %455 = arith.mulf %204, %449 : vector<8x16xbf16>
    %456 = arith.extf %455 : vector<8x16xbf16> to vector<8x16xf32>
    %cst_161 = arith.constant dense<0.000000e+00> : vector<8xf32>
    %457 = vector.multi_reduction <add>, %456, %cst_161 [1] : vector<8x16xf32> to vector<8xf32>
    %458 = vector.shape_cast %457 : vector<8xf32> to vector<8x1xf32>
    %459 = arith.truncf %458 : vector<8x1xf32> to vector<8x1xbf16>
    %c0_162 = arith.constant 0 : index
    %c12 = arith.constant 12 : index
    %460 = memref.load %arg6[%c0_162, %c12] : memref<2x16xf32, #tpu.memory_space<smem>>
    %461 = arith.truncf %460 : f32 to bf16
    %462 = vector.broadcast %461 : bf16 to vector<8x16xbf16>
    %463 = arith.mulf %0, %462 : vector<8x16xbf16>
    %c1_163 = arith.constant 1 : index
    %c12_164 = arith.constant 12 : index
    %464 = memref.load %arg6[%c1_163, %c12_164] : memref<2x16xf32, #tpu.memory_space<smem>>
    %465 = arith.truncf %464 : f32 to bf16
    %466 = vector.broadcast %465 : bf16 to vector<8x16xbf16>
    %467 = arith.addf %463, %466 : vector<8x16xbf16>
    %cst_165 = arith.constant 1.000980e-02 : bf16
    %468 = vector.broadcast %cst_165 : bf16 to vector<8x16xbf16>
    %469 = arith.mulf %468, %467 : vector<8x16xbf16>
    %470 = arith.maximumf %467, %469 : vector<8x16xbf16>
    %471 = arith.mulf %201, %470 : vector<8x16xbf16>
    %472 = arith.extf %471 : vector<8x16xbf16> to vector<8x16xf32>
    %cst_166 = arith.constant dense<0.000000e+00> : vector<8xf32>
    %473 = vector.multi_reduction <add>, %472, %cst_166 [1] : vector<8x16xf32> to vector<8xf32>
    %474 = vector.shape_cast %473 : vector<8xf32> to vector<8x1xf32>
    %475 = arith.truncf %474 : vector<8x1xf32> to vector<8x1xbf16>
    %476 = arith.mulf %204, %470 : vector<8x16xbf16>
    %477 = arith.extf %476 : vector<8x16xbf16> to vector<8x16xf32>
    %cst_167 = arith.constant dense<0.000000e+00> : vector<8xf32>
    %478 = vector.multi_reduction <add>, %477, %cst_167 [1] : vector<8x16xf32> to vector<8xf32>
    %479 = vector.shape_cast %478 : vector<8xf32> to vector<8x1xf32>
    %480 = arith.truncf %479 : vector<8x1xf32> to vector<8x1xbf16>
    %c0_168 = arith.constant 0 : index
    %c13 = arith.constant 13 : index
    %481 = memref.load %arg6[%c0_168, %c13] : memref<2x16xf32, #tpu.memory_space<smem>>
    %482 = arith.truncf %481 : f32 to bf16
    %483 = vector.broadcast %482 : bf16 to vector<8x16xbf16>
    %484 = arith.mulf %0, %483 : vector<8x16xbf16>
    %c1_169 = arith.constant 1 : index
    %c13_170 = arith.constant 13 : index
    %485 = memref.load %arg6[%c1_169, %c13_170] : memref<2x16xf32, #tpu.memory_space<smem>>
    %486 = arith.truncf %485 : f32 to bf16
    %487 = vector.broadcast %486 : bf16 to vector<8x16xbf16>
    %488 = arith.addf %484, %487 : vector<8x16xbf16>
    %cst_171 = arith.constant 1.000980e-02 : bf16
    %489 = vector.broadcast %cst_171 : bf16 to vector<8x16xbf16>
    %490 = arith.mulf %489, %488 : vector<8x16xbf16>
    %491 = arith.maximumf %488, %490 : vector<8x16xbf16>
    %492 = arith.mulf %201, %491 : vector<8x16xbf16>
    %493 = arith.extf %492 : vector<8x16xbf16> to vector<8x16xf32>
    %cst_172 = arith.constant dense<0.000000e+00> : vector<8xf32>
    %494 = vector.multi_reduction <add>, %493, %cst_172 [1] : vector<8x16xf32> to vector<8xf32>
    %495 = vector.shape_cast %494 : vector<8xf32> to vector<8x1xf32>
    %496 = arith.truncf %495 : vector<8x1xf32> to vector<8x1xbf16>
    %497 = arith.mulf %204, %491 : vector<8x16xbf16>
    %498 = arith.extf %497 : vector<8x16xbf16> to vector<8x16xf32>
    %cst_173 = arith.constant dense<0.000000e+00> : vector<8xf32>
    %499 = vector.multi_reduction <add>, %498, %cst_173 [1] : vector<8x16xf32> to vector<8xf32>
    %500 = vector.shape_cast %499 : vector<8xf32> to vector<8x1xf32>
    %501 = arith.truncf %500 : vector<8x1xf32> to vector<8x1xbf16>
    %c0_174 = arith.constant 0 : index
    %c14 = arith.constant 14 : index
    %502 = memref.load %arg6[%c0_174, %c14] : memref<2x16xf32, #tpu.memory_space<smem>>
    %503 = arith.truncf %502 : f32 to bf16
    %504 = vector.broadcast %503 : bf16 to vector<8x16xbf16>
    %505 = arith.mulf %0, %504 : vector<8x16xbf16>
    %c1_175 = arith.constant 1 : index
    %c14_176 = arith.constant 14 : index
    %506 = memref.load %arg6[%c1_175, %c14_176] : memref<2x16xf32, #tpu.memory_space<smem>>
    %507 = arith.truncf %506 : f32 to bf16
    %508 = vector.broadcast %507 : bf16 to vector<8x16xbf16>
    %509 = arith.addf %505, %508 : vector<8x16xbf16>
    %cst_177 = arith.constant 1.000980e-02 : bf16
    %510 = vector.broadcast %cst_177 : bf16 to vector<8x16xbf16>
    %511 = arith.mulf %510, %509 : vector<8x16xbf16>
    %512 = arith.maximumf %509, %511 : vector<8x16xbf16>
    %513 = arith.mulf %201, %512 : vector<8x16xbf16>
    %514 = arith.extf %513 : vector<8x16xbf16> to vector<8x16xf32>
    %cst_178 = arith.constant dense<0.000000e+00> : vector<8xf32>
    %515 = vector.multi_reduction <add>, %514, %cst_178 [1] : vector<8x16xf32> to vector<8xf32>
    %516 = vector.shape_cast %515 : vector<8xf32> to vector<8x1xf32>
    %517 = arith.truncf %516 : vector<8x1xf32> to vector<8x1xbf16>
    %518 = arith.mulf %204, %512 : vector<8x16xbf16>
    %519 = arith.extf %518 : vector<8x16xbf16> to vector<8x16xf32>
    %cst_179 = arith.constant dense<0.000000e+00> : vector<8xf32>
    %520 = vector.multi_reduction <add>, %519, %cst_179 [1] : vector<8x16xf32> to vector<8xf32>
    %521 = vector.shape_cast %520 : vector<8xf32> to vector<8x1xf32>
    %522 = arith.truncf %521 : vector<8x1xf32> to vector<8x1xbf16>
    %c0_180 = arith.constant 0 : index
    %c15 = arith.constant 15 : index
    %523 = memref.load %arg6[%c0_180, %c15] : memref<2x16xf32, #tpu.memory_space<smem>>
    %524 = arith.truncf %523 : f32 to bf16
    %525 = vector.broadcast %524 : bf16 to vector<8x16xbf16>
    %526 = arith.mulf %0, %525 : vector<8x16xbf16>
    %c1_181 = arith.constant 1 : index
    %c15_182 = arith.constant 15 : index
    %527 = memref.load %arg6[%c1_181, %c15_182] : memref<2x16xf32, #tpu.memory_space<smem>>
    %528 = arith.truncf %527 : f32 to bf16
    %529 = vector.broadcast %528 : bf16 to vector<8x16xbf16>
    %530 = arith.addf %526, %529 : vector<8x16xbf16>
    %cst_183 = arith.constant 1.000980e-02 : bf16
    %531 = vector.broadcast %cst_183 : bf16 to vector<8x16xbf16>
    %532 = arith.mulf %531, %530 : vector<8x16xbf16>
    %533 = arith.maximumf %530, %532 : vector<8x16xbf16>
    %534 = arith.mulf %201, %533 : vector<8x16xbf16>
    %535 = arith.extf %534 : vector<8x16xbf16> to vector<8x16xf32>
    %cst_184 = arith.constant dense<0.000000e+00> : vector<8xf32>
    %536 = vector.multi_reduction <add>, %535, %cst_184 [1] : vector<8x16xf32> to vector<8xf32>
    %537 = vector.shape_cast %536 : vector<8xf32> to vector<8x1xf32>
    %538 = arith.truncf %537 : vector<8x1xf32> to vector<8x1xbf16>
    %539 = arith.mulf %204, %533 : vector<8x16xbf16>
    %540 = arith.extf %539 : vector<8x16xbf16> to vector<8x16xf32>
    %cst_185 = arith.constant dense<0.000000e+00> : vector<8xf32>
    %541 = vector.multi_reduction <add>, %540, %cst_185 [1] : vector<8x16xf32> to vector<8xf32>
    %542 = vector.shape_cast %541 : vector<8xf32> to vector<8x1xf32>
    %543 = arith.truncf %542 : vector<8x1xf32> to vector<8x1xbf16>
    %544 = tpu.concatenate %223, %244, %265, %286, %307, %328, %349, %370, %391, %412, %433, %454, %475, %496, %517, %538 in 1 : vector<8x1xbf16>, vector<8x1xbf16>, vector<8x1xbf16>, vector<8x1xbf16>, vector<8x1xbf16>, vector<8x1xbf16>, vector<8x1xbf16>, vector<8x1xbf16>, vector<8x1xbf16>, vector<8x1xbf16>, vector<8x1xbf16>, vector<8x1xbf16>, vector<8x1xbf16>, vector<8x1xbf16>, vector<8x1xbf16>, vector<8x1xbf16> -> vector<8x16xbf16>
    %545 = tpu.concatenate %228, %249, %270, %291, %312, %333, %354, %375, %396, %417, %438, %459, %480, %501, %522, %543 in 1 : vector<8x1xbf16>, vector<8x1xbf16>, vector<8x1xbf16>, vector<8x1xbf16>, vector<8x1xbf16>, vector<8x1xbf16>, vector<8x1xbf16>, vector<8x1xbf16>, vector<8x1xbf16>, vector<8x1xbf16>, vector<8x1xbf16>, vector<8x1xbf16>, vector<8x1xbf16>, vector<8x1xbf16>, vector<8x1xbf16>, vector<8x1xbf16> -> vector<8x16xbf16>
    %546 = arith.addf %206, %207 : vector<8x17xf32>
    %547 = arith.addf %544, %545 : vector<8x16xbf16>
    %c0_186 = arith.constant 0 : index
    %c0_187 = arith.constant 0 : index
    %c0_188 = arith.constant 0 : index
    %548 = vector.load %arg10[%c0_186, %c0_187, %c0_188] : memref<3x3x32xf32, #tpu.memory_space<vmem>>, vector<1x3x32xf32>
    %549 = vector.shape_cast %548 : vector<1x3x32xf32> to vector<3x32xf32>
    %c0_189 = arith.constant 0 : index
    %c0_190 = arith.constant 0 : index
    %c0_191 = arith.constant 0 : index
    %550 = vector.load %arg8[%c0_189, %c0_190, %c0_191] : memref<3x17x32xf32, #tpu.memory_space<vmem>>, vector<1x17x32xf32>
    %551 = vector.shape_cast %550 : vector<1x17x32xf32> to vector<17x32xf32>
    %552 = arith.truncf %546 : vector<8x17xf32> to vector<8x17xbf16>
    %553 = arith.truncf %551 : vector<17x32xf32> to vector<17x32xbf16>
    %cst_192 = arith.constant dense<0.000000e+00> : vector<8x32xf32>
    %554 = tpu.matmul %552, %553, %cst_192 {dimension_numbers = #tpu.dot_dimension_numbers<[1], [0], [0], [1], [0, 0, 1, 1], [], []>} : vector<8x17xbf16>, vector<17x32xbf16>, vector<8x32xf32> -> vector<8x32xf32>
    %c0_193 = arith.constant 0 : index
    %c0_194 = arith.constant 0 : index
    %c0_195 = arith.constant 0 : index
    %555 = vector.load %arg9[%c0_193, %c0_194, %c0_195] : memref<3x16x32xf32, #tpu.memory_space<vmem>>, vector<1x16x32xf32>
    %556 = vector.shape_cast %555 : vector<1x16x32xf32> to vector<16x32xf32>
    %557 = arith.truncf %556 : vector<16x32xf32> to vector<16x32xbf16>
    %cst_196 = arith.constant dense<0.000000e+00> : vector<8x32xf32>
    %558 = tpu.matmul %547, %557, %cst_196 {dimension_numbers = #tpu.dot_dimension_numbers<[1], [0], [0], [1], [0, 0, 1, 1], [], []>} : vector<8x16xbf16>, vector<16x32xbf16>, vector<8x32xf32> -> vector<8x32xf32>
    %559 = arith.addf %554, %558 : vector<8x32xf32>
    %560 = vector.extract_strided_slice %549 {offsets = [0, 0], sizes = [1, 32], strides = [1, 1]} : vector<3x32xf32> to vector<1x32xf32>
    %561 = vector.broadcast %560 : vector<1x32xf32> to vector<8x32xf32>
    %562 = arith.addf %559, %561 : vector<8x32xf32>
    %cst_197 = arith.constant dense<0.000000e+00> : vector<8xf32>
    %563 = vector.multi_reduction <add>, %562, %cst_197 [1] : vector<8x32xf32> to vector<8xf32>
    %564 = vector.shape_cast %563 : vector<8xf32> to vector<8x1xf32>
    %cst_198 = arith.constant 3.200000e+01 : f32
    %565 = vector.broadcast %cst_198 : f32 to vector<8x1xf32>
    %566 = arith.divf %564, %565 : vector<8x1xf32>
    %567 = vector.broadcast %566 : vector<8x1xf32> to vector<8x32xf32>
    %568 = arith.subf %562, %567 : vector<8x32xf32>
    %569 = arith.mulf %568, %568 : vector<8x32xf32>
    %cst_199 = arith.constant dense<0.000000e+00> : vector<8xf32>
    %570 = vector.multi_reduction <add>, %569, %cst_199 [1] : vector<8x32xf32> to vector<8xf32>
    %571 = vector.shape_cast %570 : vector<8xf32> to vector<8x1xf32>
    %cst_200 = arith.constant 3.200000e+01 : f32
    %572 = vector.broadcast %cst_200 : f32 to vector<8x1xf32>
    %573 = arith.divf %571, %572 : vector<8x1xf32>
    %574 = vector.broadcast %566 : vector<8x1xf32> to vector<8x32xf32>
    %575 = arith.subf %562, %574 : vector<8x32xf32>
    %cst_201 = arith.constant 9.99999974E-6 : f32
    %576 = vector.broadcast %cst_201 : f32 to vector<8x1xf32>
    %577 = arith.addf %573, %576 : vector<8x1xf32>
    %578 = math.rsqrt %577 : vector<8x1xf32>
    %579 = vector.broadcast %578 : vector<8x1xf32> to vector<8x32xf32>
    %580 = arith.mulf %575, %579 : vector<8x32xf32>
    %581 = vector.extract_strided_slice %549 {offsets = [1, 0], sizes = [1, 32], strides = [1, 1]} : vector<3x32xf32> to vector<1x32xf32>
    %582 = vector.broadcast %581 : vector<1x32xf32> to vector<8x32xf32>
    %583 = arith.mulf %580, %582 : vector<8x32xf32>
    %584 = vector.extract_strided_slice %549 {offsets = [2, 0], sizes = [1, 32], strides = [1, 1]} : vector<3x32xf32> to vector<1x32xf32>
    %585 = vector.broadcast %584 : vector<1x32xf32> to vector<8x32xf32>
    %586 = arith.addf %583, %585 : vector<8x32xf32>
    %cst_202 = arith.constant 0.00999999977 : f32
    %587 = vector.broadcast %cst_202 : f32 to vector<8x32xf32>
    %588 = arith.mulf %587, %586 : vector<8x32xf32>
    %589 = arith.maximumf %586, %588 : vector<8x32xf32>
    %c0_203 = arith.constant 0 : index
    %c0_204 = arith.constant 0 : index
    %c0_205 = arith.constant 0 : index
    %590 = vector.load %arg11[%c0_203, %c0_204, %c0_205] : memref<3x32x16xf32, #tpu.memory_space<vmem>>, vector<1x32x16xf32>
    %591 = vector.shape_cast %590 : vector<1x32x16xf32> to vector<32x16xf32>
    %592 = arith.truncf %589 : vector<8x32xf32> to vector<8x32xbf16>
    %593 = arith.truncf %591 : vector<32x16xf32> to vector<32x16xbf16>
    %cst_206 = arith.constant dense<0.000000e+00> : vector<8x16xf32>
    %594 = tpu.matmul %592, %593, %cst_206 {dimension_numbers = #tpu.dot_dimension_numbers<[1], [0], [0], [1], [0, 0, 1, 1], [], []>} : vector<8x32xbf16>, vector<32x16xbf16>, vector<8x16xf32> -> vector<8x16xf32>
    %c0_207 = arith.constant 0 : index
    %c0_208 = arith.constant 0 : index
    %c0_209 = arith.constant 0 : index
    %595 = vector.load %arg12[%c0_207, %c0_208, %c0_209] : memref<3x1x16xf32, #tpu.memory_space<vmem>>, vector<1x1x16xf32>
    %596 = vector.shape_cast %595 : vector<1x1x16xf32> to vector<1x16xf32>
    %597 = vector.broadcast %596 : vector<1x16xf32> to vector<8x16xf32>
    %598 = arith.addf %594, %597 : vector<8x16xf32>
    %c1_210 = arith.constant 1 : index
    %c0_211 = arith.constant 0 : index
    %c0_212 = arith.constant 0 : index
    %599 = vector.load %arg10[%c1_210, %c0_211, %c0_212] : memref<3x3x32xf32, #tpu.memory_space<vmem>>, vector<1x3x32xf32>
    %600 = vector.shape_cast %599 : vector<1x3x32xf32> to vector<3x32xf32>
    %c1_213 = arith.constant 1 : index
    %c0_214 = arith.constant 0 : index
    %c0_215 = arith.constant 0 : index
    %601 = vector.load %arg8[%c1_213, %c0_214, %c0_215] : memref<3x17x32xf32, #tpu.memory_space<vmem>>, vector<1x17x32xf32>
    %602 = vector.shape_cast %601 : vector<1x17x32xf32> to vector<17x32xf32>
    %603 = arith.truncf %206 : vector<8x17xf32> to vector<8x17xbf16>
    %604 = arith.truncf %602 : vector<17x32xf32> to vector<17x32xbf16>
    %cst_216 = arith.constant dense<0.000000e+00> : vector<8x32xf32>
    %605 = tpu.matmul %603, %604, %cst_216 {dimension_numbers = #tpu.dot_dimension_numbers<[1], [0], [0], [1], [0, 0, 1, 1], [], []>} : vector<8x17xbf16>, vector<17x32xbf16>, vector<8x32xf32> -> vector<8x32xf32>
    %c1_217 = arith.constant 1 : index
    %c0_218 = arith.constant 0 : index
    %c0_219 = arith.constant 0 : index
    %606 = vector.load %arg9[%c1_217, %c0_218, %c0_219] : memref<3x16x32xf32, #tpu.memory_space<vmem>>, vector<1x16x32xf32>
    %607 = vector.shape_cast %606 : vector<1x16x32xf32> to vector<16x32xf32>
    %608 = arith.truncf %607 : vector<16x32xf32> to vector<16x32xbf16>
    %cst_220 = arith.constant dense<0.000000e+00> : vector<8x32xf32>
    %609 = tpu.matmul %544, %608, %cst_220 {dimension_numbers = #tpu.dot_dimension_numbers<[1], [0], [0], [1], [0, 0, 1, 1], [], []>} : vector<8x16xbf16>, vector<16x32xbf16>, vector<8x32xf32> -> vector<8x32xf32>
    %610 = arith.addf %605, %609 : vector<8x32xf32>
    %611 = vector.extract_strided_slice %600 {offsets = [0, 0], sizes = [1, 32], strides = [1, 1]} : vector<3x32xf32> to vector<1x32xf32>
    %612 = vector.broadcast %611 : vector<1x32xf32> to vector<8x32xf32>
    %613 = arith.addf %610, %612 : vector<8x32xf32>
    %cst_221 = arith.constant dense<0.000000e+00> : vector<8xf32>
    %614 = vector.multi_reduction <add>, %613, %cst_221 [1] : vector<8x32xf32> to vector<8xf32>
    %615 = vector.shape_cast %614 : vector<8xf32> to vector<8x1xf32>
    %cst_222 = arith.constant 3.200000e+01 : f32
    %616 = vector.broadcast %cst_222 : f32 to vector<8x1xf32>
    %617 = arith.divf %615, %616 : vector<8x1xf32>
    %618 = vector.broadcast %617 : vector<8x1xf32> to vector<8x32xf32>
    %619 = arith.subf %613, %618 : vector<8x32xf32>
    %620 = arith.mulf %619, %619 : vector<8x32xf32>
    %cst_223 = arith.constant dense<0.000000e+00> : vector<8xf32>
    %621 = vector.multi_reduction <add>, %620, %cst_223 [1] : vector<8x32xf32> to vector<8xf32>
    %622 = vector.shape_cast %621 : vector<8xf32> to vector<8x1xf32>
    %cst_224 = arith.constant 3.200000e+01 : f32
    %623 = vector.broadcast %cst_224 : f32 to vector<8x1xf32>
    %624 = arith.divf %622, %623 : vector<8x1xf32>
    %625 = vector.broadcast %617 : vector<8x1xf32> to vector<8x32xf32>
    %626 = arith.subf %613, %625 : vector<8x32xf32>
    %cst_225 = arith.constant 9.99999974E-6 : f32
    %627 = vector.broadcast %cst_225 : f32 to vector<8x1xf32>
    %628 = arith.addf %624, %627 : vector<8x1xf32>
    %629 = math.rsqrt %628 : vector<8x1xf32>
    %630 = vector.broadcast %629 : vector<8x1xf32> to vector<8x32xf32>
    %631 = arith.mulf %626, %630 : vector<8x32xf32>
    %632 = vector.extract_strided_slice %600 {offsets = [1, 0], sizes = [1, 32], strides = [1, 1]} : vector<3x32xf32> to vector<1x32xf32>
    %633 = vector.broadcast %632 : vector<1x32xf32> to vector<8x32xf32>
    %634 = arith.mulf %631, %633 : vector<8x32xf32>
    %635 = vector.extract_strided_slice %600 {offsets = [2, 0], sizes = [1, 32], strides = [1, 1]} : vector<3x32xf32> to vector<1x32xf32>
    %636 = vector.broadcast %635 : vector<1x32xf32> to vector<8x32xf32>
    %637 = arith.addf %634, %636 : vector<8x32xf32>
    %cst_226 = arith.constant 0.000000e+00 : f32
    %638 = vector.broadcast %cst_226 : f32 to vector<8x32xf32>
    %639 = arith.maximumf %637, %638 : vector<8x32xf32>
    %c1_227 = arith.constant 1 : index
    %c0_228 = arith.constant 0 : index
    %c0_229 = arith.constant 0 : index
    %640 = vector.load %arg11[%c1_227, %c0_228, %c0_229] : memref<3x32x16xf32, #tpu.memory_space<vmem>>, vector<1x32x16xf32>
    %641 = vector.shape_cast %640 : vector<1x32x16xf32> to vector<32x16xf32>
    %642 = arith.truncf %639 : vector<8x32xf32> to vector<8x32xbf16>
    %643 = arith.truncf %641 : vector<32x16xf32> to vector<32x16xbf16>
    %cst_230 = arith.constant dense<0.000000e+00> : vector<8x16xf32>
    %644 = tpu.matmul %642, %643, %cst_230 {dimension_numbers = #tpu.dot_dimension_numbers<[1], [0], [0], [1], [0, 0, 1, 1], [], []>} : vector<8x32xbf16>, vector<32x16xbf16>, vector<8x16xf32> -> vector<8x16xf32>
    %c1_231 = arith.constant 1 : index
    %c0_232 = arith.constant 0 : index
    %c0_233 = arith.constant 0 : index
    %645 = vector.load %arg12[%c1_231, %c0_232, %c0_233] : memref<3x1x16xf32, #tpu.memory_space<vmem>>, vector<1x1x16xf32>
    %646 = vector.shape_cast %645 : vector<1x1x16xf32> to vector<1x16xf32>
    %647 = vector.broadcast %646 : vector<1x16xf32> to vector<8x16xf32>
    %648 = arith.addf %644, %647 : vector<8x16xf32>
    %649 = arith.addf %598, %648 : vector<8x16xf32>
    %c2_234 = arith.constant 2 : index
    %c0_235 = arith.constant 0 : index
    %c0_236 = arith.constant 0 : index
    %650 = vector.load %arg10[%c2_234, %c0_235, %c0_236] : memref<3x3x32xf32, #tpu.memory_space<vmem>>, vector<1x3x32xf32>
    %651 = vector.shape_cast %650 : vector<1x3x32xf32> to vector<3x32xf32>
    %c2_237 = arith.constant 2 : index
    %c0_238 = arith.constant 0 : index
    %c0_239 = arith.constant 0 : index
    %652 = vector.load %arg8[%c2_237, %c0_238, %c0_239] : memref<3x17x32xf32, #tpu.memory_space<vmem>>, vector<1x17x32xf32>
    %653 = vector.shape_cast %652 : vector<1x17x32xf32> to vector<17x32xf32>
    %654 = arith.truncf %207 : vector<8x17xf32> to vector<8x17xbf16>
    %655 = arith.truncf %653 : vector<17x32xf32> to vector<17x32xbf16>
    %cst_240 = arith.constant dense<0.000000e+00> : vector<8x32xf32>
    %656 = tpu.matmul %654, %655, %cst_240 {dimension_numbers = #tpu.dot_dimension_numbers<[1], [0], [0], [1], [0, 0, 1, 1], [], []>} : vector<8x17xbf16>, vector<17x32xbf16>, vector<8x32xf32> -> vector<8x32xf32>
    %c2_241 = arith.constant 2 : index
    %c0_242 = arith.constant 0 : index
    %c0_243 = arith.constant 0 : index
    %657 = vector.load %arg9[%c2_241, %c0_242, %c0_243] : memref<3x16x32xf32, #tpu.memory_space<vmem>>, vector<1x16x32xf32>
    %658 = vector.shape_cast %657 : vector<1x16x32xf32> to vector<16x32xf32>
    %659 = arith.truncf %658 : vector<16x32xf32> to vector<16x32xbf16>
    %cst_244 = arith.constant dense<0.000000e+00> : vector<8x32xf32>
    %660 = tpu.matmul %545, %659, %cst_244 {dimension_numbers = #tpu.dot_dimension_numbers<[1], [0], [0], [1], [0, 0, 1, 1], [], []>} : vector<8x16xbf16>, vector<16x32xbf16>, vector<8x32xf32> -> vector<8x32xf32>
    %661 = arith.addf %656, %660 : vector<8x32xf32>
    %662 = vector.extract_strided_slice %651 {offsets = [0, 0], sizes = [1, 32], strides = [1, 1]} : vector<3x32xf32> to vector<1x32xf32>
    %663 = vector.broadcast %662 : vector<1x32xf32> to vector<8x32xf32>
    %664 = arith.addf %661, %663 : vector<8x32xf32>
    %cst_245 = arith.constant dense<0.000000e+00> : vector<8xf32>
    %665 = vector.multi_reduction <add>, %664, %cst_245 [1] : vector<8x32xf32> to vector<8xf32>
    %666 = vector.shape_cast %665 : vector<8xf32> to vector<8x1xf32>
    %cst_246 = arith.constant 3.200000e+01 : f32
    %667 = vector.broadcast %cst_246 : f32 to vector<8x1xf32>
    %668 = arith.divf %666, %667 : vector<8x1xf32>
    %669 = vector.broadcast %668 : vector<8x1xf32> to vector<8x32xf32>
    %670 = arith.subf %664, %669 : vector<8x32xf32>
    %671 = arith.mulf %670, %670 : vector<8x32xf32>
    %cst_247 = arith.constant dense<0.000000e+00> : vector<8xf32>
    %672 = vector.multi_reduction <add>, %671, %cst_247 [1] : vector<8x32xf32> to vector<8xf32>
    %673 = vector.shape_cast %672 : vector<8xf32> to vector<8x1xf32>
    %cst_248 = arith.constant 3.200000e+01 : f32
    %674 = vector.broadcast %cst_248 : f32 to vector<8x1xf32>
    %675 = arith.divf %673, %674 : vector<8x1xf32>
    %676 = vector.broadcast %668 : vector<8x1xf32> to vector<8x32xf32>
    %677 = arith.subf %664, %676 : vector<8x32xf32>
    %cst_249 = arith.constant 9.99999974E-6 : f32
    %678 = vector.broadcast %cst_249 : f32 to vector<8x1xf32>
    %679 = arith.addf %675, %678 : vector<8x1xf32>
    %680 = math.rsqrt %679 : vector<8x1xf32>
    %681 = vector.broadcast %680 : vector<8x1xf32> to vector<8x32xf32>
    %682 = arith.mulf %677, %681 : vector<8x32xf32>
    %683 = vector.extract_strided_slice %651 {offsets = [1, 0], sizes = [1, 32], strides = [1, 1]} : vector<3x32xf32> to vector<1x32xf32>
    %684 = vector.broadcast %683 : vector<1x32xf32> to vector<8x32xf32>
    %685 = arith.mulf %682, %684 : vector<8x32xf32>
    %686 = vector.extract_strided_slice %651 {offsets = [2, 0], sizes = [1, 32], strides = [1, 1]} : vector<3x32xf32> to vector<1x32xf32>
    %687 = vector.broadcast %686 : vector<1x32xf32> to vector<8x32xf32>
    %688 = arith.addf %685, %687 : vector<8x32xf32>
    %cst_250 = arith.constant 0.000000e+00 : f32
    %689 = vector.broadcast %cst_250 : f32 to vector<8x32xf32>
    %690 = arith.maximumf %688, %689 : vector<8x32xf32>
    %c2_251 = arith.constant 2 : index
    %c0_252 = arith.constant 0 : index
    %c0_253 = arith.constant 0 : index
    %691 = vector.load %arg11[%c2_251, %c0_252, %c0_253] : memref<3x32x16xf32, #tpu.memory_space<vmem>>, vector<1x32x16xf32>
    %692 = vector.shape_cast %691 : vector<1x32x16xf32> to vector<32x16xf32>
    %693 = arith.truncf %690 : vector<8x32xf32> to vector<8x32xbf16>
    %694 = arith.truncf %692 : vector<32x16xf32> to vector<32x16xbf16>
    %cst_254 = arith.constant dense<0.000000e+00> : vector<8x16xf32>
    %695 = tpu.matmul %693, %694, %cst_254 {dimension_numbers = #tpu.dot_dimension_numbers<[1], [0], [0], [1], [0, 0, 1, 1], [], []>} : vector<8x32xbf16>, vector<32x16xbf16>, vector<8x16xf32> -> vector<8x16xf32>
    %c2_255 = arith.constant 2 : index
    %c0_256 = arith.constant 0 : index
    %c0_257 = arith.constant 0 : index
    %696 = vector.load %arg12[%c2_255, %c0_256, %c0_257] : memref<3x1x16xf32, #tpu.memory_space<vmem>>, vector<1x1x16xf32>
    %697 = vector.shape_cast %696 : vector<1x1x16xf32> to vector<1x16xf32>
    %698 = vector.broadcast %697 : vector<1x16xf32> to vector<8x16xf32>
    %699 = arith.addf %695, %698 : vector<8x16xf32>
    %700 = arith.addf %649, %699 : vector<8x16xf32>
    %701 = arith.mulf %201, %201 : vector<8x16xbf16>
    %702 = arith.extf %701 : vector<8x16xbf16> to vector<8x16xf32>
    %cst_258 = arith.constant dense<0.000000e+00> : vector<8xf32>
    %703 = vector.multi_reduction <add>, %702, %cst_258 [1] : vector<8x16xf32> to vector<8xf32>
    %704 = vector.shape_cast %703 : vector<8xf32> to vector<8x1xf32>
    %705 = arith.truncf %704 : vector<8x1xf32> to vector<8x1xbf16>
    %706 = arith.mulf %204, %204 : vector<8x16xbf16>
    %707 = arith.extf %706 : vector<8x16xbf16> to vector<8x16xf32>
    %cst_259 = arith.constant dense<0.000000e+00> : vector<8xf32>
    %708 = vector.multi_reduction <add>, %707, %cst_259 [1] : vector<8x16xf32> to vector<8xf32>
    %709 = vector.shape_cast %708 : vector<8xf32> to vector<8x1xf32>
    %710 = arith.truncf %709 : vector<8x1xf32> to vector<8x1xbf16>
    %711 = arith.addf %705, %710 : vector<8x1xbf16>
    %712 = vector.extract_strided_slice %206 {offsets = [0, 16], sizes = [8, 1], strides = [1, 1]} : vector<8x17xf32> to vector<8x1xf32>
    %713 = vector.extract_strided_slice %207 {offsets = [0, 16], sizes = [8, 1], strides = [1, 1]} : vector<8x17xf32> to vector<8x1xf32>
    %714 = arith.extf %711 : vector<8x1xbf16> to vector<8x1xf32>
    %cst_260 = arith.constant 0.000000e+00 : f32
    %715 = vector.broadcast %cst_260 : f32 to vector<8x109xf32>
    %716 = tpu.concatenate %700, %712, %713, %714, %715 in 1 : vector<8x16xf32>, vector<8x1xf32>, vector<8x1xf32>, vector<8x1xf32>, vector<8x109xf32> -> vector<8x128xf32>
    %c0_261 = arith.constant 0 : index
    %c0_262 = arith.constant 0 : index
    %717 = vector.load %arg13[%c0_261, %c0_262] : memref<8x128xf32, #tpu.memory_space<vmem>>, vector<8x128xf32>
    tpu.vector_store %arg13[%c0_261, %c0_262], %716 {strides = array<i32>} : memref<8x128xf32, #tpu.memory_space<vmem>>, vector<8x128xf32>,
    return
  }
  func.func @transform_0(%arg0: i32) -> (i32, i32) {
    %c0_i32 = arith.constant 0 : i32
    %c0_i32_0 = arith.constant 0 : i32
    return %arg0, %c0_i32 : i32, i32
  }
  func.func @transform_1(%arg0: i32) -> (i32, i32) {
    %c0_i32 = arith.constant 0 : i32
    %c0_i32_0 = arith.constant 0 : i32
    return %arg0, %c0_i32 : i32, i32
  }
  func.func @transform_2(%arg0: i32) -> (i32, i32) {
    %c0_i32 = arith.constant 0 : i32
    %c0_i32_0 = arith.constant 0 : i32
    %c0_i32_1 = arith.constant 0 : i32
    return %c0_i32, %c0_i32_0 : i32, i32
  }
  func.func @transform_3(%arg0: i32) -> (i32, i32) {
    %c0_i32 = arith.constant 0 : i32
    %c0_i32_0 = arith.constant 0 : i32
    %c0_i32_1 = arith.constant 0 : i32
    return %c0_i32, %c0_i32_0 : i32, i32
  }
  func.func @transform_4(%arg0: i32) -> (i32, i32) {
    %c0_i32 = arith.constant 0 : i32
    %c0_i32_0 = arith.constant 0 : i32
    %c0_i32_1 = arith.constant 0 : i32
    return %c0_i32, %c0_i32_0 : i32, i32
  }
  func.func @transform_5(%arg0: i32) -> (i32, i32) {
    %c0_i32 = arith.constant 0 : i32
    %c0_i32_0 = arith.constant 0 : i32
    %c0_i32_1 = arith.constant 0 : i32
    return %c0_i32, %c0_i32_0 : i32, i32
  }
  func.func @transform_6(%arg0: i32) -> (i32, i32) {
    %c0_i32 = arith.constant 0 : i32
    %c0_i32_0 = arith.constant 0 : i32
    %c0_i32_1 = arith.constant 0 : i32
    return %c0_i32, %c0_i32_0 : i32, i32
  }
  func.func @transform_7(%arg0: i32) -> (i32, i32, i32) {
    %c0_i32 = arith.constant 0 : i32
    %c0_i32_0 = arith.constant 0 : i32
    %c0_i32_1 = arith.constant 0 : i32
    %c0_i32_2 = arith.constant 0 : i32
    return %c0_i32, %c0_i32_0, %c0_i32_1 : i32, i32, i32
  }
  func.func @transform_8(%arg0: i32) -> (i32, i32, i32) {
    %c0_i32 = arith.constant 0 : i32
    %c0_i32_0 = arith.constant 0 : i32
    %c0_i32_1 = arith.constant 0 : i32
    %c0_i32_2 = arith.constant 0 : i32
    return %c0_i32, %c0_i32_0, %c0_i32_1 : i32, i32, i32
  }
  func.func @transform_9(%arg0: i32) -> (i32, i32, i32) {
    %c0_i32 = arith.constant 0 : i32
    %c0_i32_0 = arith.constant 0 : i32
    %c0_i32_1 = arith.constant 0 : i32
    %c0_i32_2 = arith.constant 0 : i32
    return %c0_i32, %c0_i32_0, %c0_i32_1 : i32, i32, i32
  }
  func.func @transform_10(%arg0: i32) -> (i32, i32, i32) {
    %c0_i32 = arith.constant 0 : i32
    %c0_i32_0 = arith.constant 0 : i32
    %c0_i32_1 = arith.constant 0 : i32
    %c0_i32_2 = arith.constant 0 : i32
    return %c0_i32, %c0_i32_0, %c0_i32_1 : i32, i32, i32
  }
  func.func @transform_11(%arg0: i32) -> (i32, i32, i32) {
    %c0_i32 = arith.constant 0 : i32
    %c0_i32_0 = arith.constant 0 : i32
    %c0_i32_1 = arith.constant 0 : i32
    %c0_i32_2 = arith.constant 0 : i32
    return %c0_i32, %c0_i32_0, %c0_i32_1 : i32, i32, i32
  }
  func.func @transform_12(%arg0: i32) -> (i32, i32) {
    %c0_i32 = arith.constant 0 : i32
    %c0_i32_0 = arith.constant 0 : i32
    return %arg0, %c0_i32 : i32, i32
  }
}

</mosaic_0001>

<llo_original>
// kernel: mogin12_forward.2
$region0: #{mogin12_forward.2}
  #allocation0 [shape = 'u32[]', space=smem, size = 0x4, offset = 0x4, fixed_abs, tag = 'smem constant byte address 0x4 - core index']
  #allocation1 [shape = 'u32[144,128]{1,0:T(1,128)}', space=vmem, size = 0x12000, scoped, tag = 'internal scratch']
  %s0 = inlined_call_operand.vmem [shape: bf16[16,16], index: 0, kind: input, shape index: {}]
  %s1 = inlined_call_operand.vmem [shape: s32[16,1], index: 1, kind: input, shape index: {}]
  %s2 = inlined_call_operand.vmem [shape: s32[1,16], index: 2, kind: input, shape index: {}]
  %s3 = inlined_call_operand.vmem [shape: bf16[16,17], index: 3, kind: input, shape index: {}]
  %s4 = inlined_call_operand.vmem [shape: f32[2,8], index: 4, kind: input, shape index: {}]
  %s5 = inlined_call_operand.vmem [shape: f32[2,16], index: 5, kind: input, shape index: {}]
  %s6 = inlined_call_operand.vmem [shape: f32[9,2], index: 6, kind: input, shape index: {}]
  %s7 = inlined_call_operand.vmem [shape: f32[3,17,32], index: 7, kind: input, shape index: {}]
  %s8 = inlined_call_operand.vmem [shape: f32[3,16,32], index: 8, kind: input, shape index: {}]
  %s9 = inlined_call_operand.vmem [shape: f32[3,3,32], index: 9, kind: input, shape index: {}]
  %s10 = inlined_call_operand.vmem [shape: f32[3,32,16], index: 10, kind: input, shape index: {}]
  %s11 = inlined_call_operand.vmem [shape: f32[3,1,16], index: 11, kind: input, shape index: {}]
  %s12 = inlined_call_operand.vmem [shape: f32[16,128], index: 12, kind: output, shape index: {}]
  %s13 = sld [smem:[#allocation0]]
  $region93: #{mogin12_forward.2} parent=0
    _
  %s15 = ssub.s32 1, %s13
  %s16 = scalar_select 0, %s15, %s13
  $region1: #{mogin12_forward.2} parent=0
    #allocation2 [shape = 'u8[1024]{0}', space=smem, size = 0x400, scoped, tag = 'input window, operand 4, single buffered']
    #allocation3 [shape = 's32[2]{0}', space=sflag, size = 0x8, scoped, tag = 'scoped memory for mogin12_forward.2']
    #allocation4 [shape = 'u8[1024]{0}', space=smem, size = 0x400, scoped, tag = 'input window, operand 5, single buffered']
    #allocation5 [shape = 's32[1]{0}', space=sflag, size = 0x4, scoped, tag = 'scoped memory for mogin12_forward.2']
    #allocation6 [shape = 'u8[8192]{0}', space=smem, size = 0x2000, scoped, tag = 'input window, operand 6, single buffered']
    %17 = vsyncpa [#allocation3], 0
    %18 = vsyncpa [#allocation5], 0
    loop: start=0, step=1, limit=4
    $region2: #{mogin12_forward.2} parent=1 // loop_pre_header
      _
    $region3: #{mogin12_forward.2} parent=1 // loop_header
      %s20 = sphi 0, %s24
      %p21 = scmp.ge.s32.totalorder %s20, 4
      %s30 = sphi 0, %s32
      %s33 = sphi 0, %s30
      %s34 = sphi 0, %s33
      %s50 = sphi 0, %s34
      %s56 = sphi 0, %s58
      %s59 = sphi 0, %s56
      %s60 = sphi 0, %s59
      %s76 = sphi 0, %s60
      %s80 = sphi 0, %s80
      %s82 = sphi 0, %s80
      %s83 = sphi 0, %s82
      %s97 = sphi 0, %s83
      %s101 = sphi 0, %s101
      %s103 = sphi 0, %s101
      %s104 = sphi 0, %s103
      %s118 = sphi 0, %s104
      %s122 = sphi 0, %s122
      %s124 = sphi 0, %s122
      %s125 = sphi 0, %s124
      %s139 = sphi 0, %s125
      %s143 = sphi 0, %s143
      %s145 = sphi 0, %s143
      %s146 = sphi 0, %s145
      %s160 = sphi 0, %s146
      %s164 = sphi 0, %s164
      %s166 = sphi 0, %s164
      %s167 = sphi 0, %s166
      %s181 = sphi 0, %s167
      %s185 = sphi 0, %s185
      %s187 = sphi 0, %s185
      %s188 = sphi 0, %s187
      %s202 = sphi 0, %s188
      %s206 = sphi 0, %s206
      %s208 = sphi 0, %s206
      %s209 = sphi 0, %s208
      %s223 = sphi 0, %s209
      %s227 = sphi 0, %s227
      %s229 = sphi 0, %s227
      %s230 = sphi 0, %s229
      %s244 = sphi 0, %s230
      %s248 = sphi 0, %s248
      %s250 = sphi 0, %s248
      %s251 = sphi 0, %s250
      %s265 = sphi 0, %s251
      %s269 = sphi 0, %s269
      %s271 = sphi 0, %s269
      %s272 = sphi 0, %s271
      %s286 = sphi 0, %s272
      %s292 = sphi 0, %s294
      %s295 = sphi 0, %s292
      %s296 = sphi 0, %s295
      %s312 = sphi 0, %s296
    $region4: #{mogin12_forward.2} parent=1 // loop_header_branch
      %23 = sbr.rel (%p21) target = $region8
    $region5: #{mogin12_forward.2} parent=1 // loop_body
      %s25 = ssub.s32 %s20, 1
      %s26 = ssub.s32 %s20, 2
      %s27 = sadd.s32 %s20, 1
      %s28 = ssub.s32 %s20, %s27
      %p29 = scmp.eq.s32.totalorder %s28, 0
      %s31 = sadd.s32 %s30, 1
      %s32 = scalar_select %p29, %s30, %s31
      %p35 = pneg %p29
      %p36 = scmp.eq.s32.totalorder %s20, 1
      %p37 = por %p35, %p36
      %p38 = scmp.ne.s32.totalorder %s30, %s33
      %p39 = scmp.eq.s32.totalorder %s20, 0
      %p40 = por %p38, %p39
      %p41 = scmp.ne.s32.totalorder %s30, %s33
      %p42 = scmp.eq.s32.totalorder %s25, 1
      %p43 = por %p41, %p42
      %p44 = scmp.ne.s32.totalorder %s33, %s34
      %p45 = scmp.eq.s32.totalorder %s25, 0
      %p46 = por %p44, %p45
      %p47 = scmp.ne.s32.totalorder %s33, %s34
      %p48 = scmp.eq.s32.totalorder %s26, 1
      %p49 = por %p47, %p48
      %p51 = scmp.ne.s32.totalorder %s34, %s50
      %p52 = scmp.eq.s32.totalorder %s26, 0
      %p53 = por %p51, %p52
      %s54 = ssub.s32 %s20, %s27
      %p55 = scmp.eq.s32.totalorder %s54, 0
      %s57 = sadd.s32 %s56, 1
      %s58 = scalar_select %p55, %s56, %s57
      %p61 = pneg %p55
      %p62 = scmp.eq.s32.totalorder %s20, 1
      %p63 = por %p61, %p62
      %p64 = scmp.ne.s32.totalorder %s56, %s59
      %p65 = scmp.eq.s32.totalorder %s20, 0
      %p66 = por %p64, %p65
      %p67 = scmp.ne.s32.totalorder %s56, %s59
      %p68 = scmp.eq.s32.totalorder %s25, 1
      %p69 = por %p67, %p68
      %p70 = scmp.ne.s32.totalorder %s59, %s60
      %p71 = scmp.eq.s32.totalorder %s25, 0
      %p72 = por %p70, %p71
      %p73 = scmp.ne.s32.totalorder %s59, %s60
      %p74 = scmp.eq.s32.totalorder %s26, 1
      %p75 = por %p73, %p74
      %p77 = scmp.ne.s32.totalorder %s60, %s76
      %p78 = scmp.eq.s32.totalorder %s26, 0
      %p79 = por %p77, %p78
      %s81 = sadd.s32 %s80, 1
      %p84 = scmp.eq.s32.totalorder %s20, 1
      %p85 = scmp.ne.s32.totalorder %s80, %s82
      %p86 = scmp.eq.s32.totalorder %s20, 0
      %p87 = por %p85, %p86
      %p88 = scmp.ne.s32.totalorder %s80, %s82
      %p89 = scmp.eq.s32.totalorder %s25, 1
      %p90 = por %p88, %p89
      %p91 = scmp.ne.s32.totalorder %s82, %s83
      %p92 = scmp.eq.s32.totalorder %s25, 0
      %p93 = por %p91, %p92
      %p94 = scmp.ne.s32.totalorder %s82, %s83
      %p95 = scmp.eq.s32.totalorder %s26, 1
      %p96 = por %p94, %p95
      %p98 = scmp.ne.s32.totalorder %s83, %s97
      %p99 = scmp.eq.s32.totalorder %s26, 0
      %p100 = por %p98, %p99
      %s102 = sadd.s32 %s101, 1
      %p105 = scmp.eq.s32.totalorder %s20, 1
      %p106 = scmp.ne.s32.totalorder %s101, %s103
      %p107 = scmp.eq.s32.totalorder %s20, 0
      %p108 = por %p106, %p107
      %p109 = scmp.ne.s32.totalorder %s101, %s103
      %p110 = scmp.eq.s32.totalorder %s25, 1
      %p111 = por %p109, %p110
      %p112 = scmp.ne.s32.totalorder %s103, %s104
      %p113 = scmp.eq.s32.totalorder %s25, 0
      %p114 = por %p112, %p113
      %p115 = scmp.ne.s32.totalorder %s103, %s104
      %p116 = scmp.eq.s32.totalorder %s26, 1
      %p117 = por %p115, %p116
      %p119 = scmp.ne.s32.totalorder %s104, %s118
      %p120 = scmp.eq.s32.totalorder %s26, 0
      %p121 = por %p119, %p120
      %s123 = sadd.s32 %s122, 1
      %p126 = scmp.eq.s32.totalorder %s20, 1
      %p127 = scmp.ne.s32.totalorder %s122, %s124
      %p128 = scmp.eq.s32.totalorder %s20, 0
      %p129 = por %p127, %p128
      %p130 = scmp.ne.s32.totalorder %s122, %s124
      %p131 = scmp.eq.s32.totalorder %s25, 1
      %p132 = por %p130, %p131
      %p133 = scmp.ne.s32.totalorder %s124, %s125
      %p134 = scmp.eq.s32.totalorder %s25, 0
      %p135 = por %p133, %p134
      %p136 = scmp.ne.s32.totalorder %s124, %s125
      %p137 = scmp.eq.s32.totalorder %s26, 1
      %p138 = por %p136, %p137
      %p140 = scmp.ne.s32.totalorder %s125, %s139
      %p141 = scmp.eq.s32.totalorder %s26, 0
      %p142 = por %p140, %p141
      %s144 = sadd.s32 %s143, 1
      %p147 = scmp.eq.s32.totalorder %s20, 1
      %p148 = scmp.ne.s32.totalorder %s143, %s145
      %p149 = scmp.eq.s32.totalorder %s20, 0
      %p150 = por %p148, %p149
      %p151 = scmp.ne.s32.totalorder %s143, %s145
      %p152 = scmp.eq.s32.totalorder %s25, 1
      %p153 = por %p151, %p152
      %p154 = scmp.ne.s32.totalorder %s145, %s146
      %p155 = scmp.eq.s32.totalorder %s25, 0
      %p156 = por %p154, %p155
      %p157 = scmp.ne.s32.totalorder %s145, %s146
      %p158 = scmp.eq.s32.totalorder %s26, 1
      %p159 = por %p157, %p158
      %p161 = scmp.ne.s32.totalorder %s146, %s160
      %p162 = scmp.eq.s32.totalorder %s26, 0
      %p163 = por %p161, %p162
      %s165 = sadd.s32 %s164, 1
      %p168 = scmp.eq.s32.totalorder %s20, 1
      %p169 = scmp.ne.s32.totalorder %s164, %s166
      %p170 = scmp.eq.s32.totalorder %s20, 0
      %p171 = por %p169, %p170
      %p172 = scmp.ne.s32.totalorder %s164, %s166
      %p173 = scmp.eq.s32.totalorder %s25, 1
      %p174 = por %p172, %p173
      %p175 = scmp.ne.s32.totalorder %s166, %s167
      %p176 = scmp.eq.s32.totalorder %s25, 0
      %p177 = por %p175, %p176
      %p178 = scmp.ne.s32.totalorder %s166, %s167
      %p179 = scmp.eq.s32.totalorder %s26, 1
      %p180 = por %p178, %p179
      %p182 = scmp.ne.s32.totalorder %s167, %s181
      %p183 = scmp.eq.s32.totalorder %s26, 0
      %p184 = por %p182, %p183
      %s186 = sadd.s32 %s185, 1
      %p189 = scmp.eq.s32.totalorder %s20, 1
      %p190 = scmp.ne.s32.totalorder %s185, %s187
      %p191 = scmp.eq.s32.totalorder %s20, 0
      %p192 = por %p190, %p191
      %p193 = scmp.ne.s32.totalorder %s185, %s187
      %p194 = scmp.eq.s32.totalorder %s25, 1
      %p195 = por %p193, %p194
      %p196 = scmp.ne.s32.totalorder %s187, %s188
      %p197 = scmp.eq.s32.totalorder %s25, 0
      %p198 = por %p196, %p197
      %p199 = scmp.ne.s32.totalorder %s187, %s188
      %p200 = scmp.eq.s32.totalorder %s26, 1
      %p201 = por %p199, %p200
      %p203 = scmp.ne.s32.totalorder %s188, %s202
      %p204 = scmp.eq.s32.totalorder %s26, 0
      %p205 = por %p203, %p204
      %s207 = sadd.s32 %s206, 1
      %p210 = scmp.eq.s32.totalorder %s20, 1
      %p211 = scmp.ne.s32.totalorder %s206, %s208
      %p212 = scmp.eq.s32.totalorder %s20, 0
      %p213 = por %p211, %p212
      %p214 = scmp.ne.s32.totalorder %s206, %s208
      %p215 = scmp.eq.s32.totalorder %s25, 1
      %p216 = por %p214, %p215
      %p217 = scmp.ne.s32.totalorder %s208, %s209
      %p218 = scmp.eq.s32.totalorder %s25, 0
      %p219 = por %p217, %p218
      %p220 = scmp.ne.s32.totalorder %s208, %s209
      %p221 = scmp.eq.s32.totalorder %s26, 1
      %p222 = por %p220, %p221
      %p224 = scmp.ne.s32.totalorder %s209, %s223
      %p225 = scmp.eq.s32.totalorder %s26, 0
      %p226 = por %p224, %p225
      %s228 = sadd.s32 %s227, 1
      %p231 = scmp.eq.s32.totalorder %s20, 1
      %p232 = scmp.ne.s32.totalorder %s227, %s229
      %p233 = scmp.eq.s32.totalorder %s20, 0
      %p234 = por %p232, %p233
      %p235 = scmp.ne.s32.totalorder %s227, %s229
      %p236 = scmp.eq.s32.totalorder %s25, 1
      %p237 = por %p235, %p236
      %p238 = scmp.ne.s32.totalorder %s229, %s230
      %p239 = scmp.eq.s32.totalorder %s25, 0
      %p240 = por %p238, %p239
      %p241 = scmp.ne.s32.totalorder %s229, %s230
      %p242 = scmp.eq.s32.totalorder %s26, 1
      %p243 = por %p241, %p242
      %p245 = scmp.ne.s32.totalorder %s230, %s244
      %p246 = scmp.eq.s32.totalorder %s26, 0
      %p247 = por %p245, %p246
      %s249 = sadd.s32 %s248, 1
      %p252 = scmp.eq.s32.totalorder %s20, 1
      %p253 = scmp.ne.s32.totalorder %s248, %s250
      %p254 = scmp.eq.s32.totalorder %s20, 0
      %p255 = por %p253, %p254
      %p256 = scmp.ne.s32.totalorder %s248, %s250
      %p257 = scmp.eq.s32.totalorder %s25, 1
      %p258 = por %p256, %p257
      %p259 = scmp.ne.s32.totalorder %s250, %s251
      %p260 = scmp.eq.s32.totalorder %s25, 0
      %p261 = por %p259, %p260
      %p262 = scmp.ne.s32.totalorder %s250, %s251
      %p263 = scmp.eq.s32.totalorder %s26, 1
      %p264 = por %p262, %p263
      %p266 = scmp.ne.s32.totalorder %s251, %s265
      %p267 = scmp.eq.s32.totalorder %s26, 0
      %p268 = por %p266, %p267
      %s270 = sadd.s32 %s269, 1
      %p273 = scmp.eq.s32.totalorder %s20, 1
      %p274 = scmp.ne.s32.totalorder %s269, %s271
      %p275 = scmp.eq.s32.totalorder %s20, 0
      %p276 = por %p274, %p275
      %p277 = scmp.ne.s32.totalorder %s269, %s271
      %p278 = scmp.eq.s32.totalorder %s25, 1
      %p279 = por %p277, %p278
      %p280 = scmp.ne.s32.totalorder %s271, %s272
      %p281 = scmp.eq.s32.totalorder %s25, 0
      %p282 = por %p280, %p281
      %p283 = scmp.ne.s32.totalorder %s271, %s272
      %p284 = scmp.eq.s32.totalorder %s26, 1
      %p285 = por %p283, %p284
      %p287 = scmp.ne.s32.totalorder %s272, %s286
      %p288 = scmp.eq.s32.totalorder %s26, 0
      %p289 = por %p287, %p288
      %s290 = ssub.s32 %s20, %s27
      %p291 = scmp.eq.s32.totalorder %s290, 0
      %s293 = sadd.s32 %s292, 1
      %s294 = scalar_select %p291, %s292, %s293
      %p297 = pneg %p291
      %p298 = scmp.eq.s32.totalorder %s20, 1
      %p299 = por %p297, %p298
      %p300 = scmp.ne.s32.totalorder %s292, %s295
      %p301 = scmp.eq.s32.totalorder %s20, 0
      %p302 = por %p300, %p301
      %p303 = scmp.ne.s32.totalorder %s292, %s295
      %p304 = scmp.eq.s32.totalorder %s25, 1
      %p305 = por %p303, %p304
      %p306 = scmp.ne.s32.totalorder %s295, %s296
      %p307 = scmp.eq.s32.totalorder %s25, 0
      %p308 = por %p306, %p307
      %p309 = scmp.ne.s32.totalorder %s295, %s296
      %p310 = scmp.eq.s32.totalorder %s26, 1
      %p311 = por %p309, %p310
      %p313 = scmp.ne.s32.totalorder %s296, %s312
      %p314 = scmp.eq.s32.totalorder %s26, 0
      %p315 = por %p313, %p314
      %p316 = scmp.le.s32.totalorder 1, %s20
      %p317 = scmp.lt.s32.totalorder %s20, 3
      %p318 = pnand %p316, %p317
      %p319 = pneg %p318
      // Predicated region
      $region9: #{mogin12_forward.2} parent=5 // pred_check
        _
      $region10: #{mogin12_forward.2} parent=5 // pred_check_branch
        %321 = sbr.rel (%p318) target = $region12
      $region11: #{mogin12_forward.2} parent=5 // pred_region
        %s322 = ssub.s32 %s20, 1
        // Predicated region
        $region13: #{mogin12_forward.2} parent=11 // pred_check
          %p323 = pneg %p93
        $region14: #{mogin12_forward.2} parent=11 // pred_check_branch
          %325 = sbr.rel (%p323) target = $region16
        $region15: #{mogin12_forward.2} parent=11 // pred_region
          _
        $region16: #{mogin12_forward.2} parent=11 // pred_fallthru
          _
        // Predicated region
        $region17: #{mogin12_forward.2} parent=11 // pred_check
          %p326 = pneg %p114
        $region18: #{mogin12_forward.2} parent=11 // pred_check_branch
          %328 = sbr.rel (%p326) target = $region20
        $region19: #{mogin12_forward.2} parent=11 // pred_region
          _
        $region20: #{mogin12_forward.2} parent=11 // pred_fallthru
          _
        // Predicated region
        $region21: #{mogin12_forward.2} parent=11 // pred_check
          %p329 = pneg %p135
        $region22: #{mogin12_forward.2} parent=11 // pred_check_branch
          %331 = sbr.rel (%p329) target = $region24
        $region23: #{mogin12_forward.2} parent=11 // pred_region
          %s333 = ssub.s32 32, 32
          %334 = vsyncadd [#allocation3], %s333
          %s336 = sshll.u32 %s4, 4
          %s337 = int_to_ptr.vmem [resolvable:$true] %s336
          %339 = dma.vmem_to_smem %s337, 32, [#allocation2], [#allocation3]
        $region24: #{mogin12_forward.2} parent=11 // pred_fallthru
          _
        // Predicated region
        $region25: #{mogin12_forward.2} parent=11 // pred_check
          %p340 = pneg %p156
        $region26: #{mogin12_forward.2} parent=11 // pred_check_branch
          %342 = sbr.rel (%p340) target = $region28
        $region27: #{mogin12_forward.2} parent=11 // pred_region
          %s344 = ssub.s32 32, 32
          %345 = vsyncadd [#allocation5], %s344
          %s347 = sshll.u32 %s5, 4
          %s348 = int_to_ptr.vmem [resolvable:$true] %s347
          %350 = dma.vmem_to_smem %s348, 32, [#allocation4], [#allocation5]
        $region28: #{mogin12_forward.2} parent=11 // pred_fallthru
          _
        // Predicated region
        $region29: #{mogin12_forward.2} parent=11 // pred_check
          %p351 = pneg %p177
        $region30: #{mogin12_forward.2} parent=11 // pred_check_branch
          %353 = sbr.rel (%p351) target = $region32
        $region31: #{mogin12_forward.2} parent=11 // pred_region
          %s355 = ssub.s32 256, 256
          %356 = vsyncadd [#allocation5], %s355
          %s357 = sshll.u32 %s6, 4
          %s358 = int_to_ptr.vmem [resolvable:$true] %s357
          %363 = dma.vmem_to_smem %s358, 256, [#allocation6], [#allocation5], 128, 128, 8
        $region32: #{mogin12_forward.2} parent=11 // pred_fallthru
          _
        // Predicated region
        $region33: #{mogin12_forward.2} parent=11 // pred_check
          %p364 = pneg %p198
        $region34: #{mogin12_forward.2} parent=11 // pred_check_branch
          %366 = sbr.rel (%p364) target = $region36
        $region35: #{mogin12_forward.2} parent=11 // pred_region
          _
        $region36: #{mogin12_forward.2} parent=11 // pred_fallthru
          _
        // Predicated region
        $region37: #{mogin12_forward.2} parent=11 // pred_check
          %p367 = pneg %p219
        $region38: #{mogin12_forward.2} parent=11 // pred_check_branch
          %369 = sbr.rel (%p367) target = $region40
        $region39: #{mogin12_forward.2} parent=11 // pred_region
          _
        $region40: #{mogin12_forward.2} parent=11 // pred_fallthru
          _
        // Predicated region
        $region41: #{mogin12_forward.2} parent=11 // pred_check
          %p370 = pneg %p240
        $region42: #{mogin12_forward.2} parent=11 // pred_check_branch
          %372 = sbr.rel (%p370) target = $region44
        $region43: #{mogin12_forward.2} parent=11 // pred_region
          _
        $region44: #{mogin12_forward.2} parent=11 // pred_fallthru
          _
        // Predicated region
        $region45: #{mogin12_forward.2} parent=11 // pred_check
          %p373 = pneg %p261
        $region46: #{mogin12_forward.2} parent=11 // pred_check_branch
          %375 = sbr.rel (%p373) target = $region48
        $region47: #{mogin12_forward.2} parent=11 // pred_region
          _
        $region48: #{mogin12_forward.2} parent=11 // pred_fallthru
          _
        // Predicated region
        $region49: #{mogin12_forward.2} parent=11 // pred_check
          %p376 = pneg %p282
        $region50: #{mogin12_forward.2} parent=11 // pred_check_branch
          %378 = sbr.rel (%p376) target = $region52
        $region51: #{mogin12_forward.2} parent=11 // pred_region
          _
        $region52: #{mogin12_forward.2} parent=11 // pred_fallthru
          _
      $region12: #{mogin12_forward.2} parent=5 // pred_fallthru
        _
      %p379 = scmp.lt.s32.totalorder %s20, 2
      // Predicated region
      $region53: #{mogin12_forward.2} parent=5 // pred_check
        %p380 = pneg %p379
      $region54: #{mogin12_forward.2} parent=5 // pred_check_branch
        %382 = sbr.rel (%p380) target = $region56
      $region55: #{mogin12_forward.2} parent=5 // pred_region
        // Predicated region
        $region57: #{mogin12_forward.2} parent=55 // pred_check
          %p383 = pneg %p40
        $region58: #{mogin12_forward.2} parent=55 // pred_check_branch
          %385 = sbr.rel (%p383) target = $region60
        $region59: #{mogin12_forward.2} parent=55 // pred_region
          %p386 = scmp.lt.s32.totalorder %s20, 1
          %s387 = scalar_select %p386, %s20, 1
          %s388 = smul.addr %s387, 4
          %s389 = scalar_lea.vmem %s0, %s388
        $region60: #{mogin12_forward.2} parent=55 // pred_fallthru
          _
        // Predicated region
        $region61: #{mogin12_forward.2} parent=55 // pred_check
          %p390 = pneg %p66
        $region62: #{mogin12_forward.2} parent=55 // pred_check_branch
          %392 = sbr.rel (%p390) target = $region64
        $region63: #{mogin12_forward.2} parent=55 // pred_region
          %p393 = scmp.lt.s32.totalorder %s20, 1
          %s394 = scalar_select %p393, %s20, 1
          %s395 = smul.addr %s394, 8
          %s396 = scalar_lea.vmem %s1, %s395
        $region64: #{mogin12_forward.2} parent=55 // pred_fallthru
          _
      $region56: #{mogin12_forward.2} parent=5 // pred_fallthru
        _
      %p397 = scmp.le.s32.totalorder 1, %s20
      %p398 = scmp.lt.s32.totalorder %s20, 3
      %p399 = pnand %p397, %p398
      %p400 = pneg %p399
      // Predicated region
      $region65: #{mogin12_forward.2} parent=5 // pred_check
        _
      $region66: #{mogin12_forward.2} parent=5 // pred_check_branch
        %402 = sbr.rel (%p399) target = $region68
      $region67: #{mogin12_forward.2} parent=5 // pred_region
        %s403 = ssub.s32 %s20, 1
        // Predicated region
        $region69: #{mogin12_forward.2} parent=67 // pred_check
          %p404 = pneg %p135
        $region70: #{mogin12_forward.2} parent=67 // pred_check_branch
          %406 = sbr.rel (%p404) target = $region72
        $region71: #{mogin12_forward.2} parent=67 // pred_region
          %407 = dma.done [#allocation3], 32
        $region72: #{mogin12_forward.2} parent=67 // pred_fallthru
          _
        // Predicated region
        $region73: #{mogin12_forward.2} parent=67 // pred_check
          %p408 = pneg %p156
        $region74: #{mogin12_forward.2} parent=67 // pred_check_branch
          %410 = sbr.rel (%p408) target = $region76
        $region75: #{mogin12_forward.2} parent=67 // pred_region
          %411 = dma.done [#allocation5], 32
        $region76: #{mogin12_forward.2} parent=67 // pred_fallthru
          _
        // Predicated region
        $region77: #{mogin12_forward.2} parent=67 // pred_check
          %p412 = pneg %p177
        $region78: #{mogin12_forward.2} parent=67 // pred_check_branch
          %414 = sbr.rel (%p412) target = $region80
        $region79: #{mogin12_forward.2} parent=67 // pred_region
          %415 = dma.done [#allocation5], 256
        $region80: #{mogin12_forward.2} parent=67 // pred_fallthru
          _
        %416 = sfence
        %p417 = scmp.lt.s32.totalorder %s25, 1
        %s418 = scalar_select %p417, %s25, 1
        %s419 = smul.addr %s418, 4
        %s420 = scalar_lea.vmem %s0, %s419
        %p421 = pneg %p46
        %p422 = pneg %p43
        %p423 = scmp.lt.s32.totalorder %s25, 1
        %s424 = scalar_select %p423, %s25, 1
        %s425 = smul.addr %s424, 8
        %s426 = scalar_lea.vmem %s1, %s425
        %p427 = pneg %p72
        %p428 = pneg %p69
        %p429 = pneg %p93
        %p430 = pneg %p90
        %p431 = pneg %p114
        %p432 = pneg %p111
        %p433 = pneg %p135
        %p434 = pneg %p132
        %p435 = pneg %p156
        %p436 = pneg %p153
        %p437 = pneg %p177
        %p438 = pneg %p174
        %p439 = pneg %p198
        %p440 = pneg %p195
        %p441 = pneg %p219
        %p442 = pneg %p216
        %p443 = pneg %p240
        %p444 = pneg %p237
        %p445 = pneg %p261
        %p446 = pneg %p258
        %p447 = pneg %p282
        %p448 = pneg %p279
        %p449 = pneg %p308
        %p450 = pneg %p305
        %p451 = scmp.lt.s32.totalorder %s25, 1
        %s452 = scalar_select %p451, %s25, 1
        %s453 = smul.addr %s452, 8
        %s454 = scalar_lea.vmem %s12, %s453
        %p455 = scmp.lt.s32.totalorder %s25, 1
        %s456 = scalar_select %p455, %s25, 1
        %s457 = smul.addr %s456, 4
        %s458 = scalar_lea.vmem %s0, %s457
        %p459 = scmp.lt.s32.totalorder %s25, 1
        %s460 = scalar_select %p459, %s25, 1
        %s461 = smul.addr %s460, 8
        %s462 = scalar_lea.vmem %s1, %s461
        %p463 = scmp.lt.s32.totalorder %s25, 1
        %s464 = scalar_select %p463, %s25, 1
        %s465 = smul.addr %s464, 8
        %s466 = scalar_lea.vmem %s12, %s465
        %v473 = vld [vmem:[%s458] sm:$0xf]
        %s474 = smul.u32 %s25, 8
        %v475 = vlaneseq
        %v476 = vshrl.u32 %v475, 7
        %v477 = vstv %s474
        %v478 = vadd.s32 %v477, %v476
        %v479 = vlaneseq
        %v480 = vand.u32 %v479, 127
        %v481 = vld [vmem:[%s462] sm:$0xff]
        %v482 = vld [vmem:[%s2] sm:$0x1]
        %483 = vset.pattern.permute.xlu0 0
        %484 = vperm.xlu0 %483, %v481
        %v485 = vpop.permute.xlu0 %484
        %v486 = vlaneseq
        %v487 = vshrl.u32 %v486, 7
        %v488 = vsub.s32 0, %v487
        %v489 = vrot.slane %v482, %v488
        %vm490 = vcmp.eq.s32.totalorder %v485, %v489
        %vm491 = vcmp.ne.s32.totalorder %v478, %v480
        %vm492 = vmand %vm490, %vm491
        %vm493 = vcmp.le.bf16.partialorder %v473, 1086800071
        %v494 = vsel %vm493, 65537, 0
        %v495 = vunpack.c.l.b16 %v494
        %vm496 = vcmp.ne.s32.totalorder %v495, 0
        %vm497 = vmand %vm492, %vm496
        %s498 = sld [smem:[#allocation2]]
        %p500 = scmp.ne.f32.partialorder %s498, %s498
        %s501 = sshrl.u32 %s498, 16
        %s502 = sand.u32 %s501, 1
        %s503 = sadd.s32 32767, %s502
        %s504 = sadd.s32 %s498, %s503
        %s505 = sand.u32 %s504, 4294901760
        %s506 = scalar_select %p500, 2143289344, %s505
        %s508 = sshrl.u32 %s506, 16
        %s509 = sshll.u32 %s508, 16
        %s510 = sor.u32 %s508, %s509
        %v511 = vstv %s510
        %v513 = vmul.bf16 %v473, %v511
        %s514 = sld [smem:[#allocation2 + $0x80]]
        %p516 = scmp.ne.f32.partialorder %s514, %s514
        %s517 = sshrl.u32 %s514, 16
        %s518 = sand.u32 %s517, 1
        %s519 = sadd.s32 32767, %s518
        %s520 = sadd.s32 %s514, %s519
        %s521 = sand.u32 %s520, 4294901760
        %s522 = scalar_select %p516, 2143289344, %s521
        %s524 = sshrl.u32 %s522, 16
        %s525 = sshll.u32 %s524, 16
        %s526 = sor.u32 %s524, %s525
        %v527 = vstv %s526
        %v529 = vadd.bf16 %v513, %v527
        %v530 = vmul.bf16 %v529, 1009007652
        %v531 = vmax.bf16 %v529, %v530
        %s532 = sld [smem:[#allocation6]]
        %p534 = scmp.ne.f32.partialorder %s532, %s532
        %s535 = sshrl.u32 %s532, 16
        %s536 = sand.u32 %s535, 1
        %s537 = sadd.s32 32767, %s536
        %s538 = sadd.s32 %s532, %s537
        %s539 = sand.u32 %s538, 4294901760
        %s540 = scalar_select %p534, 2143289344, %s539
        %s542 = sshrl.u32 %s540, 16
        %s543 = sshll.u32 %s542, 16
        %s544 = sor.u32 %s542, %s543
        %v545 = vstv %s544
        %v547 = vmul.bf16 %v531, %v545
        %s548 = sld [smem:[#allocation6 + $0x1]]
        %p550 = scmp.ne.f32.partialorder %s548, %s548
        %s551 = sshrl.u32 %s548, 16
        %s552 = sand.u32 %s551, 1
        %s553 = sadd.s32 32767, %s552
        %s554 = sadd.s32 %s548, %s553
        %s555 = sand.u32 %s554, 4294901760
        %s556 = scalar_select %p550, 2143289344, %s555
        %s558 = sshrl.u32 %s556, 16
        %s559 = sshll.u32 %s558, 16
        %s560 = sor.u32 %s558, %s559
        %v561 = vstv %s560
        %v563 = vmul.bf16 %v531, %v561
        %s564 = sld [smem:[#allocation2 + $0x1]]
        %p566 = scmp.ne.f32.partialorder %s564, %s564
        %s567 = sshrl.u32 %s564, 16
        %s568 = sand.u32 %s567, 1
        %s569 = sadd.s32 32767, %s568
        %s570 = sadd.s32 %s564, %s569
        %s571 = sand.u32 %s570, 4294901760
        %s572 = scalar_select %p566, 2143289344, %s571
        %s574 = sshrl.u32 %s572, 16
        %s575 = sshll.u32 %s574, 16
        %s576 = sor.u32 %s574, %s575
        %v577 = vstv %s576
        %v579 = vmul.bf16 %v473, %v577
        %s580 = sld [smem:[#allocation2 + $0x81]]
        %p582 = scmp.ne.f32.partialorder %s580, %s580
        %s583 = sshrl.u32 %s580, 16
        %s584 = sand.u32 %s583, 1
        %s585 = sadd.s32 32767, %s584
        %s586 = sadd.s32 %s580, %s585
        %s587 = sand.u32 %s586, 4294901760
        %s588 = scalar_select %p582, 2143289344, %s587
        %s590 = sshrl.u32 %s588, 16
        %s591 = sshll.u32 %s590, 16
        %s592 = sor.u32 %s590, %s591
        %v593 = vstv %s592
        %v595 = vadd.bf16 %v579, %v593
        %v596 = vmul.bf16 %v595, 1009007652
        %v597 = vmax.bf16 %v595, %v596
        %s598 = sld [smem:[#allocation6 + $0x80]]
        %p600 = scmp.ne.f32.partialorder %s598, %s598
        %s601 = sshrl.u32 %s598, 16
        %s602 = sand.u32 %s601, 1
        %s603 = sadd.s32 32767, %s602
        %s604 = sadd.s32 %s598, %s603
        %s605 = sand.u32 %s604, 4294901760
        %s606 = scalar_select %p600, 2143289344, %s605
        %s608 = sshrl.u32 %s606, 16
        %s609 = sshll.u32 %s608, 16
        %s610 = sor.u32 %s608, %s609
        %v611 = vstv %s610
        %v613 = vmul.bf16 %v597, %v611
        %v614 = vadd.bf16 %v547, %v613
        %s615 = sld [smem:[#allocation6 + $0x81]]
        %p617 = scmp.ne.f32.partialorder %s615, %s615
        %s618 = sshrl.u32 %s615, 16
        %s619 = sand.u32 %s618, 1
        %s620 = sadd.s32 32767, %s619
        %s621 = sadd.s32 %s615, %s620
        %s622 = sand.u32 %s621, 4294901760
        %s623 = scalar_select %p617, 2143289344, %s622
        %s625 = sshrl.u32 %s623, 16
        %s626 = sshll.u32 %s625, 16
        %s627 = sor.u32 %s625, %s626
        %v628 = vstv %s627
        %v630 = vmul.bf16 %v597, %v628
        %v631 = vadd.bf16 %v563, %v630
        %s632 = sld [smem:[#allocation2 + $0x2]]
        %p634 = scmp.ne.f32.partialorder %s632, %s632
        %s635 = sshrl.u32 %s632, 16
        %s636 = sand.u32 %s635, 1
        %s637 = sadd.s32 32767, %s636
        %s638 = sadd.s32 %s632, %s637
        %s639 = sand.u32 %s638, 4294901760
        %s640 = scalar_select %p634, 2143289344, %s639
        %s642 = sshrl.u32 %s640, 16
        %s643 = sshll.u32 %s642, 16
        %s644 = sor.u32 %s642, %s643
        %v645 = vstv %s644
        %v647 = vmul.bf16 %v473, %v645
        %s648 = sld [smem:[#allocation2 + $0x82]]
        %p650 = scmp.ne.f32.partialorder %s648, %s648
        %s651 = sshrl.u32 %s648, 16
        %s652 = sand.u32 %s651, 1
        %s653 = sadd.s32 32767, %s652
        %s654 = sadd.s32 %s648, %s653
        %s655 = sand.u32 %s654, 4294901760
        %s656 = scalar_select %p650, 2143289344, %s655
        %s658 = sshrl.u32 %s656, 16
        %s659 = sshll.u32 %s658, 16
        %s660 = sor.u32 %s658, %s659
        %v661 = vstv %s660
        %v663 = vadd.bf16 %v647, %v661
        %v664 = vmul.bf16 %v663, 1009007652
        %v665 = vmax.bf16 %v663, %v664
        %s666 = sld [smem:[#allocation6 + $0x100]]
        %p668 = scmp.ne.f32.partialorder %s666, %s666
        %s669 = sshrl.u32 %s666, 16
        %s670 = sand.u32 %s669, 1
        %s671 = sadd.s32 32767, %s670
        %s672 = sadd.s32 %s666, %s671
        %s673 = sand.u32 %s672, 4294901760
        %s674 = scalar_select %p668, 2143289344, %s673
        %s676 = sshrl.u32 %s674, 16
        %s677 = sshll.u32 %s676, 16
        %s678 = sor.u32 %s676, %s677
        %v679 = vstv %s678
        %v681 = vmul.bf16 %v665, %v679
        %v682 = vadd.bf16 %v614, %v681
        %s683 = sld [smem:[#allocation6 + $0x101]]
        %p685 = scmp.ne.f32.partialorder %s683, %s683
        %s686 = sshrl.u32 %s683, 16
        %s687 = sand.u32 %s686, 1
        %s688 = sadd.s32 32767, %s687
        %s689 = sadd.s32 %s683, %s688
        %s690 = sand.u32 %s689, 4294901760
        %s691 = scalar_select %p685, 2143289344, %s690
        %s693 = sshrl.u32 %s691, 16
        %s694 = sshll.u32 %s693, 16
        %s695 = sor.u32 %s693, %s694
        %v696 = vstv %s695
        %v698 = vmul.bf16 %v665, %v696
        %v699 = vadd.bf16 %v631, %v698
        %s700 = sld [smem:[#allocation2 + $0x3]]
        %p702 = scmp.ne.f32.partialorder %s700, %s700
        %s703 = sshrl.u32 %s700, 16
        %s704 = sand.u32 %s703, 1
        %s705 = sadd.s32 32767, %s704
        %s706 = sadd.s32 %s700, %s705
        %s707 = sand.u32 %s706, 4294901760
        %s708 = scalar_select %p702, 2143289344, %s707
        %s710 = sshrl.u32 %s708, 16
        %s711 = sshll.u32 %s710, 16
        %s712 = sor.u32 %s710, %s711
        %v713 = vstv %s712
        %v715 = vmul.bf16 %v473, %v713
        %s716 = sld [smem:[#allocation2 + $0x83]]
        %p718 = scmp.ne.f32.partialorder %s716, %s716
        %s719 = sshrl.u32 %s716, 16
        %s720 = sand.u32 %s719, 1
        %s721 = sadd.s32 32767, %s720
        %s722 = sadd.s32 %s716, %s721
        %s723 = sand.u32 %s722, 4294901760
        %s724 = scalar_select %p718, 2143289344, %s723
        %s726 = sshrl.u32 %s724, 16
        %s727 = sshll.u32 %s726, 16
        %s728 = sor.u32 %s726, %s727
        %v729 = vstv %s728
        %v731 = vadd.bf16 %v715, %v729
        %v732 = vmul.bf16 %v731, 1009007652
        %v733 = vmax.bf16 %v731, %v732
        %s734 = sld [smem:[#allocation6 + $0x180]]
        %p736 = scmp.ne.f32.partialorder %s734, %s734
        %s737 = sshrl.u32 %s734, 16
        %s738 = sand.u32 %s737, 1
        %s739 = sadd.s32 32767, %s738
        %s740 = sadd.s32 %s734, %s739
        %s741 = sand.u32 %s740, 4294901760
        %s742 = scalar_select %p736, 2143289344, %s741
        %s744 = sshrl.u32 %s742, 16
        %s745 = sshll.u32 %s744, 16
        %s746 = sor.u32 %s744, %s745
        %v747 = vstv %s746
        %v749 = vmul.bf16 %v733, %v747
        %v750 = vadd.bf16 %v682, %v749
        %s751 = sld [smem:[#allocation6 + $0x181]]
        %p753 = scmp.ne.f32.partialorder %s751, %s751
        %s754 = sshrl.u32 %s751, 16
        %s755 = sand.u32 %s754, 1
        %s756 = sadd.s32 32767, %s755
        %s757 = sadd.s32 %s751, %s756
        %s758 = sand.u32 %s757, 4294901760
        %s759 = scalar_select %p753, 2143289344, %s758
        %s761 = sshrl.u32 %s759, 16
        %s762 = sshll.u32 %s761, 16
        %s763 = sor.u32 %s761, %s762
        %v764 = vstv %s763
        %v766 = vmul.bf16 %v733, %v764
        %v767 = vadd.bf16 %v699, %v766
        %s768 = sld [smem:[#allocation2 + $0x4]]
        %p770 = scmp.ne.f32.partialorder %s768, %s768
        %s771 = sshrl.u32 %s768, 16
        %s772 = sand.u32 %s771, 1
        %s773 = sadd.s32 32767, %s772
        %s774 = sadd.s32 %s768, %s773
        %s775 = sand.u32 %s774, 4294901760
        %s776 = scalar_select %p770, 2143289344, %s775
        %s778 = sshrl.u32 %s776, 16
        %s779 = sshll.u32 %s778, 16
        %s780 = sor.u32 %s778, %s779
        %v781 = vstv %s780
        %v783 = vmul.bf16 %v473, %v781
        %s784 = sld [smem:[#allocation2 + $0x84]]
        %p786 = scmp.ne.f32.partialorder %s784, %s784
        %s787 = sshrl.u32 %s784, 16
        %s788 = sand.u32 %s787, 1
        %s789 = sadd.s32 32767, %s788
        %s790 = sadd.s32 %s784, %s789
        %s791 = sand.u32 %s790, 4294901760
        %s792 = scalar_select %p786, 2143289344, %s791
        %s794 = sshrl.u32 %s792, 16
        %s795 = sshll.u32 %s794, 16
        %s796 = sor.u32 %s794, %s795
        %v797 = vstv %s796
        %v799 = vadd.bf16 %v783, %v797
        %v800 = vmul.bf16 %v799, 1009007652
        %v801 = vmax.bf16 %v799, %v800
        %s802 = sld [smem:[#allocation6 + $0x200]]
        %p804 = scmp.ne.f32.partialorder %s802, %s802
        %s805 = sshrl.u32 %s802, 16
        %s806 = sand.u32 %s805, 1
        %s807 = sadd.s32 32767, %s806
        %s808 = sadd.s32 %s802, %s807
        %s809 = sand.u32 %s808, 4294901760
        %s810 = scalar_select %p804, 2143289344, %s809
        %s812 = sshrl.u32 %s810, 16
        %s813 = sshll.u32 %s812, 16
        %s814 = sor.u32 %s812, %s813
        %v815 = vstv %s814
        %v817 = vmul.bf16 %v801, %v815
        %v818 = vadd.bf16 %v750, %v817
        %s819 = sld [smem:[#allocation6 + $0x201]]
        %p821 = scmp.ne.f32.partialorder %s819, %s819
        %s822 = sshrl.u32 %s819, 16
        %s823 = sand.u32 %s822, 1
        %s824 = sadd.s32 32767, %s823
        %s825 = sadd.s32 %s819, %s824
        %s826 = sand.u32 %s825, 4294901760
        %s827 = scalar_select %p821, 2143289344, %s826
        %s829 = sshrl.u32 %s827, 16
        %s830 = sshll.u32 %s829, 16
        %s831 = sor.u32 %s829, %s830
        %v832 = vstv %s831
        %v834 = vmul.bf16 %v801, %v832
        %v835 = vadd.bf16 %v767, %v834
        %s836 = sld [smem:[#allocation2 + $0x5]]
        %p838 = scmp.ne.f32.partialorder %s836, %s836
        %s839 = sshrl.u32 %s836, 16
        %s840 = sand.u32 %s839, 1
        %s841 = sadd.s32 32767, %s840
        %s842 = sadd.s32 %s836, %s841
        %s843 = sand.u32 %s842, 4294901760
        %s844 = scalar_select %p838, 2143289344, %s843
        %s846 = sshrl.u32 %s844, 16
        %s847 = sshll.u32 %s846, 16
        %s848 = sor.u32 %s846, %s847
        %v849 = vstv %s848
        %v851 = vmul.bf16 %v473, %v849
        %s852 = sld [smem:[#allocation2 + $0x85]]
        %p854 = scmp.ne.f32.partialorder %s852, %s852
        %s855 = sshrl.u32 %s852, 16
        %s856 = sand.u32 %s855, 1
        %s857 = sadd.s32 32767, %s856
        %s858 = sadd.s32 %s852, %s857
        %s859 = sand.u32 %s858, 4294901760
        %s860 = scalar_select %p854, 2143289344, %s859
        %s862 = sshrl.u32 %s860, 16
        %s863 = sshll.u32 %s862, 16
        %s864 = sor.u32 %s862, %s863
        %v865 = vstv %s864
        %v867 = vadd.bf16 %v851, %v865
        %v868 = vmul.bf16 %v867, 1009007652
        %v869 = vmax.bf16 %v867, %v868
        %s870 = sld [smem:[#allocation6 + $0x280]]
        %p872 = scmp.ne.f32.partialorder %s870, %s870
        %s873 = sshrl.u32 %s870, 16
        %s874 = sand.u32 %s873, 1
        %s875 = sadd.s32 32767, %s874
        %s876 = sadd.s32 %s870, %s875
        %s877 = sand.u32 %s876, 4294901760
        %s878 = scalar_select %p872, 2143289344, %s877
        %s880 = sshrl.u32 %s878, 16
        %s881 = sshll.u32 %s880, 16
        %s882 = sor.u32 %s880, %s881
        %v883 = vstv %s882
        %v885 = vmul.bf16 %v869, %v883
        %v886 = vadd.bf16 %v818, %v885
        %s887 = sld [smem:[#allocation6 + $0x281]]
        %p889 = scmp.ne.f32.partialorder %s887, %s887
        %s890 = sshrl.u32 %s887, 16
        %s891 = sand.u32 %s890, 1
        %s892 = sadd.s32 32767, %s891
        %s893 = sadd.s32 %s887, %s892
        %s894 = sand.u32 %s893, 4294901760
        %s895 = scalar_select %p889, 2143289344, %s894
        %s897 = sshrl.u32 %s895, 16
        %s898 = sshll.u32 %s897, 16
        %s899 = sor.u32 %s897, %s898
        %v900 = vstv %s899
        %v902 = vmul.bf16 %v869, %v900
        %v903 = vadd.bf16 %v835, %v902
        %s904 = sld [smem:[#allocation2 + $0x6]]
        %p906 = scmp.ne.f32.partialorder %s904, %s904
        %s907 = sshrl.u32 %s904, 16
        %s908 = sand.u32 %s907, 1
        %s909 = sadd.s32 32767, %s908
        %s910 = sadd.s32 %s904, %s909
        %s911 = sand.u32 %s910, 4294901760
        %s912 = scalar_select %p906, 2143289344, %s911
        %s914 = sshrl.u32 %s912, 16
        %s915 = sshll.u32 %s914, 16
        %s916 = sor.u32 %s914, %s915
        %v917 = vstv %s916
        %v919 = vmul.bf16 %v473, %v917
        %s920 = sld [smem:[#allocation2 + $0x86]]
        %p922 = scmp.ne.f32.partialorder %s920, %s920
        %s923 = sshrl.u32 %s920, 16
        %s924 = sand.u32 %s923, 1
        %s925 = sadd.s32 32767, %s924
        %s926 = sadd.s32 %s920, %s925
        %s927 = sand.u32 %s926, 4294901760
        %s928 = scalar_select %p922, 2143289344, %s927
        %s930 = sshrl.u32 %s928, 16
        %s931 = sshll.u32 %s930, 16
        %s932 = sor.u32 %s930, %s931
        %v933 = vstv %s932
        %v935 = vadd.bf16 %v919, %v933
        %v936 = vmul.bf16 %v935, 1009007652
        %v937 = vmax.bf16 %v935, %v936
        %s938 = sld [smem:[#allocation6 + $0x300]]
        %p940 = scmp.ne.f32.partialorder %s938, %s938
        %s941 = sshrl.u32 %s938, 16
        %s942 = sand.u32 %s941, 1
        %s943 = sadd.s32 32767, %s942
        %s944 = sadd.s32 %s938, %s943
        %s945 = sand.u32 %s944, 4294901760
        %s946 = scalar_select %p940, 2143289344, %s945
        %s948 = sshrl.u32 %s946, 16
        %s949 = sshll.u32 %s948, 16
        %s950 = sor.u32 %s948, %s949
        %v951 = vstv %s950
        %v953 = vmul.bf16 %v937, %v951
        %v954 = vadd.bf16 %v886, %v953
        %s955 = sld [smem:[#allocation6 + $0x301]]
        %p957 = scmp.ne.f32.partialorder %s955, %s955
        %s958 = sshrl.u32 %s955, 16
        %s959 = sand.u32 %s958, 1
        %s960 = sadd.s32 32767, %s959
        %s961 = sadd.s32 %s955, %s960
        %s962 = sand.u32 %s961, 4294901760
        %s963 = scalar_select %p957, 2143289344, %s962
        %s965 = sshrl.u32 %s963, 16
        %s966 = sshll.u32 %s965, 16
        %s967 = sor.u32 %s965, %s966
        %v968 = vstv %s967
        %v970 = vmul.bf16 %v937, %v968
        %v971 = vadd.bf16 %v903, %v970
        %s972 = sld [smem:[#allocation2 + $0x7]]
        %p974 = scmp.ne.f32.partialorder %s972, %s972
        %s975 = sshrl.u32 %s972, 16
        %s976 = sand.u32 %s975, 1
        %s977 = sadd.s32 32767, %s976
        %s978 = sadd.s32 %s972, %s977
        %s979 = sand.u32 %s978, 4294901760
        %s980 = scalar_select %p974, 2143289344, %s979
        %s982 = sshrl.u32 %s980, 16
        %s983 = sshll.u32 %s982, 16
        %s984 = sor.u32 %s982, %s983
        %v985 = vstv %s984
        %v987 = vmul.bf16 %v473, %v985
        %s988 = sld [smem:[#allocation2 + $0x87]]
        %p990 = scmp.ne.f32.partialorder %s988, %s988
        %s991 = sshrl.u32 %s988, 16
        %s992 = sand.u32 %s991, 1
        %s993 = sadd.s32 32767, %s992
        %s994 = sadd.s32 %s988, %s993
        %s995 = sand.u32 %s994, 4294901760
        %s996 = scalar_select %p990, 2143289344, %s995
        %s998 = sshrl.u32 %s996, 16
        %s999 = sshll.u32 %s998, 16
        %s1000 = sor.u32 %s998, %s999
        %v1001 = vstv %s1000
        %v1003 = vadd.bf16 %v987, %v1001
        %v1004 = vmul.bf16 %v1003, 1009007652
        %v1005 = vmax.bf16 %v1003, %v1004
        %s1006 = sld [smem:[#allocation6 + $0x380]]
        %p1008 = scmp.ne.f32.partialorder %s1006, %s1006
        %s1009 = sshrl.u32 %s1006, 16
        %s1010 = sand.u32 %s1009, 1
        %s1011 = sadd.s32 32767, %s1010
        %s1012 = sadd.s32 %s1006, %s1011
        %s1013 = sand.u32 %s1012, 4294901760
        %s1014 = scalar_select %p1008, 2143289344, %s1013
        %s1016 = sshrl.u32 %s1014, 16
        %s1017 = sshll.u32 %s1016, 16
        %s1018 = sor.u32 %s1016, %s1017
        %v1019 = vstv %s1018
        %v1021 = vmul.bf16 %v1005, %v1019
        %v1022 = vadd.bf16 %v954, %v1021
        %s1023 = sld [smem:[#allocation6 + $0x381]]
        %p1025 = scmp.ne.f32.partialorder %s1023, %s1023
        %s1026 = sshrl.u32 %s1023, 16
        %s1027 = sand.u32 %s1026, 1
        %s1028 = sadd.s32 32767, %s1027
        %s1029 = sadd.s32 %s1023, %s1028
        %s1030 = sand.u32 %s1029, 4294901760
        %s1031 = scalar_select %p1025, 2143289344, %s1030
        %s1033 = sshrl.u32 %s1031, 16
        %s1034 = sshll.u32 %s1033, 16
        %s1035 = sor.u32 %s1033, %s1034
        %v1036 = vstv %s1035
        %v1038 = vmul.bf16 %v1005, %v1036
        %v1039 = vadd.bf16 %v971, %v1038
        %s1040 = sld [smem:[#allocation6 + $0x400]]
        %p1042 = scmp.ne.f32.partialorder %s1040, %s1040
        %s1043 = sshrl.u32 %s1040, 16
        %s1044 = sand.u32 %s1043, 1
        %s1045 = sadd.s32 32767, %s1044
        %s1046 = sadd.s32 %s1040, %s1045
        %s1047 = sand.u32 %s1046, 4294901760
        %s1048 = scalar_select %p1042, 2143289344, %s1047
        %s1050 = sshrl.u32 %s1048, 16
        %s1051 = sshll.u32 %s1050, 16
        %s1052 = sor.u32 %s1050, %s1051
        %v1053 = vstv %s1052
        %v1055 = vadd.bf16 %v1022, %v1053
        %s1056 = sld [smem:[#allocation6 + $0x401]]
        %p1058 = scmp.ne.f32.partialorder %s1056, %s1056
        %s1059 = sshrl.u32 %s1056, 16
        %s1060 = sand.u32 %s1059, 1
        %s1061 = sadd.s32 32767, %s1060
        %s1062 = sadd.s32 %s1056, %s1061
        %s1063 = sand.u32 %s1062, 4294901760
        %s1064 = scalar_select %p1058, 2143289344, %s1063
        %s1066 = sshrl.u32 %s1064, 16
        %s1067 = sshll.u32 %s1066, 16
        %s1068 = sor.u32 %s1066, %s1067
        %v1069 = vstv %s1068
        %v1071 = vadd.bf16 %v1039, %v1069
        %v1072 = vsub.bf16 %v1055, %v1071
        %v1073 = vunpack.c.l.bf16 %v1072
        %v1074 = vmul.f32 %v1073, 1.442695
        %v1075 = vpow.pop %v1074
        %v1076 = vadd.f32 %v1075, 1.0
        %v1077 = vrcp.pop %v1076
        %v1078 = vpack.c.bf16 %v1077, %v1077
        %v1079 = vsub.bf16 1065369472, %v1078
        %vm1080 = vmpackc.low %vm497, %vm497
        %v1081 = vsel %vm1080, %v1079, 0
        %v1082 = vsel %vm1080, %v1078, 0
        %v1083 = vld [vmem:[%s3] sm:$0xf]
        %v1084 = vld [vmem:[%s3 + $0x4] sm:$0xf]
        %v1087 = vunpack.c.l.b16 %v1083
        %v1088 = vunpack.c.l.b16 %v1084
        %v1089 = vpack.c.b16 %v1088, %v1087
        %vm1091 = vcmask 130048
        %v1093 = vsel %vm1091, %v1081, 0
        %1095 = vmatprep.subr.bf16.mxu0 0
        %1096 = vmatpush1.bf16.msra.mxu0 %v1089
        %1097 = vmatprep.subr.bf16.mxu0 0
        %1098 = vmatpush1.bf16.msra.mxu0 0
        %1099 = vmatprep.subr.bf16.mxu0 0
        %1100 = vmatpush1.bf16.msra.mxu0 0
        %1101 = vmatprep.subr.bf16.mxu0 0
        %1102 = vmatpush1.bf16.msra.mxu0 0
        %1103 = vmatprep.subr.bf16.mxu0 0
        %1104 = vmatpush1.bf16.msra.mxu0 0
        %1105 = vmatprep.subr.bf16.mxu0 0
        %1106 = vmatpush1.bf16.msra.mxu0 0
        %1107 = vmatprep.subr.bf16.mxu0 0
        %1108 = vmatpush1.bf16.msra.mxu0 0
        %1109 = vmatprep.subr.bf16.mxu0 0
        %1110 = vmatpush1.bf16.msra.mxu0 0
        %1111 = vmatprep.subr.bf16.mxu0 0
        %1112 = vmatpush1.bf16.msra.mxu0 0
        %1113 = vmatprep.subr.bf16.mxu0 0
        %1114 = vmatpush1.bf16.msra.mxu0 0
        %1115 = vmatprep.subr.bf16.mxu0 0
        %1116 = vmatpush1.bf16.msra.mxu0 0
        %1117 = vmatprep.subr.bf16.mxu0 0
        %1118 = vmatpush1.bf16.msra.mxu0 0
        %1119 = vmatprep.subr.bf16.mxu0 0
        %1120 = vmatpush1.bf16.msra.mxu0 0
        %1121 = vmatprep.subr.bf16.mxu0 0
        %1122 = vmatpush1.bf16.msra.mxu0 0
        %1123 = vmatprep.subr.bf16.mxu0 0
        %1124 = vmatpush1.bf16.msra.mxu0 0
        %1125 = vmatprep.subr.bf16.mxu0 0
        %1126 = vmatpush1.bf16.msra.mxu0 0
        %1127 = vmatprep.mubr.bf16.mxu0 0
        %1128 = vmatmul.mubr.bf16.gmra.mrb[0].mxu0 %v1093
        %v1129 = vpop.f32.mrb[0].mxu0
        %v1130 = vadd.f32 0.0, %v1129
        %v1131 = vpop.f32.mrb[0].mxu0
        %v1132 = vpop.f32.mrb[0].mxu0
        %v1133 = vpop.f32.mrb[0].mxu0
        %1134 = vdwg.mxu0
        %v1136 = vsel %vm1091, %v1082, 0
        %1138 = vmatprep.subr.bf16.mxu0 0
        %1139 = vmatpush1.bf16.msra.mxu0 %v1089
        %1140 = vmatprep.subr.bf16.mxu0 0
        %1141 = vmatpush1.bf16.msra.mxu0 0
        %1142 = vmatprep.subr.bf16.mxu0 0
        %1143 = vmatpush1.bf16.msra.mxu0 0
        %1144 = vmatprep.subr.bf16.mxu0 0
        %1145 = vmatpush1.bf16.msra.mxu0 0
        %1146 = vmatprep.subr.bf16.mxu0 0
        %1147 = vmatpush1.bf16.msra.mxu0 0
        %1148 = vmatprep.subr.bf16.mxu0 0
        %1149 = vmatpush1.bf16.msra.mxu0 0
        %1150 = vmatprep.subr.bf16.mxu0 0
        %1151 = vmatpush1.bf16.msra.mxu0 0
        %1152 = vmatprep.subr.bf16.mxu0 0
        %1153 = vmatpush1.bf16.msra.mxu0 0
        %1154 = vmatprep.subr.bf16.mxu0 0
        %1155 = vmatpush1.bf16.msra.mxu0 0
        %1156 = vmatprep.subr.bf16.mxu0 0
        %1157 = vmatpush1.bf16.msra.mxu0 0
        %1158 = vmatprep.subr.bf16.mxu0 0
        %1159 = vmatpush1.bf16.msra.mxu0 0
        %1160 = vmatprep.subr.bf16.mxu0 0
        %1161 = vmatpush1.bf16.msra.mxu0 0
        %1162 = vmatprep.subr.bf16.mxu0 0
        %1163 = vmatpush1.bf16.msra.mxu0 0
        %1164 = vmatprep.subr.bf16.mxu0 0
        %1165 = vmatpush1.bf16.msra.mxu0 0
        %1166 = vmatprep.subr.bf16.mxu0 0
        %1167 = vmatpush1.bf16.msra.mxu0 0
        %1168 = vmatprep.subr.bf16.mxu0 0
        %1169 = vmatpush1.bf16.msra.mxu0 0
        %1170 = vmatprep.mubr.bf16.mxu0 0
        %1171 = vmatmul.mubr.bf16.gmra.mrb[0].mxu0 %v1136
        %v1172 = vpop.f32.mrb[0].mxu0
        %v1173 = vadd.f32 0.0, %v1172
        %v1174 = vpop.f32.mrb[0].mxu0
        %v1175 = vpop.f32.mrb[0].mxu0
        %v1176 = vpop.f32.mrb[0].mxu0
        %1177 = vdwg.mxu0
        %s1178 = sld [smem:[#allocation4]]
        %p1180 = scmp.ne.f32.partialorder %s1178, %s1178
        %s1181 = sshrl.u32 %s1178, 16
        %s1182 = sand.u32 %s1181, 1
        %s1183 = sadd.s32 32767, %s1182
        %s1184 = sadd.s32 %s1178, %s1183
        %s1185 = sand.u32 %s1184, 4294901760
        %s1186 = scalar_select %p1180, 2143289344, %s1185
        %s1188 = sshrl.u32 %s1186, 16
        %s1189 = sshll.u32 %s1188, 16
        %s1190 = sor.u32 %s1188, %s1189
        %v1191 = vstv %s1190
        %v1193 = vmul.bf16 %v473, %v1191
        %s1194 = sld [smem:[#allocation4 + $0x80]]
        %p1196 = scmp.ne.f32.partialorder %s1194, %s1194
        %s1197 = sshrl.u32 %s1194, 16
        %s1198 = sand.u32 %s1197, 1
        %s1199 = sadd.s32 32767, %s1198
        %s1200 = sadd.s32 %s1194, %s1199
        %s1201 = sand.u32 %s1200, 4294901760
        %s1202 = scalar_select %p1196, 2143289344, %s1201
        %s1204 = sshrl.u32 %s1202, 16
        %s1205 = sshll.u32 %s1204, 16
        %s1206 = sor.u32 %s1204, %s1205
        %v1207 = vstv %s1206
        %v1209 = vadd.bf16 %v1193, %v1207
        %v1210 = vmul.bf16 %v1209, 1009007652
        %v1211 = vmax.bf16 %v1209, %v1210
        %v1212 = vmul.bf16 %v1081, %v1211
        %v1213 = vunpack.c.l.bf16 %v1212
        %v1214 = vsel %vm1091, %v1213, 0.0
        %1215 = vadd.xlane.f32.xlu0 %v1214
        %v1216 = vpop.xlane.xlu0 %1215
        %v1217 = vpack.c.bf16 %v1216, %v1216
        %v1218 = vmul.bf16 %v1082, %v1211
        %v1219 = vunpack.c.l.bf16 %v1218
        %v1220 = vsel %vm1091, %v1219, 0.0
        %1221 = vadd.xlane.f32.xlu0 %v1220
        %v1222 = vpop.xlane.xlu0 %1221
        %v1223 = vpack.c.bf16 %v1222, %v1222
        %s1224 = sld [smem:[#allocation4 + $0x1]]
        %p1226 = scmp.ne.f32.partialorder %s1224, %s1224
        %s1227 = sshrl.u32 %s1224, 16
        %s1228 = sand.u32 %s1227, 1
        %s1229 = sadd.s32 32767, %s1228
        %s1230 = sadd.s32 %s1224, %s1229
        %s1231 = sand.u32 %s1230, 4294901760
        %s1232 = scalar_select %p1226, 2143289344, %s1231
        %s1234 = sshrl.u32 %s1232, 16
        %s1235 = sshll.u32 %s1234, 16
        %s1236 = sor.u32 %s1234, %s1235
        %v1237 = vstv %s1236
        %v1239 = vmul.bf16 %v473, %v1237
        %s1240 = sld [smem:[#allocation4 + $0x81]]
        %p1242 = scmp.ne.f32.partialorder %s1240, %s1240
        %s1243 = sshrl.u32 %s1240, 16
        %s1244 = sand.u32 %s1243, 1
        %s1245 = sadd.s32 32767, %s1244
        %s1246 = sadd.s32 %s1240, %s1245
        %s1247 = sand.u32 %s1246, 4294901760
        %s1248 = scalar_select %p1242, 2143289344, %s1247
        %s1250 = sshrl.u32 %s1248, 16
        %s1251 = sshll.u32 %s1250, 16
        %s1252 = sor.u32 %s1250, %s1251
        %v1253 = vstv %s1252
        %v1255 = vadd.bf16 %v1239, %v1253
        %v1256 = vmul.bf16 %v1255, 1009007652
        %v1257 = vmax.bf16 %v1255, %v1256
        %v1258 = vmul.bf16 %v1081, %v1257
        %v1259 = vunpack.c.l.bf16 %v1258
        %v1260 = vsel %vm1091, %v1259, 0.0
        %1261 = vadd.xlane.f32.xlu0 %v1260
        %v1262 = vpop.xlane.xlu0 %1261
        %v1263 = vpack.c.bf16 %v1262, %v1262
        %v1264 = vmul.bf16 %v1082, %v1257
        %v1265 = vunpack.c.l.bf16 %v1264
        %v1266 = vsel %vm1091, %v1265, 0.0
        %1267 = vadd.xlane.f32.xlu0 %v1266
        %v1268 = vpop.xlane.xlu0 %1267
        %v1269 = vpack.c.bf16 %v1268, %v1268
        %s1270 = sld [smem:[#allocation4 + $0x2]]
        %p1272 = scmp.ne.f32.partialorder %s1270, %s1270
        %s1273 = sshrl.u32 %s1270, 16
        %s1274 = sand.u32 %s1273, 1
        %s1275 = sadd.s32 32767, %s1274
        %s1276 = sadd.s32 %s1270, %s1275
        %s1277 = sand.u32 %s1276, 4294901760
        %s1278 = scalar_select %p1272, 2143289344, %s1277
        %s1280 = sshrl.u32 %s1278, 16
        %s1281 = sshll.u32 %s1280, 16
        %s1282 = sor.u32 %s1280, %s1281
        %v1283 = vstv %s1282
        %v1285 = vmul.bf16 %v473, %v1283
        %s1286 = sld [smem:[#allocation4 + $0x82]]
        %p1288 = scmp.ne.f32.partialorder %s1286, %s1286
        %s1289 = sshrl.u32 %s1286, 16
        %s1290 = sand.u32 %s1289, 1
        %s1291 = sadd.s32 32767, %s1290
        %s1292 = sadd.s32 %s1286, %s1291
        %s1293 = sand.u32 %s1292, 4294901760
        %s1294 = scalar_select %p1288, 2143289344, %s1293
        %s1296 = sshrl.u32 %s1294, 16
        %s1297 = sshll.u32 %s1296, 16
        %s1298 = sor.u32 %s1296, %s1297
        %v1299 = vstv %s1298
        %v1301 = vadd.bf16 %v1285, %v1299
        %v1302 = vmul.bf16 %v1301, 1009007652
        %v1303 = vmax.bf16 %v1301, %v1302
        %v1304 = vmul.bf16 %v1081, %v1303
        %v1305 = vunpack.c.l.bf16 %v1304
        %v1306 = vsel %vm1091, %v1305, 0.0
        %1307 = vadd.xlane.f32.xlu0 %v1306
        %v1308 = vpop.xlane.xlu0 %1307
        %v1309 = vpack.c.bf16 %v1308, %v1308
        %v1310 = vmul.bf16 %v1082, %v1303
        %v1311 = vunpack.c.l.bf16 %v1310
        %v1312 = vsel %vm1091, %v1311, 0.0
        %1313 = vadd.xlane.f32.xlu0 %v1312
        %v1314 = vpop.xlane.xlu0 %1313
        %v1315 = vpack.c.bf16 %v1314, %v1314
        %s1316 = sld [smem:[#allocation4 + $0x3]]
        %p1318 = scmp.ne.f32.partialorder %s1316, %s1316
        %s1319 = sshrl.u32 %s1316, 16
        %s1320 = sand.u32 %s1319, 1
        %s1321 = sadd.s32 32767, %s1320
        %s1322 = sadd.s32 %s1316, %s1321
        %s1323 = sand.u32 %s1322, 4294901760
        %s1324 = scalar_select %p1318, 2143289344, %s1323
        %s1326 = sshrl.u32 %s1324, 16
        %s1327 = sshll.u32 %s1326, 16
        %s1328 = sor.u32 %s1326, %s1327
        %v1329 = vstv %s1328
        %v1331 = vmul.bf16 %v473, %v1329
        %s1332 = sld [smem:[#allocation4 + $0x83]]
        %p1334 = scmp.ne.f32.partialorder %s1332, %s1332
        %s1335 = sshrl.u32 %s1332, 16
        %s1336 = sand.u32 %s1335, 1
        %s1337 = sadd.s32 32767, %s1336
        %s1338 = sadd.s32 %s1332, %s1337
        %s1339 = sand.u32 %s1338, 4294901760
        %s1340 = scalar_select %p1334, 2143289344, %s1339
        %s1342 = sshrl.u32 %s1340, 16
        %s1343 = sshll.u32 %s1342, 16
        %s1344 = sor.u32 %s1342, %s1343
        %v1345 = vstv %s1344
        %v1347 = vadd.bf16 %v1331, %v1345
        %v1348 = vmul.bf16 %v1347, 1009007652
        %v1349 = vmax.bf16 %v1347, %v1348
        %v1350 = vmul.bf16 %v1081, %v1349
        %v1351 = vunpack.c.l.bf16 %v1350
        %v1352 = vsel %vm1091, %v1351, 0.0
        %1353 = vadd.xlane.f32.xlu0 %v1352
        %v1354 = vpop.xlane.xlu0 %1353
        %v1355 = vpack.c.bf16 %v1354, %v1354
        %v1356 = vmul.bf16 %v1082, %v1349
        %v1357 = vunpack.c.l.bf16 %v1356
        %v1358 = vsel %vm1091, %v1357, 0.0
        %1359 = vadd.xlane.f32.xlu0 %v1358
        %v1360 = vpop.xlane.xlu0 %1359
        %v1361 = vpack.c.bf16 %v1360, %v1360
        %s1362 = sld [smem:[#allocation4 + $0x4]]
        %p1364 = scmp.ne.f32.partialorder %s1362, %s1362
        %s1365 = sshrl.u32 %s1362, 16
        %s1366 = sand.u32 %s1365, 1
        %s1367 = sadd.s32 32767, %s1366
        %s1368 = sadd.s32 %s1362, %s1367
        %s1369 = sand.u32 %s1368, 4294901760
        %s1370 = scalar_select %p1364, 2143289344, %s1369
        %s1372 = sshrl.u32 %s1370, 16
        %s1373 = sshll.u32 %s1372, 16
        %s1374 = sor.u32 %s1372, %s1373
        %v1375 = vstv %s1374
        %v1377 = vmul.bf16 %v473, %v1375
        %s1378 = sld [smem:[#allocation4 + $0x84]]
        %p1380 = scmp.ne.f32.partialorder %s1378, %s1378
        %s1381 = sshrl.u32 %s1378, 16
        %s1382 = sand.u32 %s1381, 1
        %s1383 = sadd.s32 32767, %s1382
        %s1384 = sadd.s32 %s1378, %s1383
        %s1385 = sand.u32 %s1384, 4294901760
        %s1386 = scalar_select %p1380, 2143289344, %s1385
        %s1388 = sshrl.u32 %s1386, 16
        %s1389 = sshll.u32 %s1388, 16
        %s1390 = sor.u32 %s1388, %s1389
        %v1391 = vstv %s1390
        %v1393 = vadd.bf16 %v1377, %v1391
        %v1394 = vmul.bf16 %v1393, 1009007652
        %v1395 = vmax.bf16 %v1393, %v1394
        %v1396 = vmul.bf16 %v1081, %v1395
        %v1397 = vunpack.c.l.bf16 %v1396
        %v1398 = vsel %vm1091, %v1397, 0.0
        %1399 = vadd.xlane.f32.xlu0 %v1398
        %v1400 = vpop.xlane.xlu0 %1399
        %v1401 = vpack.c.bf16 %v1400, %v1400
        %v1402 = vmul.bf16 %v1082, %v1395
        %v1403 = vunpack.c.l.bf16 %v1402
        %v1404 = vsel %vm1091, %v1403, 0.0
        %1405 = vadd.xlane.f32.xlu0 %v1404
        %v1406 = vpop.xlane.xlu0 %1405
        %v1407 = vpack.c.bf16 %v1406, %v1406
        %s1408 = sld [smem:[#allocation4 + $0x5]]
        %p1410 = scmp.ne.f32.partialorder %s1408, %s1408
        %s1411 = sshrl.u32 %s1408, 16
        %s1412 = sand.u32 %s1411, 1
        %s1413 = sadd.s32 32767, %s1412
        %s1414 = sadd.s32 %s1408, %s1413
        %s1415 = sand.u32 %s1414, 4294901760
        %s1416 = scalar_select %p1410, 2143289344, %s1415
        %s1418 = sshrl.u32 %s1416, 16
        %s1419 = sshll.u32 %s1418, 16
        %s1420 = sor.u32 %s1418, %s1419
        %v1421 = vstv %s1420
        %v1423 = vmul.bf16 %v473, %v1421
        %s1424 = sld [smem:[#allocation4 + $0x85]]
        %p1426 = scmp.ne.f32.partialorder %s1424, %s1424
        %s1427 = sshrl.u32 %s1424, 16
        %s1428 = sand.u32 %s1427, 1
        %s1429 = sadd.s32 32767, %s1428
        %s1430 = sadd.s32 %s1424, %s1429
        %s1431 = sand.u32 %s1430, 4294901760
        %s1432 = scalar_select %p1426, 2143289344, %s1431
        %s1434 = sshrl.u32 %s1432, 16
        %s1435 = sshll.u32 %s1434, 16
        %s1436 = sor.u32 %s1434, %s1435
        %v1437 = vstv %s1436
        %v1439 = vadd.bf16 %v1423, %v1437
        %v1440 = vmul.bf16 %v1439, 1009007652
        %v1441 = vmax.bf16 %v1439, %v1440
        %v1442 = vmul.bf16 %v1081, %v1441
        %v1443 = vunpack.c.l.bf16 %v1442
        %v1444 = vsel %vm1091, %v1443, 0.0
        %1445 = vadd.xlane.f32.xlu0 %v1444
        %v1446 = vpop.xlane.xlu0 %1445
        %v1447 = vpack.c.bf16 %v1446, %v1446
        %v1448 = vmul.bf16 %v1082, %v1441
        %v1449 = vunpack.c.l.bf16 %v1448
        %v1450 = vsel %vm1091, %v1449, 0.0
        %1451 = vadd.xlane.f32.xlu0 %v1450
        %v1452 = vpop.xlane.xlu0 %1451
        %v1453 = vpack.c.bf16 %v1452, %v1452
        %s1454 = sld [smem:[#allocation4 + $0x6]]
        %p1456 = scmp.ne.f32.partialorder %s1454, %s1454
        %s1457 = sshrl.u32 %s1454, 16
        %s1458 = sand.u32 %s1457, 1
        %s1459 = sadd.s32 32767, %s1458
        %s1460 = sadd.s32 %s1454, %s1459
        %s1461 = sand.u32 %s1460, 4294901760
        %s1462 = scalar_select %p1456, 2143289344, %s1461
        %s1464 = sshrl.u32 %s1462, 16
        %s1465 = sshll.u32 %s1464, 16
        %s1466 = sor.u32 %s1464, %s1465
        %v1467 = vstv %s1466
        %v1469 = vmul.bf16 %v473, %v1467
        %s1470 = sld [smem:[#allocation4 + $0x86]]
        %p1472 = scmp.ne.f32.partialorder %s1470, %s1470
        %s1473 = sshrl.u32 %s1470, 16
        %s1474 = sand.u32 %s1473, 1
        %s1475 = sadd.s32 32767, %s1474
        %s1476 = sadd.s32 %s1470, %s1475
        %s1477 = sand.u32 %s1476, 4294901760
        %s1478 = scalar_select %p1472, 2143289344, %s1477
        %s1480 = sshrl.u32 %s1478, 16
        %s1481 = sshll.u32 %s1480, 16
        %s1482 = sor.u32 %s1480, %s1481
        %v1483 = vstv %s1482
        %v1485 = vadd.bf16 %v1469, %v1483
        %v1486 = vmul.bf16 %v1485, 1009007652
        %v1487 = vmax.bf16 %v1485, %v1486
        %v1488 = vmul.bf16 %v1081, %v1487
        %v1489 = vunpack.c.l.bf16 %v1488
        %v1490 = vsel %vm1091, %v1489, 0.0
        %1491 = vadd.xlane.f32.xlu0 %v1490
        %v1492 = vpop.xlane.xlu0 %1491
        %v1493 = vpack.c.bf16 %v1492, %v1492
        %v1494 = vmul.bf16 %v1082, %v1487
        %v1495 = vunpack.c.l.bf16 %v1494
        %v1496 = vsel %vm1091, %v1495, 0.0
        %1497 = vadd.xlane.f32.xlu0 %v1496
        %v1498 = vpop.xlane.xlu0 %1497
        %v1499 = vpack.c.bf16 %v1498, %v1498
        %s1500 = sld [smem:[#allocation4 + $0x7]]
        %p1502 = scmp.ne.f32.partialorder %s1500, %s1500
        %s1503 = sshrl.u32 %s1500, 16
        %s1504 = sand.u32 %s1503, 1
        %s1505 = sadd.s32 32767, %s1504
        %s1506 = sadd.s32 %s1500, %s1505
        %s1507 = sand.u32 %s1506, 4294901760
        %s1508 = scalar_select %p1502, 2143289344, %s1507
        %s1510 = sshrl.u32 %s1508, 16
        %s1511 = sshll.u32 %s1510, 16
        %s1512 = sor.u32 %s1510, %s1511
        %v1513 = vstv %s1512
        %v1515 = vmul.bf16 %v473, %v1513
        %s1516 = sld [smem:[#allocation4 + $0x87]]
        %p1518 = scmp.ne.f32.partialorder %s1516, %s1516
        %s1519 = sshrl.u32 %s1516, 16
        %s1520 = sand.u32 %s1519, 1
        %s1521 = sadd.s32 32767, %s1520
        %s1522 = sadd.s32 %s1516, %s1521
        %s1523 = sand.u32 %s1522, 4294901760
        %s1524 = scalar_select %p1518, 2143289344, %s1523
        %s1526 = sshrl.u32 %s1524, 16
        %s1527 = sshll.u32 %s1526, 16
        %s1528 = sor.u32 %s1526, %s1527
        %v1529 = vstv %s1528
        %v1531 = vadd.bf16 %v1515, %v1529
        %v1532 = vmul.bf16 %v1531, 1009007652
        %v1533 = vmax.bf16 %v1531, %v1532
        %v1534 = vmul.bf16 %v1081, %v1533
        %v1535 = vunpack.c.l.bf16 %v1534
        %v1536 = vsel %vm1091, %v1535, 0.0
        %1537 = vadd.xlane.f32.xlu0 %v1536
        %v1538 = vpop.xlane.xlu0 %1537
        %v1539 = vpack.c.bf16 %v1538, %v1538
        %v1540 = vmul.bf16 %v1082, %v1533
        %v1541 = vunpack.c.l.bf16 %v1540
        %v1542 = vsel %vm1091, %v1541, 0.0
        %1543 = vadd.xlane.f32.xlu0 %v1542
        %v1544 = vpop.xlane.xlu0 %1543
        %v1545 = vpack.c.bf16 %v1544, %v1544
        %s1546 = sld [smem:[#allocation4 + $0x8]]
        %p1548 = scmp.ne.f32.partialorder %s1546, %s1546
        %s1549 = sshrl.u32 %s1546, 16
        %s1550 = sand.u32 %s1549, 1
        %s1551 = sadd.s32 32767, %s1550
        %s1552 = sadd.s32 %s1546, %s1551
        %s1553 = sand.u32 %s1552, 4294901760
        %s1554 = scalar_select %p1548, 2143289344, %s1553
        %s1556 = sshrl.u32 %s1554, 16
        %s1557 = sshll.u32 %s1556, 16
        %s1558 = sor.u32 %s1556, %s1557
        %v1559 = vstv %s1558
        %v1561 = vmul.bf16 %v473, %v1559
        %s1562 = sld [smem:[#allocation4 + $0x88]]
        %p1564 = scmp.ne.f32.partialorder %s1562, %s1562
        %s1565 = sshrl.u32 %s1562, 16
        %s1566 = sand.u32 %s1565, 1
        %s1567 = sadd.s32 32767, %s1566
        %s1568 = sadd.s32 %s1562, %s1567
        %s1569 = sand.u32 %s1568, 4294901760
        %s1570 = scalar_select %p1564, 2143289344, %s1569
        %s1572 = sshrl.u32 %s1570, 16
        %s1573 = sshll.u32 %s1572, 16
        %s1574 = sor.u32 %s1572, %s1573
        %v1575 = vstv %s1574
        %v1577 = vadd.bf16 %v1561, %v1575
        %v1578 = vmul.bf16 %v1577, 1009007652
        %v1579 = vmax.bf16 %v1577, %v1578
        %v1580 = vmul.bf16 %v1081, %v1579
        %v1581 = vunpack.c.l.bf16 %v1580
        %v1582 = vsel %vm1091, %v1581, 0.0
        %1583 = vadd.xlane.f32.xlu0 %v1582
        %v1584 = vpop.xlane.xlu0 %1583
        %v1585 = vpack.c.bf16 %v1584, %v1584
        %v1586 = vmul.bf16 %v1082, %v1579
        %v1587 = vunpack.c.l.bf16 %v1586
        %v1588 = vsel %vm1091, %v1587, 0.0
        %1589 = vadd.xlane.f32.xlu0 %v1588
        %v1590 = vpop.xlane.xlu0 %1589
        %v1591 = vpack.c.bf16 %v1590, %v1590
        %s1592 = sld [smem:[#allocation4 + $0x9]]
        %p1594 = scmp.ne.f32.partialorder %s1592, %s1592
        %s1595 = sshrl.u32 %s1592, 16
        %s1596 = sand.u32 %s1595, 1
        %s1597 = sadd.s32 32767, %s1596
        %s1598 = sadd.s32 %s1592, %s1597
        %s1599 = sand.u32 %s1598, 4294901760
        %s1600 = scalar_select %p1594, 2143289344, %s1599
        %s1602 = sshrl.u32 %s1600, 16
        %s1603 = sshll.u32 %s1602, 16
        %s1604 = sor.u32 %s1602, %s1603
        %v1605 = vstv %s1604
        %v1607 = vmul.bf16 %v473, %v1605
        %s1608 = sld [smem:[#allocation4 + $0x89]]
        %p1610 = scmp.ne.f32.partialorder %s1608, %s1608
        %s1611 = sshrl.u32 %s1608, 16
        %s1612 = sand.u32 %s1611, 1
        %s1613 = sadd.s32 32767, %s1612
        %s1614 = sadd.s32 %s1608, %s1613
        %s1615 = sand.u32 %s1614, 4294901760
        %s1616 = scalar_select %p1610, 2143289344, %s1615
        %s1618 = sshrl.u32 %s1616, 16
        %s1619 = sshll.u32 %s1618, 16
        %s1620 = sor.u32 %s1618, %s1619
        %v1621 = vstv %s1620
        %v1623 = vadd.bf16 %v1607, %v1621
        %v1624 = vmul.bf16 %v1623, 1009007652
        %v1625 = vmax.bf16 %v1623, %v1624
        %v1626 = vmul.bf16 %v1081, %v1625
        %v1627 = vunpack.c.l.bf16 %v1626
        %v1628 = vsel %vm1091, %v1627, 0.0
        %1629 = vadd.xlane.f32.xlu0 %v1628
        %v1630 = vpop.xlane.xlu0 %1629
        %v1631 = vpack.c.bf16 %v1630, %v1630
        %v1632 = vmul.bf16 %v1082, %v1625
        %v1633 = vunpack.c.l.bf16 %v1632
        %v1634 = vsel %vm1091, %v1633, 0.0
        %1635 = vadd.xlane.f32.xlu0 %v1634
        %v1636 = vpop.xlane.xlu0 %1635
        %v1637 = vpack.c.bf16 %v1636, %v1636
        %s1638 = sld [smem:[#allocation4 + $0xa]]
        %p1640 = scmp.ne.f32.partialorder %s1638, %s1638
        %s1641 = sshrl.u32 %s1638, 16
        %s1642 = sand.u32 %s1641, 1
        %s1643 = sadd.s32 32767, %s1642
        %s1644 = sadd.s32 %s1638, %s1643
        %s1645 = sand.u32 %s1644, 4294901760
        %s1646 = scalar_select %p1640, 2143289344, %s1645
        %s1648 = sshrl.u32 %s1646, 16
        %s1649 = sshll.u32 %s1648, 16
        %s1650 = sor.u32 %s1648, %s1649
        %v1651 = vstv %s1650
        %v1653 = vmul.bf16 %v473, %v1651
        %s1654 = sld [smem:[#allocation4 + $0x8a]]
        %p1656 = scmp.ne.f32.partialorder %s1654, %s1654
        %s1657 = sshrl.u32 %s1654, 16
        %s1658 = sand.u32 %s1657, 1
        %s1659 = sadd.s32 32767, %s1658
        %s1660 = sadd.s32 %s1654, %s1659
        %s1661 = sand.u32 %s1660, 4294901760
        %s1662 = scalar_select %p1656, 2143289344, %s1661
        %s1664 = sshrl.u32 %s1662, 16
        %s1665 = sshll.u32 %s1664, 16
        %s1666 = sor.u32 %s1664, %s1665
        %v1667 = vstv %s1666
        %v1669 = vadd.bf16 %v1653, %v1667
        %v1670 = vmul.bf16 %v1669, 1009007652
        %v1671 = vmax.bf16 %v1669, %v1670
        %v1672 = vmul.bf16 %v1081, %v1671
        %v1673 = vunpack.c.l.bf16 %v1672
        %v1674 = vsel %vm1091, %v1673, 0.0
        %1675 = vadd.xlane.f32.xlu0 %v1674
        %v1676 = vpop.xlane.xlu0 %1675
        %v1677 = vpack.c.bf16 %v1676, %v1676
        %v1678 = vmul.bf16 %v1082, %v1671
        %v1679 = vunpack.c.l.bf16 %v1678
        %v1680 = vsel %vm1091, %v1679, 0.0
        %1681 = vadd.xlane.f32.xlu0 %v1680
        %v1682 = vpop.xlane.xlu0 %1681
        %v1683 = vpack.c.bf16 %v1682, %v1682
        %s1684 = sld [smem:[#allocation4 + $0xb]]
        %p1686 = scmp.ne.f32.partialorder %s1684, %s1684
        %s1687 = sshrl.u32 %s1684, 16
        %s1688 = sand.u32 %s1687, 1
        %s1689 = sadd.s32 32767, %s1688
        %s1690 = sadd.s32 %s1684, %s1689
        %s1691 = sand.u32 %s1690, 4294901760
        %s1692 = scalar_select %p1686, 2143289344, %s1691
        %s1694 = sshrl.u32 %s1692, 16
        %s1695 = sshll.u32 %s1694, 16
        %s1696 = sor.u32 %s1694, %s1695
        %v1697 = vstv %s1696
        %v1699 = vmul.bf16 %v473, %v1697
        %s1700 = sld [smem:[#allocation4 + $0x8b]]
        %p1702 = scmp.ne.f32.partialorder %s1700, %s1700
        %s1703 = sshrl.u32 %s1700, 16
        %s1704 = sand.u32 %s1703, 1
        %s1705 = sadd.s32 32767, %s1704
        %s1706 = sadd.s32 %s1700, %s1705
        %s1707 = sand.u32 %s1706, 4294901760
        %s1708 = scalar_select %p1702, 2143289344, %s1707
        %s1710 = sshrl.u32 %s1708, 16
        %s1711 = sshll.u32 %s1710, 16
        %s1712 = sor.u32 %s1710, %s1711
        %v1713 = vstv %s1712
        %v1715 = vadd.bf16 %v1699, %v1713
        %v1716 = vmul.bf16 %v1715, 1009007652
        %v1717 = vmax.bf16 %v1715, %v1716
        %v1718 = vmul.bf16 %v1081, %v1717
        %v1719 = vunpack.c.l.bf16 %v1718
        %v1720 = vsel %vm1091, %v1719, 0.0
        %1721 = vadd.xlane.f32.xlu0 %v1720
        %v1722 = vpop.xlane.xlu0 %1721
        %v1723 = vpack.c.bf16 %v1722, %v1722
        %v1724 = vmul.bf16 %v1082, %v1717
        %v1725 = vunpack.c.l.bf16 %v1724
        %v1726 = vsel %vm1091, %v1725, 0.0
        %1727 = vadd.xlane.f32.xlu0 %v1726
        %v1728 = vpop.xlane.xlu0 %1727
        %v1729 = vpack.c.bf16 %v1728, %v1728
        %s1730 = sld [smem:[#allocation4 + $0xc]]
        %p1732 = scmp.ne.f32.partialorder %s1730, %s1730
        %s1733 = sshrl.u32 %s1730, 16
        %s1734 = sand.u32 %s1733, 1
        %s1735 = sadd.s32 32767, %s1734
        %s1736 = sadd.s32 %s1730, %s1735
        %s1737 = sand.u32 %s1736, 4294901760
        %s1738 = scalar_select %p1732, 2143289344, %s1737
        %s1740 = sshrl.u32 %s1738, 16
        %s1741 = sshll.u32 %s1740, 16
        %s1742 = sor.u32 %s1740, %s1741
        %v1743 = vstv %s1742
        %v1745 = vmul.bf16 %v473, %v1743
        %s1746 = sld [smem:[#allocation4 + $0x8c]]
        %p1748 = scmp.ne.f32.partialorder %s1746, %s1746
        %s1749 = sshrl.u32 %s1746, 16
        %s1750 = sand.u32 %s1749, 1
        %s1751 = sadd.s32 32767, %s1750
        %s1752 = sadd.s32 %s1746, %s1751
        %s1753 = sand.u32 %s1752, 4294901760
        %s1754 = scalar_select %p1748, 2143289344, %s1753
        %s1756 = sshrl.u32 %s1754, 16
        %s1757 = sshll.u32 %s1756, 16
        %s1758 = sor.u32 %s1756, %s1757
        %v1759 = vstv %s1758
        %v1761 = vadd.bf16 %v1745, %v1759
        %v1762 = vmul.bf16 %v1761, 1009007652
        %v1763 = vmax.bf16 %v1761, %v1762
        %v1764 = vmul.bf16 %v1081, %v1763
        %v1765 = vunpack.c.l.bf16 %v1764
        %v1766 = vsel %vm1091, %v1765, 0.0
        %1767 = vadd.xlane.f32.xlu0 %v1766
        %v1768 = vpop.xlane.xlu0 %1767
        %v1769 = vpack.c.bf16 %v1768, %v1768
        %v1770 = vmul.bf16 %v1082, %v1763
        %v1771 = vunpack.c.l.bf16 %v1770
        %v1772 = vsel %vm1091, %v1771, 0.0
        %1773 = vadd.xlane.f32.xlu0 %v1772
        %v1774 = vpop.xlane.xlu0 %1773
        %v1775 = vpack.c.bf16 %v1774, %v1774
        %s1776 = sld [smem:[#allocation4 + $0xd]]
        %p1778 = scmp.ne.f32.partialorder %s1776, %s1776
        %s1779 = sshrl.u32 %s1776, 16
        %s1780 = sand.u32 %s1779, 1
        %s1781 = sadd.s32 32767, %s1780
        %s1782 = sadd.s32 %s1776, %s1781
        %s1783 = sand.u32 %s1782, 4294901760
        %s1784 = scalar_select %p1778, 2143289344, %s1783
        %s1786 = sshrl.u32 %s1784, 16
        %s1787 = sshll.u32 %s1786, 16
        %s1788 = sor.u32 %s1786, %s1787
        %v1789 = vstv %s1788
        %v1791 = vmul.bf16 %v473, %v1789
        %s1792 = sld [smem:[#allocation4 + $0x8d]]
        %p1794 = scmp.ne.f32.partialorder %s1792, %s1792
        %s1795 = sshrl.u32 %s1792, 16
        %s1796 = sand.u32 %s1795, 1
        %s1797 = sadd.s32 32767, %s1796
        %s1798 = sadd.s32 %s1792, %s1797
        %s1799 = sand.u32 %s1798, 4294901760
        %s1800 = scalar_select %p1794, 2143289344, %s1799
        %s1802 = sshrl.u32 %s1800, 16
        %s1803 = sshll.u32 %s1802, 16
        %s1804 = sor.u32 %s1802, %s1803
        %v1805 = vstv %s1804
        %v1807 = vadd.bf16 %v1791, %v1805
        %v1808 = vmul.bf16 %v1807, 1009007652
        %v1809 = vmax.bf16 %v1807, %v1808
        %v1810 = vmul.bf16 %v1081, %v1809
        %v1811 = vunpack.c.l.bf16 %v1810
        %v1812 = vsel %vm1091, %v1811, 0.0
        %1813 = vadd.xlane.f32.xlu0 %v1812
        %v1814 = vpop.xlane.xlu0 %1813
        %v1815 = vpack.c.bf16 %v1814, %v1814
        %v1816 = vmul.bf16 %v1082, %v1809
        %v1817 = vunpack.c.l.bf16 %v1816
        %v1818 = vsel %vm1091, %v1817, 0.0
        %1819 = vadd.xlane.f32.xlu0 %v1818
        %v1820 = vpop.xlane.xlu0 %1819
        %v1821 = vpack.c.bf16 %v1820, %v1820
        %s1822 = sld [smem:[#allocation4 + $0xe]]
        %p1824 = scmp.ne.f32.partialorder %s1822, %s1822
        %s1825 = sshrl.u32 %s1822, 16
        %s1826 = sand.u32 %s1825, 1
        %s1827 = sadd.s32 32767, %s1826
        %s1828 = sadd.s32 %s1822, %s1827
        %s1829 = sand.u32 %s1828, 4294901760
        %s1830 = scalar_select %p1824, 2143289344, %s1829
        %s1832 = sshrl.u32 %s1830, 16
        %s1833 = sshll.u32 %s1832, 16
        %s1834 = sor.u32 %s1832, %s1833
        %v1835 = vstv %s1834
        %v1837 = vmul.bf16 %v473, %v1835
        %s1838 = sld [smem:[#allocation4 + $0x8e]]
        %p1840 = scmp.ne.f32.partialorder %s1838, %s1838
        %s1841 = sshrl.u32 %s1838, 16
        %s1842 = sand.u32 %s1841, 1
        %s1843 = sadd.s32 32767, %s1842
        %s1844 = sadd.s32 %s1838, %s1843
        %s1845 = sand.u32 %s1844, 4294901760
        %s1846 = scalar_select %p1840, 2143289344, %s1845
        %s1848 = sshrl.u32 %s1846, 16
        %s1849 = sshll.u32 %s1848, 16
        %s1850 = sor.u32 %s1848, %s1849
        %v1851 = vstv %s1850
        %v1853 = vadd.bf16 %v1837, %v1851
        %v1854 = vmul.bf16 %v1853, 1009007652
        %v1855 = vmax.bf16 %v1853, %v1854
        %v1856 = vmul.bf16 %v1081, %v1855
        %v1857 = vunpack.c.l.bf16 %v1856
        %v1858 = vsel %vm1091, %v1857, 0.0
        %1859 = vadd.xlane.f32.xlu0 %v1858
        %v1860 = vpop.xlane.xlu0 %1859
        %v1861 = vpack.c.bf16 %v1860, %v1860
        %v1862 = vmul.bf16 %v1082, %v1855
        %v1863 = vunpack.c.l.bf16 %v1862
        %v1864 = vsel %vm1091, %v1863, 0.0
        %1865 = vadd.xlane.f32.xlu0 %v1864
        %v1866 = vpop.xlane.xlu0 %1865
        %v1867 = vpack.c.bf16 %v1866, %v1866
        %s1868 = sld [smem:[#allocation4 + $0xf]]
        %p1870 = scmp.ne.f32.partialorder %s1868, %s1868
        %s1871 = sshrl.u32 %s1868, 16
        %s1872 = sand.u32 %s1871, 1
        %s1873 = sadd.s32 32767, %s1872
        %s1874 = sadd.s32 %s1868, %s1873
        %s1875 = sand.u32 %s1874, 4294901760
        %s1876 = scalar_select %p1870, 2143289344, %s1875
        %s1878 = sshrl.u32 %s1876, 16
        %s1879 = sshll.u32 %s1878, 16
        %s1880 = sor.u32 %s1878, %s1879
        %v1881 = vstv %s1880
        %v1883 = vmul.bf16 %v473, %v1881
        %s1884 = sld [smem:[#allocation4 + $0x8f]]
        %p1886 = scmp.ne.f32.partialorder %s1884, %s1884
        %s1887 = sshrl.u32 %s1884, 16
        %s1888 = sand.u32 %s1887, 1
        %s1889 = sadd.s32 32767, %s1888
        %s1890 = sadd.s32 %s1884, %s1889
        %s1891 = sand.u32 %s1890, 4294901760
        %s1892 = scalar_select %p1886, 2143289344, %s1891
        %s1894 = sshrl.u32 %s1892, 16
        %s1895 = sshll.u32 %s1894, 16
        %s1896 = sor.u32 %s1894, %s1895
        %v1897 = vstv %s1896
        %v1899 = vadd.bf16 %v1883, %v1897
        %v1900 = vmul.bf16 %v1899, 1009007652
        %v1901 = vmax.bf16 %v1899, %v1900
        %v1902 = vmul.bf16 %v1081, %v1901
        %v1903 = vunpack.c.l.bf16 %v1902
        %v1904 = vsel %vm1091, %v1903, 0.0
        %1905 = vadd.xlane.f32.xlu0 %v1904
        %v1906 = vpop.xlane.xlu0 %1905
        %v1907 = vpack.c.bf16 %v1906, %v1906
        %v1908 = vmul.bf16 %v1082, %v1901
        %v1909 = vunpack.c.l.bf16 %v1908
        %v1910 = vsel %vm1091, %v1909, 0.0
        %1911 = vadd.xlane.f32.xlu0 %v1910
        %v1912 = vpop.xlane.xlu0 %1911
        %v1913 = vpack.c.bf16 %v1912, %v1912
        %vm1914 = vcmask 7168
        %v1917 = vsel %vm1914, %v1217, %v1263
        %vm1918 = vcmask 15360
        %v1920 = vsel %vm1918, %v1917, %v1309
        %vm1921 = vcmask 23552
        %v1923 = vsel %vm1921, %v1920, %v1355
        %vm1924 = vcmask 31744
        %v1926 = vsel %vm1924, %v1923, %v1401
        %vm1927 = vcmask 39936
        %v1929 = vsel %vm1927, %v1926, %v1447
        %vm1930 = vcmask 48128
        %v1932 = vsel %vm1930, %v1929, %v1493
        %vm1933 = vcmask 56320
        %v1935 = vsel %vm1933, %v1932, %v1539
        %vm1936 = vcmask 64512
        %v1938 = vsel %vm1936, %v1935, %v1585
        %vm1939 = vcmask 72704
        %v1941 = vsel %vm1939, %v1938, %v1631
        %vm1942 = vcmask 80896
        %v1944 = vsel %vm1942, %v1941, %v1677
        %vm1945 = vcmask 89088
        %v1947 = vsel %vm1945, %v1944, %v1723
        %vm1948 = vcmask 97280
        %v1950 = vsel %vm1948, %v1947, %v1769
        %vm1951 = vcmask 105472
        %v1953 = vsel %vm1951, %v1950, %v1815
        %vm1954 = vcmask 113664
        %v1956 = vsel %vm1954, %v1953, %v1861
        %vm1957 = vcmask 121856
        %v1959 = vsel %vm1957, %v1956, %v1907
        %v1963 = vsel %vm1914, %v1223, %v1269
        %v1965 = vsel %vm1918, %v1963, %v1315
        %v1967 = vsel %vm1921, %v1965, %v1361
        %v1969 = vsel %vm1924, %v1967, %v1407
        %v1971 = vsel %vm1927, %v1969, %v1453
        %v1973 = vsel %vm1930, %v1971, %v1499
        %v1975 = vsel %vm1933, %v1973, %v1545
        %v1977 = vsel %vm1936, %v1975, %v1591
        %v1979 = vsel %vm1939, %v1977, %v1637
        %v1981 = vsel %vm1942, %v1979, %v1683
        %v1983 = vsel %vm1945, %v1981, %v1729
        %v1985 = vsel %vm1948, %v1983, %v1775
        %v1987 = vsel %vm1951, %v1985, %v1821
        %v1989 = vsel %vm1954, %v1987, %v1867
        %v1991 = vsel %vm1957, %v1989, %v1913
        %v1993 = vadd.f32 %v1130, %v1173
        %v1994 = vadd.bf16 %v1959, %v1991
        %v1995 = vld [vmem:[%s9] sm:$0x7]
        %v1996 = vld [vmem:[%s7] sm:$0xff]
        %v1997 = vld [vmem:[%s7 + $0x8] sm:$0xff]
        %v1998 = vld [vmem:[%s7 + $0x10] sm:$0x1]
        %v1999 = vpack.c.bf16 %v1993, %v1993
        %v2000 = vpack.c.bf16 %v1997, %v1996
        %v2001 = vpack.c.bf16 %v1998, %v1998
        %v2002 = vld [vmem:[%s8] sm:$0xff]
        %v2003 = vld [vmem:[%s8 + $0x8] sm:$0xff]
        %v2004 = vpack.c.bf16 %v2003, %v2002
        %v2006 = vsel %vm1091, %v1994, 0
        %2008 = vmatprep.subr.bf16.mxu0 0
        %2009 = vmatpush1.bf16.msra.mxu0 %v2004
        %2010 = vmatprep.subr.bf16.mxu0 0
        %2011 = vmatpush1.bf16.msra.mxu0 0
        %2012 = vmatprep.subr.bf16.mxu0 0
        %2013 = vmatpush1.bf16.msra.mxu0 0
        %2014 = vmatprep.subr.bf16.mxu0 0
        %2015 = vmatpush1.bf16.msra.mxu0 0
        %2016 = vmatprep.subr.bf16.mxu0 0
        %2017 = vmatpush1.bf16.msra.mxu0 0
        %2018 = vmatprep.subr.bf16.mxu0 0
        %2019 = vmatpush1.bf16.msra.mxu0 0
        %2020 = vmatprep.subr.bf16.mxu0 0
        %2021 = vmatpush1.bf16.msra.mxu0 0
        %2022 = vmatprep.subr.bf16.mxu0 0
        %2023 = vmatpush1.bf16.msra.mxu0 0
        %2024 = vmatprep.subr.bf16.mxu0 0
        %2025 = vmatpush1.bf16.msra.mxu0 0
        %2026 = vmatprep.subr.bf16.mxu0 0
        %2027 = vmatpush1.bf16.msra.mxu0 0
        %2028 = vmatprep.subr.bf16.mxu0 0
        %2029 = vmatpush1.bf16.msra.mxu0 0
        %2030 = vmatprep.subr.bf16.mxu0 0
        %2031 = vmatpush1.bf16.msra.mxu0 0
        %2032 = vmatprep.subr.bf16.mxu0 0
        %2033 = vmatpush1.bf16.msra.mxu0 0
        %2034 = vmatprep.subr.bf16.mxu0 0
        %2035 = vmatpush1.bf16.msra.mxu0 0
        %2036 = vmatprep.subr.bf16.mxu0 0
        %2037 = vmatpush1.bf16.msra.mxu0 0
        %2038 = vmatprep.subr.bf16.mxu0 0
        %2039 = vmatpush1.bf16.msra.mxu0 0
        %2040 = vmatprep.mubr.bf16.mxu0 0
        %2041 = vmatmul.mubr.bf16.gmra.mrb[0].mxu0 %v2006
        %v2042 = vpop.f32.mrb[0].mxu0
        %v2043 = vadd.f32 0.0, %v2042
        %v2044 = vpop.f32.mrb[0].mxu0
        %v2045 = vpop.f32.mrb[0].mxu0
        %v2046 = vpop.f32.mrb[0].mxu0
        %2047 = vdwg.mxu0
        %vm2048 = vcmask 138240
        %v2050 = vsel %vm2048, %v1999, 0
        %vm2052 = vcmask 1040384
        %v2053 = vsel 0, 4294967295, 65535
        %v2054 = vsel %vm2052, %v2053, 0
        %v2056 = vand.u32 %v2001, %v2054
        %2058 = vmatprep.subr.bf16.mxu0 0
        %2059 = vmatpush1.bf16.msra.mxu0 %v2000
        %2060 = vmatprep.subr.bf16.mxu0 0
        %2061 = vmatpush1.bf16.msra.mxu0 %v2056
        %2062 = vmatprep.subr.bf16.mxu0 0
        %2063 = vmatpush1.bf16.msra.mxu0 0
        %2064 = vmatprep.subr.bf16.mxu0 0
        %2065 = vmatpush1.bf16.msra.mxu0 0
        %2066 = vmatprep.subr.bf16.mxu0 0
        %2067 = vmatpush1.bf16.msra.mxu0 0
        %2068 = vmatprep.subr.bf16.mxu0 0
        %2069 = vmatpush1.bf16.msra.mxu0 0
        %2070 = vmatprep.subr.bf16.mxu0 0
        %2071 = vmatpush1.bf16.msra.mxu0 0
        %2072 = vmatprep.subr.bf16.mxu0 0
        %2073 = vmatpush1.bf16.msra.mxu0 0
        %2074 = vmatprep.subr.bf16.mxu0 0
        %2075 = vmatpush1.bf16.msra.mxu0 0
        %2076 = vmatprep.subr.bf16.mxu0 0
        %2077 = vmatpush1.bf16.msra.mxu0 0
        %2078 = vmatprep.subr.bf16.mxu0 0
        %2079 = vmatpush1.bf16.msra.mxu0 0
        %2080 = vmatprep.subr.bf16.mxu0 0
        %2081 = vmatpush1.bf16.msra.mxu0 0
        %2082 = vmatprep.subr.bf16.mxu0 0
        %2083 = vmatpush1.bf16.msra.mxu0 0
        %2084 = vmatprep.subr.bf16.mxu0 0
        %2085 = vmatpush1.bf16.msra.mxu0 0
        %2086 = vmatprep.subr.bf16.mxu0 0
        %2087 = vmatpush1.bf16.msra.mxu0 0
        %2088 = vmatprep.subr.bf16.mxu0 0
        %2089 = vmatpush1.bf16.msra.mxu0 0
        %2090 = vmatprep.mubr.bf16.mxu0 0
        %2091 = vmatmul.mubr.bf16.gmra.mrb[0].mxu0 %v2050
        %v2092 = vpop.f32.mrb[0].mxu0
        %v2093 = vadd.f32 %v2043, %v2092
        %v2094 = vpop.f32.mrb[0].mxu0
        %v2095 = vpop.f32.mrb[0].mxu0
        %v2096 = vpop.f32.mrb[0].mxu0
        %2097 = vdwg.mxu0
        %v2098 = vlaneseq
        %v2099 = vshrl.u32 %v2098, 7
        %v2100 = vsub.s32 0, %v2099
        %v2101 = vrot.slane %v1995, %v2100
        %v2102 = vadd.f32 %v2093, %v2101
        %vm2103 = vcmask 261120
        %v2104 = vsel %vm2103, %v2102, 0.0
        %2105 = vadd.xlane.f32.xlu0 %v2104
        %v2106 = vpop.xlane.xlu0 %2105
        %v2107 = vrcp.pop 32.0
        %v2108 = vmul.f32 %v2106, %v2107
        %v2109 = vsub.f32 %v2102, %v2108
        %v2110 = vmul.f32 %v2109, %v2109
        %v2111 = vsel %vm2103, %v2110, 0.0
        %2112 = vadd.xlane.f32.xlu0 %v2111
        %v2113 = vpop.xlane.xlu0 %2112
        %v2114 = vmul.f32 %v2113, %v2107
        %v2115 = vadd.f32 %v2114, 1e-05
        %v2116 = vrsqrt.pop %v2115
        %v2117 = vmul.f32 %v2109, %v2116
        %v2118 = vlaneseq
        %v2119 = vshrl.u32 %v2118, 7
        %v2120 = vsub.s32 1, %v2119
        %v2121 = vrot.slane %v1995, %v2120
        %v2122 = vmul.f32 %v2117, %v2121
        %v2123 = vlaneseq
        %v2124 = vshrl.u32 %v2123, 7
        %v2125 = vsub.s32 2, %v2124
        %v2126 = vrot.slane %v1995, %v2125
        %v2127 = vadd.f32 %v2122, %v2126
        %v2128 = vmul.f32 %v2127, 0.01
        %v2129 = vmax.f32 %v2127, %v2128
        %v2130 = vld [vmem:[%s10] sm:$0xff]
        %v2131 = vld [vmem:[%s10 + $0x8] sm:$0xff]
        %v2132 = vld [vmem:[%s10 + $0x10] sm:$0xff]
        %v2133 = vld [vmem:[%s10 + $0x18] sm:$0xff]
        %v2134 = vpack.c.bf16 %v2129, %v2129
        %v2135 = vpack.c.bf16 %v2131, %v2130
        %v2136 = vpack.c.bf16 %v2133, %v2132
        %v2137 = vld [vmem:[%s11] sm:$0x1]
        %v2139 = vlaneseq
        %v2140 = vshrl.u32 %v2139, 7
        %v2141 = vsub.s32 0, %v2140
        %v2142 = vrot.slane %v2137, %v2141
        %v2145 = vsel %vm2103, %v2134, 0
        %2147 = vmatprep.subr.bf16.mxu0 0
        %2148 = vmatpush1.bf16.msra.mxu0 %v2135
        %2149 = vmatprep.subr.bf16.mxu0 0
        %2150 = vmatpush1.bf16.msra.mxu0 %v2136
        %2151 = vmatprep.subr.bf16.mxu0 0
        %2152 = vmatpush1.bf16.msra.mxu0 0
        %2153 = vmatprep.subr.bf16.mxu0 0
        %2154 = vmatpush1.bf16.msra.mxu0 0
        %2155 = vmatprep.subr.bf16.mxu0 0
        %2156 = vmatpush1.bf16.msra.mxu0 0
        %2157 = vmatprep.subr.bf16.mxu0 0
        %2158 = vmatpush1.bf16.msra.mxu0 0
        %2159 = vmatprep.subr.bf16.mxu0 0
        %2160 = vmatpush1.bf16.msra.mxu0 0
        %2161 = vmatprep.subr.bf16.mxu0 0
        %2162 = vmatpush1.bf16.msra.mxu0 0
        %2163 = vmatprep.subr.bf16.mxu0 0
        %2164 = vmatpush1.bf16.msra.mxu0 0
        %2165 = vmatprep.subr.bf16.mxu0 0
        %2166 = vmatpush1.bf16.msra.mxu0 0
        %2167 = vmatprep.subr.bf16.mxu0 0
        %2168 = vmatpush1.bf16.msra.mxu0 0
        %2169 = vmatprep.subr.bf16.mxu0 0
        %2170 = vmatpush1.bf16.msra.mxu0 0
        %2171 = vmatprep.subr.bf16.mxu0 0
        %2172 = vmatpush1.bf16.msra.mxu0 0
        %2173 = vmatprep.subr.bf16.mxu0 0
        %2174 = vmatpush1.bf16.msra.mxu0 0
        %2175 = vmatprep.subr.bf16.mxu0 0
        %2176 = vmatpush1.bf16.msra.mxu0 0
        %2177 = vmatprep.subr.bf16.mxu0 0
        %2178 = vmatpush1.bf16.msra.mxu0 0
        %2179 = vmatprep.mubr.bf16.mxu0 0
        %2180 = vmatmul.mubr.bf16.gmra.mrb[0].mxu0 %v2145
        %v2181 = vpop.f32.mrb[0].mxu0
        %v2182 = vadd.f32 %v2142, %v2181
        %v2183 = vpop.f32.mrb[0].mxu0
        %v2184 = vpop.f32.mrb[0].mxu0
        %v2185 = vpop.f32.mrb[0].mxu0
        %2186 = vdwg.mxu0
        %s2187 = scalar_lea.vmem %s9, 4
        %v2188 = vld [vmem:[%s2187] sm:$0x7]
        %s2189 = scalar_lea.vmem %s7, 24
        %v2190 = vld [vmem:[%s2189] sm:$0xff]
        %v2191 = vld [vmem:[%s2189 + $0x8] sm:$0xff]
        %v2192 = vld [vmem:[%s2189 + $0x10] sm:$0x1]
        %v2193 = vpack.c.bf16 %v1130, %v1130
        %v2194 = vpack.c.bf16 %v2191, %v2190
        %v2195 = vpack.c.bf16 %v2192, %v2192
        %s2196 = scalar_lea.vmem %s8, 16
        %v2197 = vld [vmem:[%s2196] sm:$0xff]
        %v2198 = vld [vmem:[%s2196 + $0x8] sm:$0xff]
        %v2199 = vpack.c.bf16 %v2198, %v2197
        %v2200 = vsel %vm1091, %v1959, 0
        %2202 = vmatprep.subr.bf16.mxu0 0
        %2203 = vmatpush1.bf16.msra.mxu0 %v2199
        %2204 = vmatprep.subr.bf16.mxu0 0
        %2205 = vmatpush1.bf16.msra.mxu0 0
        %2206 = vmatprep.subr.bf16.mxu0 0
        %2207 = vmatpush1.bf16.msra.mxu0 0
        %2208 = vmatprep.subr.bf16.mxu0 0
        %2209 = vmatpush1.bf16.msra.mxu0 0
        %2210 = vmatprep.subr.bf16.mxu0 0
        %2211 = vmatpush1.bf16.msra.mxu0 0
        %2212 = vmatprep.subr.bf16.mxu0 0
        %2213 = vmatpush1.bf16.msra.mxu0 0
        %2214 = vmatprep.subr.bf16.mxu0 0
        %2215 = vmatpush1.bf16.msra.mxu0 0
        %2216 = vmatprep.subr.bf16.mxu0 0
        %2217 = vmatpush1.bf16.msra.mxu0 0
        %2218 = vmatprep.subr.bf16.mxu0 0
        %2219 = vmatpush1.bf16.msra.mxu0 0
        %2220 = vmatprep.subr.bf16.mxu0 0
        %2221 = vmatpush1.bf16.msra.mxu0 0
        %2222 = vmatprep.subr.bf16.mxu0 0
        %2223 = vmatpush1.bf16.msra.mxu0 0
        %2224 = vmatprep.subr.bf16.mxu0 0
        %2225 = vmatpush1.bf16.msra.mxu0 0
        %2226 = vmatprep.subr.bf16.mxu0 0
        %2227 = vmatpush1.bf16.msra.mxu0 0
        %2228 = vmatprep.subr.bf16.mxu0 0
        %2229 = vmatpush1.bf16.msra.mxu0 0
        %2230 = vmatprep.subr.bf16.mxu0 0
        %2231 = vmatpush1.bf16.msra.mxu0 0
        %2232 = vmatprep.subr.bf16.mxu0 0
        %2233 = vmatpush1.bf16.msra.mxu0 0
        %2234 = vmatprep.mubr.bf16.mxu0 0
        %2235 = vmatmul.mubr.bf16.gmra.mrb[0].mxu0 %v2200
        %v2236 = vpop.f32.mrb[0].mxu0
        %v2237 = vadd.f32 0.0, %v2236
        %v2238 = vpop.f32.mrb[0].mxu0
        %v2239 = vpop.f32.mrb[0].mxu0
        %v2240 = vpop.f32.mrb[0].mxu0
        %2241 = vdwg.mxu0
        %v2243 = vsel %vm2048, %v2193, 0
        %v2246 = vand.u32 %v2195, %v2054
        %2248 = vmatprep.subr.bf16.mxu0 0
        %2249 = vmatpush1.bf16.msra.mxu0 %v2194
        %2250 = vmatprep.subr.bf16.mxu0 0
        %2251 = vmatpush1.bf16.msra.mxu0 %v2246
        %2252 = vmatprep.subr.bf16.mxu0 0
        %2253 = vmatpush1.bf16.msra.mxu0 0
        %2254 = vmatprep.subr.bf16.mxu0 0
        %2255 = vmatpush1.bf16.msra.mxu0 0
        %2256 = vmatprep.subr.bf16.mxu0 0
        %2257 = vmatpush1.bf16.msra.mxu0 0
        %2258 = vmatprep.subr.bf16.mxu0 0
        %2259 = vmatpush1.bf16.msra.mxu0 0
        %2260 = vmatprep.subr.bf16.mxu0 0
        %2261 = vmatpush1.bf16.msra.mxu0 0
        %2262 = vmatprep.subr.bf16.mxu0 0
        %2263 = vmatpush1.bf16.msra.mxu0 0
        %2264 = vmatprep.subr.bf16.mxu0 0
        %2265 = vmatpush1.bf16.msra.mxu0 0
        %2266 = vmatprep.subr.bf16.mxu0 0
        %2267 = vmatpush1.bf16.msra.mxu0 0
        %2268 = vmatprep.subr.bf16.mxu0 0
        %2269 = vmatpush1.bf16.msra.mxu0 0
        %2270 = vmatprep.subr.bf16.mxu0 0
        %2271 = vmatpush1.bf16.msra.mxu0 0
        %2272 = vmatprep.subr.bf16.mxu0 0
        %2273 = vmatpush1.bf16.msra.mxu0 0
        %2274 = vmatprep.subr.bf16.mxu0 0
        %2275 = vmatpush1.bf16.msra.mxu0 0
        %2276 = vmatprep.subr.bf16.mxu0 0
        %2277 = vmatpush1.bf16.msra.mxu0 0
        %2278 = vmatprep.subr.bf16.mxu0 0
        %2279 = vmatpush1.bf16.msra.mxu0 0
        %2280 = vmatprep.mubr.bf16.mxu0 0
        %2281 = vmatmul.mubr.bf16.gmra.mrb[0].mxu0 %v2243
        %v2282 = vpop.f32.mrb[0].mxu0
        %v2283 = vadd.f32 %v2237, %v2282
        %v2284 = vpop.f32.mrb[0].mxu0
        %v2285 = vpop.f32.mrb[0].mxu0
        %v2286 = vpop.f32.mrb[0].mxu0
        %2287 = vdwg.mxu0
        %v2288 = vlaneseq
        %v2289 = vshrl.u32 %v2288, 7
        %v2290 = vsub.s32 0, %v2289
        %v2291 = vrot.slane %v2188, %v2290
        %v2292 = vadd.f32 %v2283, %v2291
        %v2293 = vsel %vm2103, %v2292, 0.0
        %2294 = vadd.xlane.f32.xlu0 %v2293
        %v2295 = vpop.xlane.xlu0 %2294
        %v2296 = vmul.f32 %v2295, %v2107
        %v2297 = vsub.f32 %v2292, %v2296
        %v2298 = vmul.f32 %v2297, %v2297
        %v2299 = vsel %vm2103, %v2298, 0.0
        %2300 = vadd.xlane.f32.xlu0 %v2299
        %v2301 = vpop.xlane.xlu0 %2300
        %v2302 = vmul.f32 %v2301, %v2107
        %v2303 = vadd.f32 %v2302, 1e-05
        %v2304 = vrsqrt.pop %v2303
        %v2305 = vmul.f32 %v2297, %v2304
        %v2306 = vlaneseq
        %v2307 = vshrl.u32 %v2306, 7
        %v2308 = vsub.s32 1, %v2307
        %v2309 = vrot.slane %v2188, %v2308
        %v2310 = vmul.f32 %v2305, %v2309
        %v2311 = vlaneseq
        %v2312 = vshrl.u32 %v2311, 7
        %v2313 = vsub.s32 2, %v2312
        %v2314 = vrot.slane %v2188, %v2313
        %v2315 = vadd.f32 %v2310, %v2314
        %v2316 = vmax.f32 %v2315, 0.0
        %s2317 = scalar_lea.vmem %s10, 32
        %v2318 = vld [vmem:[%s2317] sm:$0xff]
        %v2319 = vld [vmem:[%s2317 + $0x8] sm:$0xff]
        %v2320 = vld [vmem:[%s2317 + $0x10] sm:$0xff]
        %v2321 = vld [vmem:[%s2317 + $0x18] sm:$0xff]
        %v2322 = vpack.c.bf16 %v2316, %v2316
        %v2323 = vpack.c.bf16 %v2319, %v2318
        %v2324 = vpack.c.bf16 %v2321, %v2320
        %s2325 = scalar_lea.vmem %s11, 1
        %v2326 = vld [vmem:[%s2325] sm:$0x1]
        %v2328 = vlaneseq
        %v2329 = vshrl.u32 %v2328, 7
        %v2330 = vsub.s32 0, %v2329
        %v2331 = vrot.slane %v2326, %v2330
        %v2334 = vsel %vm2103, %v2322, 0
        %2336 = vmatprep.subr.bf16.mxu0 0
        %2337 = vmatpush1.bf16.msra.mxu0 %v2323
        %2338 = vmatprep.subr.bf16.mxu0 0
        %2339 = vmatpush1.bf16.msra.mxu0 %v2324
        %2340 = vmatprep.subr.bf16.mxu0 0
        %2341 = vmatpush1.bf16.msra.mxu0 0
        %2342 = vmatprep.subr.bf16.mxu0 0
        %2343 = vmatpush1.bf16.msra.mxu0 0
        %2344 = vmatprep.subr.bf16.mxu0 0
        %2345 = vmatpush1.bf16.msra.mxu0 0
        %2346 = vmatprep.subr.bf16.mxu0 0
        %2347 = vmatpush1.bf16.msra.mxu0 0
        %2348 = vmatprep.subr.bf16.mxu0 0
        %2349 = vmatpush1.bf16.msra.mxu0 0
        %2350 = vmatprep.subr.bf16.mxu0 0
        %2351 = vmatpush1.bf16.msra.mxu0 0
        %2352 = vmatprep.subr.bf16.mxu0 0
        %2353 = vmatpush1.bf16.msra.mxu0 0
        %2354 = vmatprep.subr.bf16.mxu0 0
        %2355 = vmatpush1.bf16.msra.mxu0 0
        %2356 = vmatprep.subr.bf16.mxu0 0
        %2357 = vmatpush1.bf16.msra.mxu0 0
        %2358 = vmatprep.subr.bf16.mxu0 0
        %2359 = vmatpush1.bf16.msra.mxu0 0
        %2360 = vmatprep.subr.bf16.mxu0 0
        %2361 = vmatpush1.bf16.msra.mxu0 0
        %2362 = vmatprep.subr.bf16.mxu0 0
        %2363 = vmatpush1.bf16.msra.mxu0 0
        %2364 = vmatprep.subr.bf16.mxu0 0
        %2365 = vmatpush1.bf16.msra.mxu0 0
        %2366 = vmatprep.subr.bf16.mxu0 0
        %2367 = vmatpush1.bf16.msra.mxu0 0
        %2368 = vmatprep.mubr.bf16.mxu0 0
        %2369 = vmatmul.mubr.bf16.gmra.mrb[0].mxu0 %v2334
        %v2370 = vpop.f32.mrb[0].mxu0
        %v2371 = vadd.f32 %v2331, %v2370
        %v2372 = vpop.f32.mrb[0].mxu0
        %v2373 = vpop.f32.mrb[0].mxu0
        %v2374 = vpop.f32.mrb[0].mxu0
        %2375 = vdwg.mxu0
        %v2376 = vadd.f32 %v2182, %v2371
        %s2377 = scalar_lea.vmem %s9, 8
        %v2378 = vld [vmem:[%s2377] sm:$0x7]
        %s2379 = scalar_lea.vmem %s7, 48
        %v2380 = vld [vmem:[%s2379] sm:$0xff]
        %v2381 = vld [vmem:[%s2379 + $0x8] sm:$0xff]
        %v2382 = vld [vmem:[%s2379 + $0x10] sm:$0x1]
        %v2383 = vpack.c.bf16 %v1173, %v1173
        %v2384 = vpack.c.bf16 %v2381, %v2380
        %v2385 = vpack.c.bf16 %v2382, %v2382
        %s2386 = scalar_lea.vmem %s8, 32
        %v2387 = vld [vmem:[%s2386] sm:$0xff]
        %v2388 = vld [vmem:[%s2386 + $0x8] sm:$0xff]
        %v2389 = vpack.c.bf16 %v2388, %v2387
        %v2390 = vsel %vm1091, %v1991, 0
        %2392 = vmatprep.subr.bf16.mxu0 0
        %2393 = vmatpush1.bf16.msra.mxu0 %v2389
        %2394 = vmatprep.subr.bf16.mxu0 0
        %2395 = vmatpush1.bf16.msra.mxu0 0
        %2396 = vmatprep.subr.bf16.mxu0 0
        %2397 = vmatpush1.bf16.msra.mxu0 0
        %2398 = vmatprep.subr.bf16.mxu0 0
        %2399 = vmatpush1.bf16.msra.mxu0 0
        %2400 = vmatprep.subr.bf16.mxu0 0
        %2401 = vmatpush1.bf16.msra.mxu0 0
        %2402 = vmatprep.subr.bf16.mxu0 0
        %2403 = vmatpush1.bf16.msra.mxu0 0
        %2404 = vmatprep.subr.bf16.mxu0 0
        %2405 = vmatpush1.bf16.msra.mxu0 0
        %2406 = vmatprep.subr.bf16.mxu0 0
        %2407 = vmatpush1.bf16.msra.mxu0 0
        %2408 = vmatprep.subr.bf16.mxu0 0
        %2409 = vmatpush1.bf16.msra.mxu0 0
        %2410 = vmatprep.subr.bf16.mxu0 0
        %2411 = vmatpush1.bf16.msra.mxu0 0
        %2412 = vmatprep.subr.bf16.mxu0 0
        %2413 = vmatpush1.bf16.msra.mxu0 0
        %2414 = vmatprep.subr.bf16.mxu0 0
        %2415 = vmatpush1.bf16.msra.mxu0 0
        %2416 = vmatprep.subr.bf16.mxu0 0
        %2417 = vmatpush1.bf16.msra.mxu0 0
        %2418 = vmatprep.subr.bf16.mxu0 0
        %2419 = vmatpush1.bf16.msra.mxu0 0
        %2420 = vmatprep.subr.bf16.mxu0 0
        %2421 = vmatpush1.bf16.msra.mxu0 0
        %2422 = vmatprep.subr.bf16.mxu0 0
        %2423 = vmatpush1.bf16.msra.mxu0 0
        %2424 = vmatprep.mubr.bf16.mxu0 0
        %2425 = vmatmul.mubr.bf16.gmra.mrb[0].mxu0 %v2390
        %v2426 = vpop.f32.mrb[0].mxu0
        %v2427 = vadd.f32 0.0, %v2426
        %v2428 = vpop.f32.mrb[0].mxu0
        %v2429 = vpop.f32.mrb[0].mxu0
        %v2430 = vpop.f32.mrb[0].mxu0
        %2431 = vdwg.mxu0
        %v2433 = vsel %vm2048, %v2383, 0
        %v2436 = vand.u32 %v2385, %v2054
        %2438 = vmatprep.subr.bf16.mxu0 0
        %2439 = vmatpush1.bf16.msra.mxu0 %v2384
        %2440 = vmatprep.subr.bf16.mxu0 0
        %2441 = vmatpush1.bf16.msra.mxu0 %v2436
        %2442 = vmatprep.subr.bf16.mxu0 0
        %2443 = vmatpush1.bf16.msra.mxu0 0
        %2444 = vmatprep.subr.bf16.mxu0 0
        %2445 = vmatpush1.bf16.msra.mxu0 0
        %2446 = vmatprep.subr.bf16.mxu0 0
        %2447 = vmatpush1.bf16.msra.mxu0 0
        %2448 = vmatprep.subr.bf16.mxu0 0
        %2449 = vmatpush1.bf16.msra.mxu0 0
        %2450 = vmatprep.subr.bf16.mxu0 0
        %2451 = vmatpush1.bf16.msra.mxu0 0
        %2452 = vmatprep.subr.bf16.mxu0 0
        %2453 = vmatpush1.bf16.msra.mxu0 0
        %2454 = vmatprep.subr.bf16.mxu0 0
        %2455 = vmatpush1.bf16.msra.mxu0 0
        %2456 = vmatprep.subr.bf16.mxu0 0
        %2457 = vmatpush1.bf16.msra.mxu0 0
        %2458 = vmatprep.subr.bf16.mxu0 0
        %2459 = vmatpush1.bf16.msra.mxu0 0
        %2460 = vmatprep.subr.bf16.mxu0 0
        %2461 = vmatpush1.bf16.msra.mxu0 0
        %2462 = vmatprep.subr.bf16.mxu0 0
        %2463 = vmatpush1.bf16.msra.mxu0 0
        %2464 = vmatprep.subr.bf16.mxu0 0
        %2465 = vmatpush1.bf16.msra.mxu0 0
        %2466 = vmatprep.subr.bf16.mxu0 0
        %2467 = vmatpush1.bf16.msra.mxu0 0
        %2468 = vmatprep.subr.bf16.mxu0 0
        %2469 = vmatpush1.bf16.msra.mxu0 0
        %2470 = vmatprep.mubr.bf16.mxu0 0
        %2471 = vmatmul.mubr.bf16.gmra.mrb[0].mxu0 %v2433
        %v2472 = vpop.f32.mrb[0].mxu0
        %v2473 = vadd.f32 %v2427, %v2472
        %v2474 = vpop.f32.mrb[0].mxu0
        %v2475 = vpop.f32.mrb[0].mxu0
        %v2476 = vpop.f32.mrb[0].mxu0
        %2477 = vdwg.mxu0
        %v2478 = vlaneseq
        %v2479 = vshrl.u32 %v2478, 7
        %v2480 = vsub.s32 0, %v2479
        %v2481 = vrot.slane %v2378, %v2480
        %v2482 = vadd.f32 %v2473, %v2481
        %v2483 = vsel %vm2103, %v2482, 0.0
        %2484 = vadd.xlane.f32.xlu0 %v2483
        %v2485 = vpop.xlane.xlu0 %2484
        %v2486 = vmul.f32 %v2485, %v2107
        %v2487 = vsub.f32 %v2482, %v2486
        %v2488 = vmul.f32 %v2487, %v2487
        %v2489 = vsel %vm2103, %v2488, 0.0
        %2490 = vadd.xlane.f32.xlu0 %v2489
        %v2491 = vpop.xlane.xlu0 %2490
        %v2492 = vmul.f32 %v2491, %v2107
        %v2493 = vadd.f32 %v2492, 1e-05
        %v2494 = vrsqrt.pop %v2493
        %v2495 = vmul.f32 %v2487, %v2494
        %v2496 = vlaneseq
        %v2497 = vshrl.u32 %v2496, 7
        %v2498 = vsub.s32 1, %v2497
        %v2499 = vrot.slane %v2378, %v2498
        %v2500 = vmul.f32 %v2495, %v2499
        %v2501 = vlaneseq
        %v2502 = vshrl.u32 %v2501, 7
        %v2503 = vsub.s32 2, %v2502
        %v2504 = vrot.slane %v2378, %v2503
        %v2505 = vadd.f32 %v2500, %v2504
        %v2506 = vmax.f32 %v2505, 0.0
        %s2507 = scalar_lea.vmem %s10, 64
        %v2508 = vld [vmem:[%s2507] sm:$0xff]
        %v2509 = vld [vmem:[%s2507 + $0x8] sm:$0xff]
        %v2510 = vld [vmem:[%s2507 + $0x10] sm:$0xff]
        %v2511 = vld [vmem:[%s2507 + $0x18] sm:$0xff]
        %v2512 = vpack.c.bf16 %v2506, %v2506
        %v2513 = vpack.c.bf16 %v2509, %v2508
        %v2514 = vpack.c.bf16 %v2511, %v2510
        %s2515 = scalar_lea.vmem %s11, 2
        %v2516 = vld [vmem:[%s2515] sm:$0x1]
        %v2518 = vlaneseq
        %v2519 = vshrl.u32 %v2518, 7
        %v2520 = vsub.s32 0, %v2519
        %v2521 = vrot.slane %v2516, %v2520
        %v2524 = vsel %vm2103, %v2512, 0
        %2526 = vmatprep.subr.bf16.mxu0 0
        %2527 = vmatpush1.bf16.msra.mxu0 %v2513
        %2528 = vmatprep.subr.bf16.mxu0 0
        %2529 = vmatpush1.bf16.msra.mxu0 %v2514
        %2530 = vmatprep.subr.bf16.mxu0 0
        %2531 = vmatpush1.bf16.msra.mxu0 0
        %2532 = vmatprep.subr.bf16.mxu0 0
        %2533 = vmatpush1.bf16.msra.mxu0 0
        %2534 = vmatprep.subr.bf16.mxu0 0
        %2535 = vmatpush1.bf16.msra.mxu0 0
        %2536 = vmatprep.subr.bf16.mxu0 0
        %2537 = vmatpush1.bf16.msra.mxu0 0
        %2538 = vmatprep.subr.bf16.mxu0 0
        %2539 = vmatpush1.bf16.msra.mxu0 0
        %2540 = vmatprep.subr.bf16.mxu0 0
        %2541 = vmatpush1.bf16.msra.mxu0 0
        %2542 = vmatprep.subr.bf16.mxu0 0
        %2543 = vmatpush1.bf16.msra.mxu0 0
        %2544 = vmatprep.subr.bf16.mxu0 0
        %2545 = vmatpush1.bf16.msra.mxu0 0
        %2546 = vmatprep.subr.bf16.mxu0 0
        %2547 = vmatpush1.bf16.msra.mxu0 0
        %2548 = vmatprep.subr.bf16.mxu0 0
        %2549 = vmatpush1.bf16.msra.mxu0 0
        %2550 = vmatprep.subr.bf16.mxu0 0
        %2551 = vmatpush1.bf16.msra.mxu0 0
        %2552 = vmatprep.subr.bf16.mxu0 0
        %2553 = vmatpush1.bf16.msra.mxu0 0
        %2554 = vmatprep.subr.bf16.mxu0 0
        %2555 = vmatpush1.bf16.msra.mxu0 0
        %2556 = vmatprep.subr.bf16.mxu0 0
        %2557 = vmatpush1.bf16.msra.mxu0 0
        %2558 = vmatprep.mubr.bf16.mxu0 0
        %2559 = vmatmul.mubr.bf16.gmra.mrb[0].mxu0 %v2524
        %v2560 = vpop.f32.mrb[0].mxu0
        %v2561 = vadd.f32 %v2521, %v2560
        %v2562 = vpop.f32.mrb[0].mxu0
        %v2563 = vpop.f32.mrb[0].mxu0
        %v2564 = vpop.f32.mrb[0].mxu0
        %2565 = vdwg.mxu0
        %v2566 = vadd.f32 %v2376, %v2561
        %v2567 = vmul.bf16 %v1081, %v1081
        %v2568 = vunpack.c.l.bf16 %v2567
        %v2569 = vsel %vm1091, %v2568, 0.0
        %2570 = vadd.xlane.f32.xlu0 %v2569
        %v2571 = vpop.xlane.xlu0 %2570
        %v2572 = vpack.c.bf16 %v2571, %v2571
        %v2573 = vmul.bf16 %v1082, %v1082
        %v2574 = vunpack.c.l.bf16 %v2573
        %v2575 = vsel %vm1091, %v2574, 0.0
        %2576 = vadd.xlane.f32.xlu0 %v2575
        %v2577 = vpop.xlane.xlu0 %2576
        %v2578 = vpack.c.bf16 %v2577, %v2577
        %v2579 = vadd.bf16 %v2572, %v2578
        %v2580 = vunpack.c.l.bf16 %v2579
        %2582 = vrot.lane.b32.xlu0 %v1173, 1
        %v2583 = vpop.permute.xlu0 %2582
        %v2585 = vsel %vm1091, %v2566, %v1130
        %v2586 = vsel %vm2048, %v2585, %v2583
        %vm2587 = vcmask 146432
        %v2588 = vsel %vm2587, %v2586, %v2580
        %vm2589 = vcmask 154624
        %v2590 = vsel %vm2589, %v2588, 0.0
        %2591 = vst [vmem:[%s466] sm:$0xff] %v2590
        %p2592 = scmp.lt.s32.totalorder %s25, 1
        %s2593 = scalar_select %p2592, %s25, 1
        %s2594 = smul.addr %s2593, 8
        %s2595 = scalar_lea.vmem %s12, %s2594
        // Predicated region
        $region81: #{mogin12_forward.2} parent=67 // pred_check
          %p2596 = pneg %p305
        $region82: #{mogin12_forward.2} parent=67 // pred_check_branch
          %2598 = sbr.rel (%p2596) target = $region84
        $region83: #{mogin12_forward.2} parent=67 // pred_region
          _
        $region84: #{mogin12_forward.2} parent=67 // pred_fallthru
          _
      $region68: #{mogin12_forward.2} parent=5 // pred_fallthru
        _
      %p2599 = scmp.le.s32.totalorder 2, %s20
      // Predicated region
      $region85: #{mogin12_forward.2} parent=5 // pred_check
        %p2600 = pneg %p2599
      $region86: #{mogin12_forward.2} parent=5 // pred_check_branch
        %2602 = sbr.rel (%p2600) target = $region88
      $region87: #{mogin12_forward.2} parent=5 // pred_region
        %s2603 = ssub.s32 %s20, 2
        // Predicated region
        $region89: #{mogin12_forward.2} parent=87 // pred_check
          %p2604 = pneg %p311
        $region90: #{mogin12_forward.2} parent=87 // pred_check_branch
          %2606 = sbr.rel (%p2604) target = $region92
        $region91: #{mogin12_forward.2} parent=87 // pred_region
          %p2607 = scmp.lt.s32.totalorder %s26, 1
          %s2608 = scalar_select %p2607, %s26, 1
          %s2609 = smul.addr %s2608, 8
          %s2610 = scalar_lea.vmem %s12, %s2609
        $region92: #{mogin12_forward.2} parent=87 // pred_fallthru
          _
      $region88: #{mogin12_forward.2} parent=5 // pred_fallthru
        _
    $region6: #{mogin12_forward.2} parent=1 // loop_footer
      %s24 = sadd.s32 1, %s20
    $region7: #{mogin12_forward.2} parent=1 // loop_footer_branch
      %19 = sbr.rel target = $region3
    $region8: #{mogin12_forward.2} parent=1 // loop_exit
      _
    %2611 = vsyncpa [#allocation3], 1
    %s2612 = scalar_lea.sflag [#allocation3], 1
    %2613 = vsyncpa %s2612, 1
    %2614 = vsyncpa [#allocation5], 1

</llo_original>
